<compile_context>
chip_gen: v5e
topology: v5e:2x2
jax: 0.10.0
libtpu: 0.0.40
codegen_flags: <defaults>
</compile_context>

<pallas_src>
import functools

import jax
import jax.numpy as jnp
from jax.experimental import pallas as pl
from jax.experimental.pallas import tpu as pltpu

DIM_WARP = 32
RESCALE_NODE = (1, 1)   # (resca_norm, resca_act); not defined in the PyTorch snippet
EPS = 1e-5              # nn.GroupNorm default eps
OUT_LANES = 128         # lane-dense output width (>= 128 -> unmasked stores)


# ---------------------------------------------------------------------------
# Pallas kernel: fused VirtBlock.gate + GatedLinearBlock for one tile of nodes
# ---------------------------------------------------------------------------
def virt_block_kernel(xv_ref, w1_ref, p_ref, sc_ref, bi_ref,
                      wgv_ref, wpost_ref, out_ref, *, wn, wa):
    # 1) Fused pre-dense for both branches: [TN, 2W] @ [2W, 2Wn] -> [TN, 2Wn]
    #    h[:, :Wn] = x @ w_gate_dense.T ; h[:, Wn:] = v @ w_pre.T
    h = jnp.dot(xv_ref[...], w1_ref[...], preferred_element_type=jnp.float32)

    # 2) GroupNorm (affine=False) over 2*nhead groups via a constant
    #    block-diagonal averaging matrix P.  Stats matmuls run bf16-in /
    #    f32-accumulate (single MXU pass; 1/group_size is exact in bf16).
    mean = jnp.dot(h.astype(p_ref.dtype), p_ref[...],
                   preferred_element_type=jnp.float32)
    c = h - mean
    var = jnp.dot((c * c).astype(p_ref.dtype), p_ref[...],
                  preferred_element_type=jnp.float32)
    # ScaleLayer folded into the normalization FMA (identity on the xn half).
    hn = c * (jax.lax.rsqrt(var + EPS) * sc_ref[...]) + bi_ref[...]   # [gb | xn]

    # 3) Gate input = gb + xn, built with a half-width lane rotation (XLU slot)
    #    + masked add (VPU) -- no lane slicing.  gate_in = [gb + xn | xn].
    lane_n = jax.lax.broadcasted_iota(jnp.int32, hn.shape, 1)
    gate_in = jnp.where(lane_n < wn, hn + pltpu.roll(hn, shift=wn, axis=1), hn)

    # 4) Merged gate/value matmul: [gi | xn] @ blockdiag(Wg, Wv) -> [g | val].
    gv = jnp.dot(gate_in.astype(wgv_ref.dtype), wgv_ref[...],
                 preferred_element_type=jnp.float32)
    lane_a = jax.lax.broadcasted_iota(jnp.int32, gv.shape, 1)
    gv = jnp.where(lane_a < wa, jnp.maximum(gv, 0.0), gv)   # ReLU on gate half only
    # Dropout(0.1) is identity in eval mode.
    act = gv * pltpu.roll(gv, shift=wa, axis=1)              # [g*val | val*g]
    act = act.astype(wpost_ref.dtype)

    # 5) msg.post with lane-dense 128-wide output (bottom Wa rows of wpost are
    #    zero so the mirrored half of `act` is discarded).
    out_ref[...] = jnp.dot(act, wpost_ref[...], preferred_element_type=jnp.float32)


# ---------------------------------------------------------------------------
# Weight packing: done ONCE (hoisted out of the forward call)
# ---------------------------------------------------------------------------
def pack_params(params, *, nhead, out_lanes=OUT_LANES, mxu_dtype=jnp.bfloat16):
    wgd = params['w_gate_dense']                         # [Wn, W]
    wpre = params['w_pre']                               # [Wn, W]
    wn = wgd.shape[0]
    d = wn // nhead

    # Fused, pre-transposed block-diagonal "pre" weight: [2W, 2Wn]
    w1 = jax.scipy.linalg.block_diag(wgd.T, wpre.T)

    # GroupNorm averaging matrix over 2*nhead groups of size d: [2Wn, 2Wn]
    p = jax.scipy.linalg.block_diag(
        *([jnp.full((d, d), 1.0 / d, jnp.float32)] * (2 * nhead)))

    # ScaleLayer on the gb half, identity on the xn half
    sc = jnp.concatenate([params['g_scale'].reshape(1, wn),
                          jnp.ones((1, wn), jnp.float32)], axis=-1)
    bi = jnp.concatenate([params['g_bias'].reshape(1, wn),
                          jnp.zeros((1, wn), jnp.float32)], axis=-1)

    # Grouped 1x1 convs as block-diagonal matmuls (pre-transposed), then merged
    # into one [2Wn, 2Wa] weight so gate and value come out of a single matmul.
    wg_bd = jax.scipy.linalg.block_diag(*[params['w_gate'][h].T for h in range(nhead)])
    wv_bd = jax.scipy.linalg.block_diag(*[params['w_value'][h].T for h in range(nhead)])
    wa = wg_bd.shape[1]
    wgv = jax.scipy.linalg.block_diag(wg_bd, wv_bd)      # [2Wn, 2Wa]

    # msg.post, zero-padded to a lane-dense [2Wa, out_lanes] output; the bottom
    # Wa rows are zero to discard the mirrored half of the activation.
    wpost_t = params['w_post'].T                         # [Wa, W]
    width = wpost_t.shape[1]
    wpost_pad = jnp.zeros((2 * wa, out_lanes), jnp.float32)
    wpost_pad = wpost_pad.at[:wa, :width].set(wpost_t)

    return dict(
        w1=w1.astype(mxu_dtype),
        p=p.astype(mxu_dtype),          # bf16 stats path (1/d exact in bf16)
        sc=sc.astype(jnp.float32),
        bi=bi.astype(jnp.float32),
        wgv=wgv.astype(mxu_dtype),
        wpost=wpost_pad.astype(mxu_dtype),
    )


# ---------------------------------------------------------------------------
# Wrapper (plain-JAX glue for the irregular segment reduce + gather)
# ---------------------------------------------------------------------------
def virt_block_forward(x, virt_res, batch, idxptr, packed, *, tile_nodes=1024):
    n, width = x.shape
    num_seg = idxptr.shape[0] - 1

    # TODO(synk): segment_csr(x, idxptr, 'sum') + virt_res[batch] gather are
    # data-dependent indexing; done in plain JAX (batch assumed consistent with
    # idxptr, as in the PyTorch module).
    seg_sum = jax.ops.segment_sum(x, batch, num_segments=num_seg)
    virt_res_new = seg_sum if virt_res is None else seg_sum + virt_res
    v_nodes = virt_res_new[batch]                                      # [N, W]

    mxu_dtype = packed['w1'].dtype
    # Concatenate the two pre-dense inputs on the lane axis -> one fused matmul.
    xv = jnp.concatenate([x, v_nodes], axis=-1).astype(mxu_dtype)      # [N, 2W]

    # Tile selection: big tiles amortize the ~0.35us/grid-step overhead, but keep
    # the grid length >= 2 when node count allows so both v7x TensorCores get
    # work under dimension_semantics=("parallel",).
    tn = tile_nodes
    while tn > 256 and n <= tn:
        tn //= 2
    n_pad = pl.cdiv(n, tn) * tn
    if n_pad != n:
        xv = jnp.pad(xv, ((0, n_pad - n), (0, 0)))

    wn = packed['sc'].shape[1] // 2
    wa = packed['wgv'].shape[1] // 2
    out_lanes = packed['wpost'].shape[1]
    c2 = xv.shape[1]

    def full(a):
        nd = a.ndim
        return pl.BlockSpec(a.shape, lambda i, _nd=nd: (0,) * _nd)

    out = pl.pallas_call(
        functools.partial(virt_block_kernel, wn=wn, wa=wa),
        out_shape=jax.ShapeDtypeStruct((n_pad, out_lanes), jnp.float32),
        grid=(n_pad // tn,),
        in_specs=[
            pl.BlockSpec((tn, c2), lambda i: (i, 0)),          # [x | v] node tile
            # Resident weights (constant index maps).  pl.Buffered(1) would save
            # a second copy of each, but the total footprint here is tiny.
            full(packed['w1']),
            full(packed['p']),
            full(packed['sc']),
            full(packed['bi']),
            full(packed['wgv']),
            full(packed['wpost']),
        ],
        out_specs=pl.BlockSpec((tn, out_lanes), lambda i: (i, 0)),
        compiler_params=pltpu.CompilerParams(
            # Node tiles are independent (no cross-iteration accumulator), so the
            # grid axis can be sharded across v7x's two TensorCores.
            dimension_semantics=("parallel",)),
    )(xv, packed['w1'], packed['p'], packed['sc'], packed['bi'],
      packed['wgv'], packed['wpost'])

    return out[:n, :width], virt_res_new


# ---------------------------------------------------------------------------
# Pure-JAX reference (independent per-head formulation; mirrors the bf16
# matmul quantization points of the kernel so the comparison is tight, but
# keeps GroupNorm statistics in f32).
# ---------------------------------------------------------------------------
def reference_forward(x, virt_res, batch, idxptr, params, *, nhead,
                      mxu_dtype=jnp.bfloat16):
    num_seg = idxptr.shape[0] - 1
    seg_sum = jax.ops.segment_sum(x, batch, num_segments=num_seg)
    vr = seg_sum if virt_res is None else seg_sum + virt_res
    v = vr[batch]

    def dense(a, w):  # DenseLayer (bias=False): a @ w.T, bf16 MXU in, f32 accum
        return jnp.dot(a.astype(mxu_dtype), w.T.astype(mxu_dtype),
                       preferred_element_type=jnp.float32)

    def gn(h):
        t, c = h.shape
        hh = h.reshape(t, nhead, c // nhead)
        mean = hh.mean(-1, keepdims=True)
        var = ((hh - mean) ** 2).mean(-1, keepdims=True)
        return ((hh - mean) * jax.lax.rsqrt(var + EPS)).reshape(t, c)

    gb = gn(dense(x, params['w_gate_dense']))
    gb = gb * params['g_scale'].reshape(-1) + params['g_bias'].reshape(-1)
    xn = gn(dense(v, params['w_pre']))

    t = x.shape[0]
    dn = xn.shape[1] // nhead
    gi_h = (xn + gb).reshape(t, nhead, dn).astype(mxu_dtype)
    xn_h = xn.reshape(t, nhead, dn).astype(mxu_dtype)
    g = jnp.maximum(jnp.einsum('tnd,nad->tna', gi_h,
                               params['w_gate'].astype(mxu_dtype),
                               preferred_element_type=jnp.float32), 0.0)
    val = jnp.einsum('tnd,nad->tna', xn_h,
                     params['w_value'].astype(mxu_dtype),
                     preferred_element_type=jnp.float32)
    act = (g * val).reshape(t, -1)
    out = jnp.dot(act.astype(mxu_dtype), params['w_post'].T.astype(mxu_dtype),
                  preferred_element_type=jnp.float32)
    return out, vr


# ---------------------------------------------------------------------------
if __name__ == "__main__":
    width = 32
    nhead = 2
    width_norm = DIM_WARP * nhead * RESCALE_NODE[0]    # 64
    width_act = DIM_WARP * nhead * RESCALE_NODE[1]     # 64
    d_norm = width_norm // nhead
    d_act = width_act // nhead

    n_nodes = 1000          # not a multiple of the tile -> exercises padding path
    n_seg = 8

    key = jax.random.PRNGKey(0)
    k = jax.random.split(key, 8)

    params = {
        # VirtBlock.gate = DenseLayer(width, width_norm) -> GroupNorm -> ScaleLayer
        'w_gate_dense': 0.1 * jax.random.normal(k[0], (width_norm, width), jnp.float32),
        'g_scale': jnp.ones((width_norm,), jnp.float32),   # ScaleLayer init
        'g_bias': jnp.zeros((width_norm,), jnp.float32),
        # msg.pre / msg.gate / msg.value / msg.post
        'w_pre': 0.1 * jax.random.normal(k[1], (width_norm, width), jnp.float32),
        'w_gate': 0.1 * jax.random.normal(k[2], (nhead, d_act, d_norm), jnp.float32),
        'w_value': 0.1 * jax.random.normal(k[3], (nhead, d_act, d_norm), jnp.float32),
        'w_post': 0.1 * jax.random.normal(k[4], (width, width_act), jnp.float32),
    }

    x = jax.random.normal(k[5], (n_nodes, width), jnp.float32)
    batch = jnp.repeat(jnp.arange(n_seg, dtype=jnp.int32), n_nodes // n_seg)
    idxptr = jnp.arange(0, n_nodes + 1, n_nodes // n_seg, dtype=jnp.int32)

    # Pack weights once (hoisted out of the forward call).
    packed = pack_params(params, nhead=nhead)
    packed = jax.tree_util.tree_map(jax.block_until_ready, packed)

    fwd = jax.jit(virt_block_forward)

    # First call: virt_res is None
    xx, vr = fwd(x, None, batch, idxptr, packed)
    xx = jax.block_until_ready(xx)
    vr = jax.block_until_ready(vr)
    xx_ref, vr_ref = reference_forward(x, None, batch, idxptr, params, nhead=nhead)
    assert jnp.allclose(xx, xx_ref, rtol=2e-2, atol=2e-2), "output mismatch (call 1)"
    assert jnp.allclose(vr, vr_ref, rtol=1e-4, atol=1e-4), "virt_res mismatch (call 1)"

    # Second call: virt_res carried over (exercises the accumulate branch)
    xx2, vr2 = fwd(x, vr, batch, idxptr, packed)
    xx2 = jax.block_until_ready(xx2)
    vr2 = jax.block_until_ready(vr2)
    xx2_ref, vr2_ref = reference_forward(x, vr_ref, batch, idxptr, params, nhead=nhead)
    assert jnp.allclose(xx2, xx2_ref, rtol=2e-2, atol=2e-2), "output mismatch (call 2)"
    assert jnp.allclose(vr2, vr2_ref, rtol=1e-4, atol=1e-4), "virt_res mismatch (call 2)"

    print("KERNEL_OK")
</pallas_src>

<mosaic_0001>
module attributes {stable_mosaic.version = 11 : i64} {
  func.func @virt_block_kernel(%arg0: i32, %arg1: memref<512x64xbf16, #tpu.memory_space<vmem>>, %arg2: memref<64x128xbf16, #tpu.memory_space<vmem>>, %arg3: memref<128x128xbf16, #tpu.memory_space<vmem>>, %arg4: memref<1x128xf32, #tpu.memory_space<vmem>>, %arg5: memref<1x128xf32, #tpu.memory_space<vmem>>, %arg6: memref<128x128xbf16, #tpu.memory_space<vmem>>, %arg7: memref<128x128xbf16, #tpu.memory_space<vmem>>, %arg8: memref<512x128xf32, #tpu.memory_space<vmem>>) attributes {dimension_semantics = [#tpu.dimension_semantics<parallel>], iteration_bounds = array<i64: 2>, scalar_prefetch = 0 : i64, scratch_operands = 0 : i64, tpu.core_type = #tpu.core_type<tc>, window_params = [{transform_indices = @transform_0, window_bounds = array<i64: 512, 64>}, {pipeline_mode = #tpu.pipeline_mode<synchronous>, transform_indices = @transform_1, window_bounds = array<i64: 64, 128>}, {pipeline_mode = #tpu.pipeline_mode<synchronous>, transform_indices = @transform_2, window_bounds = array<i64: 128, 128>}, {pipeline_mode = #tpu.pipeline_mode<synchronous>, transform_indices = @transform_3, window_bounds = array<i64: 1, 128>}, {pipeline_mode = #tpu.pipeline_mode<synchronous>, transform_indices = @transform_4, window_bounds = array<i64: 1, 128>}, {pipeline_mode = #tpu.pipeline_mode<synchronous>, transform_indices = @transform_5, window_bounds = array<i64: 128, 128>}, {pipeline_mode = #tpu.pipeline_mode<synchronous>, transform_indices = @transform_6, window_bounds = array<i64: 128, 128>}, {transform_indices = @transform_7, window_bounds = array<i64: 512, 128>}]} {
    %c0 = arith.constant 0 : index
    %c0_0 = arith.constant 0 : index
    %0 = vector.load %arg1[%c0, %c0_0] : memref<512x64xbf16, #tpu.memory_space<vmem>>, vector<512x64xbf16>
    %c0_1 = arith.constant 0 : index
    %c0_2 = arith.constant 0 : index
    %1 = vector.load %arg2[%c0_1, %c0_2] : memref<64x128xbf16, #tpu.memory_space<vmem>>, vector<64x128xbf16>
    %cst = arith.constant dense<0.000000e+00> : vector<512x128xf32>
    %2 = tpu.matmul %0, %1, %cst {dimension_numbers = #tpu.dot_dimension_numbers<[1], [0], [0], [1], [0, 0, 1, 1], [], []>} : vector<512x64xbf16>, vector<64x128xbf16>, vector<512x128xf32> -> vector<512x128xf32>
    %3 = arith.truncf %2 : vector<512x128xf32> to vector<512x128xbf16>
    %c0_3 = arith.constant 0 : index
    %c0_4 = arith.constant 0 : index
    %4 = vector.load %arg3[%c0_3, %c0_4] : memref<128x128xbf16, #tpu.memory_space<vmem>>, vector<128x128xbf16>
    %cst_5 = arith.constant dense<0.000000e+00> : vector<512x128xf32>
    %5 = tpu.matmul %3, %4, %cst_5 {dimension_numbers = #tpu.dot_dimension_numbers<[1], [0], [0], [1], [0, 0, 1, 1], [], []>} : vector<512x128xbf16>, vector<128x128xbf16>, vector<512x128xf32> -> vector<512x128xf32>
    %6 = arith.subf %2, %5 : vector<512x128xf32>
    %7 = arith.mulf %6, %6 : vector<512x128xf32>
    %8 = arith.truncf %7 : vector<512x128xf32> to vector<512x128xbf16>
    %c0_6 = arith.constant 0 : index
    %c0_7 = arith.constant 0 : index
    %9 = vector.load %arg3[%c0_6, %c0_7] : memref<128x128xbf16, #tpu.memory_space<vmem>>, vector<128x128xbf16>
    %cst_8 = arith.constant dense<0.000000e+00> : vector<512x128xf32>
    %10 = tpu.matmul %8, %9, %cst_8 {dimension_numbers = #tpu.dot_dimension_numbers<[1], [0], [0], [1], [0, 0, 1, 1], [], []>} : vector<512x128xbf16>, vector<128x128xbf16>, vector<512x128xf32> -> vector<512x128xf32>
    %cst_9 = arith.constant 9.99999974E-6 : f32
    %11 = vector.broadcast %cst_9 : f32 to vector<512x128xf32>
    %12 = arith.addf %10, %11 : vector<512x128xf32>
    %13 = math.rsqrt %12 : vector<512x128xf32>
    %c0_10 = arith.constant 0 : index
    %c0_11 = arith.constant 0 : index
    %14 = vector.load %arg4[%c0_10, %c0_11] : memref<1x128xf32, #tpu.memory_space<vmem>>, vector<1x128xf32>
    %15 = vector.broadcast %14 : vector<1x128xf32> to vector<512x128xf32>
    %16 = arith.mulf %13, %15 : vector<512x128xf32>
    %17 = arith.mulf %6, %16 : vector<512x128xf32>
    %c0_12 = arith.constant 0 : index
    %c0_13 = arith.constant 0 : index
    %18 = vector.load %arg5[%c0_12, %c0_13] : memref<1x128xf32, #tpu.memory_space<vmem>>, vector<1x128xf32>
    %19 = vector.broadcast %18 : vector<1x128xf32> to vector<512x128xf32>
    %20 = arith.addf %17, %19 : vector<512x128xf32>
    %21 = tpu.iota {dimensions = array<i32: 1>} : vector<512x128xi32>
    %c64_i32 = arith.constant 64 : i32
    %22 = vector.broadcast %c64_i32 : i32 to vector<512x128xi32>
    %23 = arith.cmpi slt, %21, %22 : vector<512x128xi32>
    %c64_i32_14 = arith.constant 64 : i32
    %24 = tpu.dynamic_rotate %20 by %c64_i32_14 dim 1 : vector<512x128xf32>, i32 -> vector<512x128xf32>
    %25 = arith.addf %20, %24 : vector<512x128xf32>
    %26 = arith.select %23, %25, %20 : vector<512x128xi1>, vector<512x128xf32>
    %27 = arith.truncf %26 : vector<512x128xf32> to vector<512x128xbf16>
    %c0_15 = arith.constant 0 : index
    %c0_16 = arith.constant 0 : index
    %28 = vector.load %arg6[%c0_15, %c0_16] : memref<128x128xbf16, #tpu.memory_space<vmem>>, vector<128x128xbf16>
    %cst_17 = arith.constant dense<0.000000e+00> : vector<512x128xf32>
    %29 = tpu.matmul %27, %28, %cst_17 {dimension_numbers = #tpu.dot_dimension_numbers<[1], [0], [0], [1], [0, 0, 1, 1], [], []>} : vector<512x128xbf16>, vector<128x128xbf16>, vector<512x128xf32> -> vector<512x128xf32>
    %30 = tpu.iota {dimensions = array<i32: 1>} : vector<512x128xi32>
    %c64_i32_18 = arith.constant 64 : i32
    %31 = vector.broadcast %c64_i32_18 : i32 to vector<512x128xi32>
    %32 = arith.cmpi slt, %30, %31 : vector<512x128xi32>
    %cst_19 = arith.constant 0.000000e+00 : f32
    %33 = vector.broadcast %cst_19 : f32 to vector<512x128xf32>
    %34 = arith.maximumf %29, %33 : vector<512x128xf32>
    %35 = arith.select %32, %34, %29 : vector<512x128xi1>, vector<512x128xf32>
    %c64_i32_20 = arith.constant 64 : i32
    %36 = tpu.dynamic_rotate %35 by %c64_i32_20 dim 1 : vector<512x128xf32>, i32 -> vector<512x128xf32>
    %37 = arith.mulf %35, %36 : vector<512x128xf32>
    %38 = arith.truncf %37 : vector<512x128xf32> to vector<512x128xbf16>
    %c0_21 = arith.constant 0 : index
    %c0_22 = arith.constant 0 : index
    %39 = vector.load %arg7[%c0_21, %c0_22] : memref<128x128xbf16, #tpu.memory_space<vmem>>, vector<128x128xbf16>
    %cst_23 = arith.constant dense<0.000000e+00> : vector<512x128xf32>
    %40 = tpu.matmul %38, %39, %cst_23 {dimension_numbers = #tpu.dot_dimension_numbers<[1], [0], [0], [1], [0, 0, 1, 1], [], []>} : vector<512x128xbf16>, vector<128x128xbf16>, vector<512x128xf32> -> vector<512x128xf32>
    %c0_24 = arith.constant 0 : index
    %c0_25 = arith.constant 0 : index
    %41 = vector.load %arg8[%c0_24, %c0_25] : memref<512x128xf32, #tpu.memory_space<vmem>>, vector<512x128xf32>
    tpu.vector_store %arg8[%c0_24, %c0_25], %40 {strides = array<i32>} : memref<512x128xf32, #tpu.memory_space<vmem>>, vector<512x128xf32>,
    return
  }
  func.func @transform_0(%arg0: i32) -> (i32, i32) {
    %c0_i32 = arith.constant 0 : i32
    %c0_i32_0 = arith.constant 0 : i32
    return %arg0, %c0_i32 : i32, i32
  }
  func.func @transform_1(%arg0: i32) -> (i32, i32) {
    %c0_i32 = arith.constant 0 : i32
    %c0_i32_0 = arith.constant 0 : i32
    %c0_i32_1 = arith.constant 0 : i32
    return %c0_i32, %c0_i32_0 : i32, i32
  }
  func.func @transform_2(%arg0: i32) -> (i32, i32) {
    %c0_i32 = arith.constant 0 : i32
    %c0_i32_0 = arith.constant 0 : i32
    %c0_i32_1 = arith.constant 0 : i32
    return %c0_i32, %c0_i32_0 : i32, i32
  }
  func.func @transform_3(%arg0: i32) -> (i32, i32) {
    %c0_i32 = arith.constant 0 : i32
    %c0_i32_0 = arith.constant 0 : i32
    %c0_i32_1 = arith.constant 0 : i32
    return %c0_i32, %c0_i32_0 : i32, i32
  }
  func.func @transform_4(%arg0: i32) -> (i32, i32) {
    %c0_i32 = arith.constant 0 : i32
    %c0_i32_0 = arith.constant 0 : i32
    %c0_i32_1 = arith.constant 0 : i32
    return %c0_i32, %c0_i32_0 : i32, i32
  }
  func.func @transform_5(%arg0: i32) -> (i32, i32) {
    %c0_i32 = arith.constant 0 : i32
    %c0_i32_0 = arith.constant 0 : i32
    %c0_i32_1 = arith.constant 0 : i32
    return %c0_i32, %c0_i32_0 : i32, i32
  }
  func.func @transform_6(%arg0: i32) -> (i32, i32) {
    %c0_i32 = arith.constant 0 : i32
    %c0_i32_0 = arith.constant 0 : i32
    %c0_i32_1 = arith.constant 0 : i32
    return %c0_i32, %c0_i32_0 : i32, i32
  }
  func.func @transform_7(%arg0: i32) -> (i32, i32) {
    %c0_i32 = arith.constant 0 : i32
    %c0_i32_0 = arith.constant 0 : i32
    return %arg0, %c0_i32 : i32, i32
  }
}

</mosaic_0001>

<llo_original>
// kernel: virt_block_forward.1
$region0: #{virt_block_forward.1}
  #allocation0 [shape = 'u32[]', space=smem, size = 0x4, offset = 0x4, fixed_abs, tag = 'smem constant byte address 0x4 - core index']
  #allocation1 [shape = 'u32[72,128]{1,0:T(1,128)}', space=vmem, size = 0x9000, scoped, tag = 'internal scratch']
  %s0 = inlined_call_operand.vmem [shape: bf16[1024,64], index: 0, kind: input, shape index: {}]
  %s1 = inlined_call_operand.vmem [shape: bf16[64,128], index: 1, kind: input, shape index: {}]
  %s2 = inlined_call_operand.vmem [shape: bf16[128,128], index: 2, kind: input, shape index: {}]
  %s3 = inlined_call_operand.vmem [shape: f32[1,128], index: 3, kind: input, shape index: {}]
  %s4 = inlined_call_operand.vmem [shape: f32[1,128], index: 4, kind: input, shape index: {}]
  %s5 = inlined_call_operand.vmem [shape: bf16[128,128], index: 5, kind: input, shape index: {}]
  %s6 = inlined_call_operand.vmem [shape: bf16[128,128], index: 6, kind: input, shape index: {}]
  %s7 = inlined_call_operand.vmem [shape: f32[1024,128], index: 7, kind: output, shape index: {}]
  %s8 = sld [smem:[#allocation0]]
  $region61: #{virt_block_forward.1} parent=0
    _
  %s10 = ssub.s32 1, %s8
  %s11 = scalar_select 0, %s10, %s8
  loop: start=0, step=1, limit=4
  $region2: #{virt_block_forward.1} parent=0 // loop_pre_header
    _
  $region3: #{virt_block_forward.1} parent=0 // loop_header
    %s13 = sphi 0, %s17
    %p14 = scmp.ge.s32.totalorder %s13, 4
    %s23 = sphi 0, %s25
    %s26 = sphi 0, %s23
    %s27 = sphi 0, %s26
    %s43 = sphi 0, %s27
    %s47 = sphi 0, %s47
    %s49 = sphi 0, %s47
    %s50 = sphi 0, %s49
    %s64 = sphi 0, %s50
    %s68 = sphi 0, %s68
    %s70 = sphi 0, %s68
    %s71 = sphi 0, %s70
    %s85 = sphi 0, %s71
    %s89 = sphi 0, %s89
    %s91 = sphi 0, %s89
    %s92 = sphi 0, %s91
    %s106 = sphi 0, %s92
    %s110 = sphi 0, %s110
    %s112 = sphi 0, %s110
    %s113 = sphi 0, %s112
    %s127 = sphi 0, %s113
    %s131 = sphi 0, %s131
    %s133 = sphi 0, %s131
    %s134 = sphi 0, %s133
    %s148 = sphi 0, %s134
    %s152 = sphi 0, %s152
    %s154 = sphi 0, %s152
    %s155 = sphi 0, %s154
    %s169 = sphi 0, %s155
    %s175 = sphi 0, %s177
    %s178 = sphi 0, %s175
    %s179 = sphi 0, %s178
    %s195 = sphi 0, %s179
  $region4: #{virt_block_forward.1} parent=0 // loop_header_branch
    %16 = sbr.rel (%p14) target = $region8
  $region5: #{virt_block_forward.1} parent=0 // loop_body
    %s18 = ssub.s32 %s13, 1
    %s19 = ssub.s32 %s13, 2
    %s20 = sadd.s32 %s13, 1
    %s21 = ssub.s32 %s13, %s20
    %p22 = scmp.eq.s32.totalorder %s21, 0
    %s24 = sadd.s32 %s23, 1
    %s25 = scalar_select %p22, %s23, %s24
    %p28 = pneg %p22
    %p29 = scmp.eq.s32.totalorder %s13, 1
    %p30 = por %p28, %p29
    %p31 = scmp.ne.s32.totalorder %s23, %s26
    %p32 = scmp.eq.s32.totalorder %s13, 0
    %p33 = por %p31, %p32
    %p34 = scmp.ne.s32.totalorder %s23, %s26
    %p35 = scmp.eq.s32.totalorder %s18, 1
    %p36 = por %p34, %p35
    %p37 = scmp.ne.s32.totalorder %s26, %s27
    %p38 = scmp.eq.s32.totalorder %s18, 0
    %p39 = por %p37, %p38
    %p40 = scmp.ne.s32.totalorder %s26, %s27
    %p41 = scmp.eq.s32.totalorder %s19, 1
    %p42 = por %p40, %p41
    %p44 = scmp.ne.s32.totalorder %s27, %s43
    %p45 = scmp.eq.s32.totalorder %s19, 0
    %p46 = por %p44, %p45
    %s48 = sadd.s32 %s47, 1
    %p51 = scmp.eq.s32.totalorder %s13, 1
    %p52 = scmp.ne.s32.totalorder %s47, %s49
    %p53 = scmp.eq.s32.totalorder %s13, 0
    %p54 = por %p52, %p53
    %p55 = scmp.ne.s32.totalorder %s47, %s49
    %p56 = scmp.eq.s32.totalorder %s18, 1
    %p57 = por %p55, %p56
    %p58 = scmp.ne.s32.totalorder %s49, %s50
    %p59 = scmp.eq.s32.totalorder %s18, 0
    %p60 = por %p58, %p59
    %p61 = scmp.ne.s32.totalorder %s49, %s50
    %p62 = scmp.eq.s32.totalorder %s19, 1
    %p63 = por %p61, %p62
    %p65 = scmp.ne.s32.totalorder %s50, %s64
    %p66 = scmp.eq.s32.totalorder %s19, 0
    %p67 = por %p65, %p66
    %s69 = sadd.s32 %s68, 1
    %p72 = scmp.eq.s32.totalorder %s13, 1
    %p73 = scmp.ne.s32.totalorder %s68, %s70
    %p74 = scmp.eq.s32.totalorder %s13, 0
    %p75 = por %p73, %p74
    %p76 = scmp.ne.s32.totalorder %s68, %s70
    %p77 = scmp.eq.s32.totalorder %s18, 1
    %p78 = por %p76, %p77
    %p79 = scmp.ne.s32.totalorder %s70, %s71
    %p80 = scmp.eq.s32.totalorder %s18, 0
    %p81 = por %p79, %p80
    %p82 = scmp.ne.s32.totalorder %s70, %s71
    %p83 = scmp.eq.s32.totalorder %s19, 1
    %p84 = por %p82, %p83
    %p86 = scmp.ne.s32.totalorder %s71, %s85
    %p87 = scmp.eq.s32.totalorder %s19, 0
    %p88 = por %p86, %p87
    %s90 = sadd.s32 %s89, 1
    %p93 = scmp.eq.s32.totalorder %s13, 1
    %p94 = scmp.ne.s32.totalorder %s89, %s91
    %p95 = scmp.eq.s32.totalorder %s13, 0
    %p96 = por %p94, %p95
    %p97 = scmp.ne.s32.totalorder %s89, %s91
    %p98 = scmp.eq.s32.totalorder %s18, 1
    %p99 = por %p97, %p98
    %p100 = scmp.ne.s32.totalorder %s91, %s92
    %p101 = scmp.eq.s32.totalorder %s18, 0
    %p102 = por %p100, %p101
    %p103 = scmp.ne.s32.totalorder %s91, %s92
    %p104 = scmp.eq.s32.totalorder %s19, 1
    %p105 = por %p103, %p104
    %p107 = scmp.ne.s32.totalorder %s92, %s106
    %p108 = scmp.eq.s32.totalorder %s19, 0
    %p109 = por %p107, %p108
    %s111 = sadd.s32 %s110, 1
    %p114 = scmp.eq.s32.totalorder %s13, 1
    %p115 = scmp.ne.s32.totalorder %s110, %s112
    %p116 = scmp.eq.s32.totalorder %s13, 0
    %p117 = por %p115, %p116
    %p118 = scmp.ne.s32.totalorder %s110, %s112
    %p119 = scmp.eq.s32.totalorder %s18, 1
    %p120 = por %p118, %p119
    %p121 = scmp.ne.s32.totalorder %s112, %s113
    %p122 = scmp.eq.s32.totalorder %s18, 0
    %p123 = por %p121, %p122
    %p124 = scmp.ne.s32.totalorder %s112, %s113
    %p125 = scmp.eq.s32.totalorder %s19, 1
    %p126 = por %p124, %p125
    %p128 = scmp.ne.s32.totalorder %s113, %s127
    %p129 = scmp.eq.s32.totalorder %s19, 0
    %p130 = por %p128, %p129
    %s132 = sadd.s32 %s131, 1
    %p135 = scmp.eq.s32.totalorder %s13, 1
    %p136 = scmp.ne.s32.totalorder %s131, %s133
    %p137 = scmp.eq.s32.totalorder %s13, 0
    %p138 = por %p136, %p137
    %p139 = scmp.ne.s32.totalorder %s131, %s133
    %p140 = scmp.eq.s32.totalorder %s18, 1
    %p141 = por %p139, %p140
    %p142 = scmp.ne.s32.totalorder %s133, %s134
    %p143 = scmp.eq.s32.totalorder %s18, 0
    %p144 = por %p142, %p143
    %p145 = scmp.ne.s32.totalorder %s133, %s134
    %p146 = scmp.eq.s32.totalorder %s19, 1
    %p147 = por %p145, %p146
    %p149 = scmp.ne.s32.totalorder %s134, %s148
    %p150 = scmp.eq.s32.totalorder %s19, 0
    %p151 = por %p149, %p150
    %s153 = sadd.s32 %s152, 1
    %p156 = scmp.eq.s32.totalorder %s13, 1
    %p157 = scmp.ne.s32.totalorder %s152, %s154
    %p158 = scmp.eq.s32.totalorder %s13, 0
    %p159 = por %p157, %p158
    %p160 = scmp.ne.s32.totalorder %s152, %s154
    %p161 = scmp.eq.s32.totalorder %s18, 1
    %p162 = por %p160, %p161
    %p163 = scmp.ne.s32.totalorder %s154, %s155
    %p164 = scmp.eq.s32.totalorder %s18, 0
    %p165 = por %p163, %p164
    %p166 = scmp.ne.s32.totalorder %s154, %s155
    %p167 = scmp.eq.s32.totalorder %s19, 1
    %p168 = por %p166, %p167
    %p170 = scmp.ne.s32.totalorder %s155, %s169
    %p171 = scmp.eq.s32.totalorder %s19, 0
    %p172 = por %p170, %p171
    %s173 = ssub.s32 %s13, %s20
    %p174 = scmp.eq.s32.totalorder %s173, 0
    %s176 = sadd.s32 %s175, 1
    %s177 = scalar_select %p174, %s175, %s176
    %p180 = pneg %p174
    %p181 = scmp.eq.s32.totalorder %s13, 1
    %p182 = por %p180, %p181
    %p183 = scmp.ne.s32.totalorder %s175, %s178
    %p184 = scmp.eq.s32.totalorder %s13, 0
    %p185 = por %p183, %p184
    %p186 = scmp.ne.s32.totalorder %s175, %s178
    %p187 = scmp.eq.s32.totalorder %s18, 1
    %p188 = por %p186, %p187
    %p189 = scmp.ne.s32.totalorder %s178, %s179
    %p190 = scmp.eq.s32.totalorder %s18, 0
    %p191 = por %p189, %p190
    %p192 = scmp.ne.s32.totalorder %s178, %s179
    %p193 = scmp.eq.s32.totalorder %s19, 1
    %p194 = por %p192, %p193
    %p196 = scmp.ne.s32.totalorder %s179, %s195
    %p197 = scmp.eq.s32.totalorder %s19, 0
    %p198 = por %p196, %p197
    %p199 = scmp.le.s32.totalorder 1, %s13
    %p200 = scmp.lt.s32.totalorder %s13, 3
    %p201 = pnand %p199, %p200
    %p202 = pneg %p201
    // Predicated region
    $region9: #{virt_block_forward.1} parent=5 // pred_check
      _
    $region10: #{virt_block_forward.1} parent=5 // pred_check_branch
      %204 = sbr.rel (%p201) target = $region12
    $region11: #{virt_block_forward.1} parent=5 // pred_region
      %s205 = ssub.s32 %s13, 1
      // Predicated region
      $region13: #{virt_block_forward.1} parent=11 // pred_check
        %p206 = pneg %p60
      $region14: #{virt_block_forward.1} parent=11 // pred_check_branch
        %208 = sbr.rel (%p206) target = $region16
      $region15: #{virt_block_forward.1} parent=11 // pred_region
        _
      $region16: #{virt_block_forward.1} parent=11 // pred_fallthru
        _
      // Predicated region
      $region17: #{virt_block_forward.1} parent=11 // pred_check
        %p209 = pneg %p81
      $region18: #{virt_block_forward.1} parent=11 // pred_check_branch
        %211 = sbr.rel (%p209) target = $region20
      $region19: #{virt_block_forward.1} parent=11 // pred_region
        _
      $region20: #{virt_block_forward.1} parent=11 // pred_fallthru
        _
      // Predicated region
      $region21: #{virt_block_forward.1} parent=11 // pred_check
        %p212 = pneg %p102
      $region22: #{virt_block_forward.1} parent=11 // pred_check_branch
        %214 = sbr.rel (%p212) target = $region24
      $region23: #{virt_block_forward.1} parent=11 // pred_region
        _
      $region24: #{virt_block_forward.1} parent=11 // pred_fallthru
        _
      // Predicated region
      $region25: #{virt_block_forward.1} parent=11 // pred_check
        %p215 = pneg %p123
      $region26: #{virt_block_forward.1} parent=11 // pred_check_branch
        %217 = sbr.rel (%p215) target = $region28
      $region27: #{virt_block_forward.1} parent=11 // pred_region
        _
      $region28: #{virt_block_forward.1} parent=11 // pred_fallthru
        _
      // Predicated region
      $region29: #{virt_block_forward.1} parent=11 // pred_check
        %p218 = pneg %p144
      $region30: #{virt_block_forward.1} parent=11 // pred_check_branch
        %220 = sbr.rel (%p218) target = $region32
      $region31: #{virt_block_forward.1} parent=11 // pred_region
        _
      $region32: #{virt_block_forward.1} parent=11 // pred_fallthru
        _
      // Predicated region
      $region33: #{virt_block_forward.1} parent=11 // pred_check
        %p221 = pneg %p165
      $region34: #{virt_block_forward.1} parent=11 // pred_check_branch
        %223 = sbr.rel (%p221) target = $region36
      $region35: #{virt_block_forward.1} parent=11 // pred_region
        _
      $region36: #{virt_block_forward.1} parent=11 // pred_fallthru
        _
    $region12: #{virt_block_forward.1} parent=5 // pred_fallthru
      _
    %p224 = scmp.lt.s32.totalorder %s13, 2
    // Predicated region
    $region37: #{virt_block_forward.1} parent=5 // pred_check
      %p225 = pneg %p224
    $region38: #{virt_block_forward.1} parent=5 // pred_check_branch
      %227 = sbr.rel (%p225) target = $region40
    $region39: #{virt_block_forward.1} parent=5 // pred_region
      // Predicated region
      $region41: #{virt_block_forward.1} parent=39 // pred_check
        %p228 = pneg %p33
      $region42: #{virt_block_forward.1} parent=39 // pred_check_branch
        %230 = sbr.rel (%p228) target = $region44
      $region43: #{virt_block_forward.1} parent=39 // pred_region
        %s231 = smul.u32 64, %s13
        %p232 = scmp.lt.s32.totalorder %s231, 127
        %s233 = scalar_select %p232, %s231, 127
        %s234 = smul.addr %s233, 4
        %s235 = scalar_lea.vmem %s0, %s234
        %s236 = smul.u32 64, %s13
      $region44: #{virt_block_forward.1} parent=39 // pred_fallthru
        _
    $region40: #{virt_block_forward.1} parent=5 // pred_fallthru
      _
    %p237 = scmp.le.s32.totalorder 1, %s13
    %p238 = scmp.lt.s32.totalorder %s13, 3
    %p239 = pnand %p237, %p238
    %p240 = pneg %p239
    // Predicated region
    $region45: #{virt_block_forward.1} parent=5 // pred_check
      _
    $region46: #{virt_block_forward.1} parent=5 // pred_check_branch
      %242 = sbr.rel (%p239) target = $region48
    $region47: #{virt_block_forward.1} parent=5 // pred_region
      %s243 = ssub.s32 %s13, 1
      %s244 = smul.u32 64, %s18
      %p245 = scmp.lt.s32.totalorder %s244, 127
      %s246 = scalar_select %p245, %s244, 127
      %s247 = smul.addr %s246, 4
      %s248 = scalar_lea.vmem %s0, %s247
      %p249 = pneg %p39
      %p250 = pneg %p36
      %p251 = pneg %p60
      %p252 = pneg %p57
      %p253 = pneg %p81
      %p254 = pneg %p78
      %p255 = pneg %p102
      %p256 = pneg %p99
      %p257 = pneg %p123
      %p258 = pneg %p120
      %p259 = pneg %p144
      %p260 = pneg %p141
      %p261 = pneg %p165
      %p262 = pneg %p162
      %p263 = pneg %p191
      %p264 = pneg %p188
      %s265 = smul.u32 64, %s18
      %p266 = scmp.lt.s32.totalorder %s265, 127
      %s267 = scalar_select %p266, %s265, 127
      %s268 = smul.addr %s267, 8
      %s269 = scalar_lea.vmem %s7, %s268
      %s270 = smul.u32 64, %s18
      %p271 = scmp.lt.s32.totalorder %s270, 127
      %s272 = scalar_select %p271, %s270, 127
      %s273 = smul.addr %s272, 4
      %s274 = scalar_lea.vmem %s0, %s273
      %s275 = smul.u32 64, %s18
      %s276 = smul.u32 64, %s18
      %p277 = scmp.lt.s32.totalorder %s276, 127
      %s278 = scalar_select %p277, %s276, 127
      %s279 = smul.addr %s278, 8
      %s280 = scalar_lea.vmem %s7, %s279
      %s281 = smul.u32 64, %s18
      %v283 = vld [vmem:[%s274] sm:$0xf]
      %v284 = vld [vmem:[%s274 + $0x4] sm:$0xf]
      %v285 = vld [vmem:[%s274 + $0x8] sm:$0xf]
      %v286 = vld [vmem:[%s274 + $0xc] sm:$0xf]
      %v287 = vld [vmem:[%s274 + $0x10] sm:$0xf]
      %v288 = vld [vmem:[%s274 + $0x14] sm:$0xf]
      %v289 = vld [vmem:[%s274 + $0x18] sm:$0xf]
      %v290 = vld [vmem:[%s274 + $0x1c] sm:$0xf]
      %v291 = vld [vmem:[%s274 + $0x20] sm:$0xf]
      %v292 = vld [vmem:[%s274 + $0x24] sm:$0xf]
      %v293 = vld [vmem:[%s274 + $0x28] sm:$0xf]
      %v294 = vld [vmem:[%s274 + $0x2c] sm:$0xf]
      %v295 = vld [vmem:[%s274 + $0x30] sm:$0xf]
      %v296 = vld [vmem:[%s274 + $0x34] sm:$0xf]
      %v297 = vld [vmem:[%s274 + $0x38] sm:$0xf]
      %v298 = vld [vmem:[%s274 + $0x3c] sm:$0xf]
      %v299 = vld [vmem:[%s274 + $0x40] sm:$0xf]
      %v300 = vld [vmem:[%s274 + $0x44] sm:$0xf]
      %v301 = vld [vmem:[%s274 + $0x48] sm:$0xf]
      %v302 = vld [vmem:[%s274 + $0x4c] sm:$0xf]
      %v303 = vld [vmem:[%s274 + $0x50] sm:$0xf]
      %v304 = vld [vmem:[%s274 + $0x54] sm:$0xf]
      %v305 = vld [vmem:[%s274 + $0x58] sm:$0xf]
      %v306 = vld [vmem:[%s274 + $0x5c] sm:$0xf]
      %v307 = vld [vmem:[%s274 + $0x60] sm:$0xf]
      %v308 = vld [vmem:[%s274 + $0x64] sm:$0xf]
      %v309 = vld [vmem:[%s274 + $0x68] sm:$0xf]
      %v310 = vld [vmem:[%s274 + $0x6c] sm:$0xf]
      %v311 = vld [vmem:[%s274 + $0x70] sm:$0xf]
      %v312 = vld [vmem:[%s274 + $0x74] sm:$0xf]
      %v313 = vld [vmem:[%s274 + $0x78] sm:$0xf]
      %v314 = vld [vmem:[%s274 + $0x7c] sm:$0xf]
      %v315 = vld [vmem:[%s274 + $0x80] sm:$0xf]
      %v316 = vld [vmem:[%s274 + $0x84] sm:$0xf]
      %v317 = vld [vmem:[%s274 + $0x88] sm:$0xf]
      %v318 = vld [vmem:[%s274 + $0x8c] sm:$0xf]
      %v319 = vld [vmem:[%s274 + $0x90] sm:$0xf]
      %v320 = vld [vmem:[%s274 + $0x94] sm:$0xf]
      %v321 = vld [vmem:[%s274 + $0x98] sm:$0xf]
      %v322 = vld [vmem:[%s274 + $0x9c] sm:$0xf]
      %v323 = vld [vmem:[%s274 + $0xa0] sm:$0xf]
      %v324 = vld [vmem:[%s274 + $0xa4] sm:$0xf]
      %v325 = vld [vmem:[%s274 + $0xa8] sm:$0xf]
      %v326 = vld [vmem:[%s274 + $0xac] sm:$0xf]
      %v327 = vld [vmem:[%s274 + $0xb0] sm:$0xf]
      %v328 = vld [vmem:[%s274 + $0xb4] sm:$0xf]
      %v329 = vld [vmem:[%s274 + $0xb8] sm:$0xf]
      %v330 = vld [vmem:[%s274 + $0xbc] sm:$0xf]
      %v331 = vld [vmem:[%s274 + $0xc0] sm:$0xf]
      %v332 = vld [vmem:[%s274 + $0xc4] sm:$0xf]
      %v333 = vld [vmem:[%s274 + $0xc8] sm:$0xf]
      %v334 = vld [vmem:[%s274 + $0xcc] sm:$0xf]
      %v335 = vld [vmem:[%s274 + $0xd0] sm:$0xf]
      %v336 = vld [vmem:[%s274 + $0xd4] sm:$0xf]
      %v337 = vld [vmem:[%s274 + $0xd8] sm:$0xf]
      %v338 = vld [vmem:[%s274 + $0xdc] sm:$0xf]
      %v339 = vld [vmem:[%s274 + $0xe0] sm:$0xf]
      %v340 = vld [vmem:[%s274 + $0xe4] sm:$0xf]
      %v341 = vld [vmem:[%s274 + $0xe8] sm:$0xf]
      %v342 = vld [vmem:[%s274 + $0xec] sm:$0xf]
      %v343 = vld [vmem:[%s274 + $0xf0] sm:$0xf]
      %v344 = vld [vmem:[%s274 + $0xf4] sm:$0xf]
      %v345 = vld [vmem:[%s274 + $0xf8] sm:$0xf]
      %v346 = vld [vmem:[%s274 + $0xfc] sm:$0xf]
      %v347 = vld [vmem:[%s1] sm:$0xf]
      %v348 = vld [vmem:[%s1 + $0x4] sm:$0xf]
      %v349 = vld [vmem:[%s1 + $0x8] sm:$0xf]
      %v350 = vld [vmem:[%s1 + $0xc] sm:$0xf]
      %v351 = vld [vmem:[%s1 + $0x10] sm:$0xf]
      %v352 = vld [vmem:[%s1 + $0x14] sm:$0xf]
      %v353 = vld [vmem:[%s1 + $0x18] sm:$0xf]
      %v354 = vld [vmem:[%s1 + $0x1c] sm:$0xf]
      %v419 = vunpack.c.l.b16 %v283
      %v420 = vunpack.c.l.b16 %v284
      %v421 = vunpack.c.l.b16 %v285
      %v422 = vunpack.c.l.b16 %v286
      %v423 = vunpack.c.l.b16 %v287
      %v424 = vunpack.c.l.b16 %v288
      %v425 = vunpack.c.l.b16 %v289
      %v426 = vunpack.c.l.b16 %v290
      %v427 = vunpack.c.l.b16 %v291
      %v428 = vunpack.c.l.b16 %v292
      %v429 = vunpack.c.l.b16 %v293
      %v430 = vunpack.c.l.b16 %v294
      %v431 = vunpack.c.l.b16 %v295
      %v432 = vunpack.c.l.b16 %v296
      %v433 = vunpack.c.l.b16 %v297
      %v434 = vunpack.c.l.b16 %v298
      %v435 = vunpack.c.l.b16 %v299
      %v436 = vunpack.c.l.b16 %v300
      %v437 = vunpack.c.l.b16 %v301
      %v438 = vunpack.c.l.b16 %v302
      %v439 = vunpack.c.l.b16 %v303
      %v440 = vunpack.c.l.b16 %v304
      %v441 = vunpack.c.l.b16 %v305
      %v442 = vunpack.c.l.b16 %v306
      %v443 = vunpack.c.l.b16 %v307
      %v444 = vunpack.c.l.b16 %v308
      %v445 = vunpack.c.l.b16 %v309
      %v446 = vunpack.c.l.b16 %v310
      %v447 = vunpack.c.l.b16 %v311
      %v448 = vunpack.c.l.b16 %v312
      %v449 = vunpack.c.l.b16 %v313
      %v450 = vunpack.c.l.b16 %v314
      %v451 = vunpack.c.l.b16 %v315
      %v452 = vunpack.c.l.b16 %v316
      %v453 = vunpack.c.l.b16 %v317
      %v454 = vunpack.c.l.b16 %v318
      %v455 = vunpack.c.l.b16 %v319
      %v456 = vunpack.c.l.b16 %v320
      %v457 = vunpack.c.l.b16 %v321
      %v458 = vunpack.c.l.b16 %v322
      %v459 = vunpack.c.l.b16 %v323
      %v460 = vunpack.c.l.b16 %v324
      %v461 = vunpack.c.l.b16 %v325
      %v462 = vunpack.c.l.b16 %v326
      %v463 = vunpack.c.l.b16 %v327
      %v464 = vunpack.c.l.b16 %v328
      %v465 = vunpack.c.l.b16 %v329
      %v466 = vunpack.c.l.b16 %v330
      %v467 = vunpack.c.l.b16 %v331
      %v468 = vunpack.c.l.b16 %v332
      %v469 = vunpack.c.l.b16 %v333
      %v470 = vunpack.c.l.b16 %v334
      %v471 = vunpack.c.l.b16 %v335
      %v472 = vunpack.c.l.b16 %v336
      %v473 = vunpack.c.l.b16 %v337
      %v474 = vunpack.c.l.b16 %v338
      %v475 = vunpack.c.l.b16 %v339
      %v476 = vunpack.c.l.b16 %v340
      %v477 = vunpack.c.l.b16 %v341
      %v478 = vunpack.c.l.b16 %v342
      %v479 = vunpack.c.l.b16 %v343
      %v480 = vunpack.c.l.b16 %v344
      %v481 = vunpack.c.l.b16 %v345
      %v482 = vunpack.c.l.b16 %v346
      %v483 = vpack.c.b16 %v420, %v419
      %v484 = vpack.c.b16 %v422, %v421
      %v485 = vpack.c.b16 %v424, %v423
      %v486 = vpack.c.b16 %v426, %v425
      %v487 = vpack.c.b16 %v428, %v427
      %v488 = vpack.c.b16 %v430, %v429
      %v489 = vpack.c.b16 %v432, %v431
      %v490 = vpack.c.b16 %v434, %v433
      %v491 = vpack.c.b16 %v436, %v435
      %v492 = vpack.c.b16 %v438, %v437
      %v493 = vpack.c.b16 %v440, %v439
      %v494 = vpack.c.b16 %v442, %v441
      %v495 = vpack.c.b16 %v444, %v443
      %v496 = vpack.c.b16 %v446, %v445
      %v497 = vpack.c.b16 %v448, %v447
      %v498 = vpack.c.b16 %v450, %v449
      %v499 = vpack.c.b16 %v452, %v451
      %v500 = vpack.c.b16 %v454, %v453
      %v501 = vpack.c.b16 %v456, %v455
      %v502 = vpack.c.b16 %v458, %v457
      %v503 = vpack.c.b16 %v460, %v459
      %v504 = vpack.c.b16 %v462, %v461
      %v505 = vpack.c.b16 %v464, %v463
      %v506 = vpack.c.b16 %v466, %v465
      %v507 = vpack.c.b16 %v468, %v467
      %v508 = vpack.c.b16 %v470, %v469
      %v509 = vpack.c.b16 %v472, %v471
      %v510 = vpack.c.b16 %v474, %v473
      %v511 = vpack.c.b16 %v476, %v475
      %v512 = vpack.c.b16 %v478, %v477
      %v513 = vpack.c.b16 %v480, %v479
      %v514 = vpack.c.b16 %v482, %v481
      %v523 = vunpack.c.l.b16 %v347
      %v524 = vunpack.c.l.b16 %v348
      %v525 = vunpack.c.l.b16 %v349
      %v526 = vunpack.c.l.b16 %v350
      %v527 = vunpack.c.l.b16 %v351
      %v528 = vunpack.c.l.b16 %v352
      %v529 = vunpack.c.l.b16 %v353
      %v530 = vunpack.c.l.b16 %v354
      %v531 = vpack.c.b16 %v524, %v523
      %v532 = vpack.c.b16 %v526, %v525
      %v533 = vpack.c.b16 %v528, %v527
      %v534 = vpack.c.b16 %v530, %v529
      %vm539 = vcmask 523264
      %v541 = vsel %vm539, %v483, 0
      %v544 = vsel %vm539, %v484, 0
      %v547 = vsel %vm539, %v485, 0
      %v550 = vsel %vm539, %v486, 0
      %v553 = vsel %vm539, %v487, 0
      %v556 = vsel %vm539, %v488, 0
      %v559 = vsel %vm539, %v489, 0
      %v562 = vsel %vm539, %v490, 0
      %v565 = vsel %vm539, %v491, 0
      %v568 = vsel %vm539, %v492, 0
      %v571 = vsel %vm539, %v493, 0
      %v574 = vsel %vm539, %v494, 0
      %v577 = vsel %vm539, %v495, 0
      %v580 = vsel %vm539, %v496, 0
      %v583 = vsel %vm539, %v497, 0
      %v586 = vsel %vm539, %v498, 0
      %v589 = vsel %vm539, %v499, 0
      %v592 = vsel %vm539, %v500, 0
      %v595 = vsel %vm539, %v501, 0
      %v598 = vsel %vm539, %v502, 0
      %v601 = vsel %vm539, %v503, 0
      %v604 = vsel %vm539, %v504, 0
      %v607 = vsel %vm539, %v505, 0
      %v610 = vsel %vm539, %v506, 0
      %v613 = vsel %vm539, %v507, 0
      %v616 = vsel %vm539, %v508, 0
      %v619 = vsel %vm539, %v509, 0
      %v622 = vsel %vm539, %v510, 0
      %v625 = vsel %vm539, %v511, 0
      %v628 = vsel %vm539, %v512, 0
      %v631 = vsel %vm539, %v513, 0
      %v634 = vsel %vm539, %v514, 0
      %636 = vmatpush.bf16.msra.mxu0 0
      %637 = vmatpush.bf16.msra.mxu0 0
      %638 = vmatpush.bf16.msra.mxu0 0
      %639 = vmatpush.bf16.msra.mxu0 0
      %640 = vmatpush.bf16.msra.mxu0 %v534
      %641 = vmatpush.bf16.msra.mxu0 %v533
      %642 = vmatpush.bf16.msra.mxu0 %v532
      %643 = vmatpush.bf16.msra.mxu0 %v531
      %644 = vmatmul.bf16.gmra.mxu0 %v541
      %v645 = vpop.f32.mrf.mxu0
      %v646 = vadd.f32 0.0, %v645
      %v647 = vpop.f32.mrf.mxu0
      %v648 = vadd.f32 0.0, %v647
      %649 = vmatmul.bf16.gmra.mxu0 %v544
      %v650 = vpop.f32.mrf.mxu0
      %v651 = vadd.f32 0.0, %v650
      %v652 = vpop.f32.mrf.mxu0
      %v653 = vadd.f32 0.0, %v652
      %654 = vmatmul.bf16.gmra.mxu0 %v547
      %v655 = vpop.f32.mrf.mxu0
      %v656 = vadd.f32 0.0, %v655
      %v657 = vpop.f32.mrf.mxu0
      %v658 = vadd.f32 0.0, %v657
      %659 = vmatmul.bf16.gmra.mxu0 %v550
      %v660 = vpop.f32.mrf.mxu0
      %v661 = vadd.f32 0.0, %v660
      %v662 = vpop.f32.mrf.mxu0
      %v663 = vadd.f32 0.0, %v662
      %664 = vmatmul.bf16.gmra.mxu0 %v553
      %v665 = vpop.f32.mrf.mxu0
      %v666 = vadd.f32 0.0, %v665
      %v667 = vpop.f32.mrf.mxu0
      %v668 = vadd.f32 0.0, %v667
      %669 = vmatmul.bf16.gmra.mxu0 %v556
      %v670 = vpop.f32.mrf.mxu0
      %v671 = vadd.f32 0.0, %v670
      %v672 = vpop.f32.mrf.mxu0
      %v673 = vadd.f32 0.0, %v672
      %674 = vmatmul.bf16.gmra.mxu0 %v559
      %v675 = vpop.f32.mrf.mxu0
      %v676 = vadd.f32 0.0, %v675
      %v677 = vpop.f32.mrf.mxu0
      %v678 = vadd.f32 0.0, %v677
      %679 = vmatmul.bf16.gmra.mxu0 %v562
      %v680 = vpop.f32.mrf.mxu0
      %v681 = vadd.f32 0.0, %v680
      %v682 = vpop.f32.mrf.mxu0
      %v683 = vadd.f32 0.0, %v682
      %684 = vmatmul.bf16.gmra.mxu0 %v565
      %v685 = vpop.f32.mrf.mxu0
      %v686 = vadd.f32 0.0, %v685
      %v687 = vpop.f32.mrf.mxu0
      %v688 = vadd.f32 0.0, %v687
      %689 = vmatmul.bf16.gmra.mxu0 %v568
      %v690 = vpop.f32.mrf.mxu0
      %v691 = vadd.f32 0.0, %v690
      %v692 = vpop.f32.mrf.mxu0
      %v693 = vadd.f32 0.0, %v692
      %694 = vmatmul.bf16.gmra.mxu0 %v571
      %v695 = vpop.f32.mrf.mxu0
      %v696 = vadd.f32 0.0, %v695
      %v697 = vpop.f32.mrf.mxu0
      %v698 = vadd.f32 0.0, %v697
      %699 = vmatmul.bf16.gmra.mxu0 %v574
      %v700 = vpop.f32.mrf.mxu0
      %v701 = vadd.f32 0.0, %v700
      %v702 = vpop.f32.mrf.mxu0
      %v703 = vadd.f32 0.0, %v702
      %704 = vmatmul.bf16.gmra.mxu0 %v577
      %v705 = vpop.f32.mrf.mxu0
      %v706 = vadd.f32 0.0, %v705
      %v707 = vpop.f32.mrf.mxu0
      %v708 = vadd.f32 0.0, %v707
      %709 = vmatmul.bf16.gmra.mxu0 %v580
      %v710 = vpop.f32.mrf.mxu0
      %v711 = vadd.f32 0.0, %v710
      %v712 = vpop.f32.mrf.mxu0
      %v713 = vadd.f32 0.0, %v712
      %714 = vmatmul.bf16.gmra.mxu0 %v583
      %v715 = vpop.f32.mrf.mxu0
      %v716 = vadd.f32 0.0, %v715
      %v717 = vpop.f32.mrf.mxu0
      %v718 = vadd.f32 0.0, %v717
      %719 = vmatmul.bf16.gmra.mxu0 %v586
      %v720 = vpop.f32.mrf.mxu0
      %v721 = vadd.f32 0.0, %v720
      %v722 = vpop.f32.mrf.mxu0
      %v723 = vadd.f32 0.0, %v722
      %724 = vmatmul.bf16.gmra.mxu0 %v589
      %v725 = vpop.f32.mrf.mxu0
      %v726 = vadd.f32 0.0, %v725
      %v727 = vpop.f32.mrf.mxu0
      %v728 = vadd.f32 0.0, %v727
      %729 = vmatmul.bf16.gmra.mxu0 %v592
      %v730 = vpop.f32.mrf.mxu0
      %v731 = vadd.f32 0.0, %v730
      %v732 = vpop.f32.mrf.mxu0
      %v733 = vadd.f32 0.0, %v732
      %734 = vmatmul.bf16.gmra.mxu0 %v595
      %v735 = vpop.f32.mrf.mxu0
      %v736 = vadd.f32 0.0, %v735
      %v737 = vpop.f32.mrf.mxu0
      %v738 = vadd.f32 0.0, %v737
      %739 = vmatmul.bf16.gmra.mxu0 %v598
      %v740 = vpop.f32.mrf.mxu0
      %v741 = vadd.f32 0.0, %v740
      %v742 = vpop.f32.mrf.mxu0
      %v743 = vadd.f32 0.0, %v742
      %744 = vmatmul.bf16.gmra.mxu0 %v601
      %v745 = vpop.f32.mrf.mxu0
      %v746 = vadd.f32 0.0, %v745
      %v747 = vpop.f32.mrf.mxu0
      %v748 = vadd.f32 0.0, %v747
      %749 = vmatmul.bf16.gmra.mxu0 %v604
      %v750 = vpop.f32.mrf.mxu0
      %v751 = vadd.f32 0.0, %v750
      %v752 = vpop.f32.mrf.mxu0
      %v753 = vadd.f32 0.0, %v752
      %754 = vmatmul.bf16.gmra.mxu0 %v607
      %v755 = vpop.f32.mrf.mxu0
      %v756 = vadd.f32 0.0, %v755
      %v757 = vpop.f32.mrf.mxu0
      %v758 = vadd.f32 0.0, %v757
      %759 = vmatmul.bf16.gmra.mxu0 %v610
      %v760 = vpop.f32.mrf.mxu0
      %v761 = vadd.f32 0.0, %v760
      %v762 = vpop.f32.mrf.mxu0
      %v763 = vadd.f32 0.0, %v762
      %764 = vmatmul.bf16.gmra.mxu0 %v613
      %v765 = vpop.f32.mrf.mxu0
      %v766 = vadd.f32 0.0, %v765
      %v767 = vpop.f32.mrf.mxu0
      %v768 = vadd.f32 0.0, %v767
      %769 = vmatmul.bf16.gmra.mxu0 %v616
      %v770 = vpop.f32.mrf.mxu0
      %v771 = vadd.f32 0.0, %v770
      %v772 = vpop.f32.mrf.mxu0
      %v773 = vadd.f32 0.0, %v772
      %774 = vmatmul.bf16.gmra.mxu0 %v619
      %v775 = vpop.f32.mrf.mxu0
      %v776 = vadd.f32 0.0, %v775
      %v777 = vpop.f32.mrf.mxu0
      %v778 = vadd.f32 0.0, %v777
      %779 = vmatmul.bf16.gmra.mxu0 %v622
      %v780 = vpop.f32.mrf.mxu0
      %v781 = vadd.f32 0.0, %v780
      %v782 = vpop.f32.mrf.mxu0
      %v783 = vadd.f32 0.0, %v782
      %784 = vmatmul.bf16.gmra.mxu0 %v625
      %v785 = vpop.f32.mrf.mxu0
      %v786 = vadd.f32 0.0, %v785
      %v787 = vpop.f32.mrf.mxu0
      %v788 = vadd.f32 0.0, %v787
      %789 = vmatmul.bf16.gmra.mxu0 %v628
      %v790 = vpop.f32.mrf.mxu0
      %v791 = vadd.f32 0.0, %v790
      %v792 = vpop.f32.mrf.mxu0
      %v793 = vadd.f32 0.0, %v792
      %794 = vmatmul.bf16.gmra.mxu0 %v631
      %v795 = vpop.f32.mrf.mxu0
      %v796 = vadd.f32 0.0, %v795
      %v797 = vpop.f32.mrf.mxu0
      %v798 = vadd.f32 0.0, %v797
      %799 = vmatmul.bf16.gmra.mxu0 %v634
      %v800 = vpop.f32.mrf.mxu0
      %v801 = vadd.f32 0.0, %v800
      %v802 = vpop.f32.mrf.mxu0
      %v803 = vadd.f32 0.0, %v802
      %804 = vdwg.mxu0
      %v805 = vpack.c.bf16 %v648, %v646
      %v806 = vpack.c.bf16 %v653, %v651
      %v807 = vpack.c.bf16 %v658, %v656
      %v808 = vpack.c.bf16 %v663, %v661
      %v809 = vpack.c.bf16 %v668, %v666
      %v810 = vpack.c.bf16 %v673, %v671
      %v811 = vpack.c.bf16 %v678, %v676
      %v812 = vpack.c.bf16 %v683, %v681
      %v813 = vpack.c.bf16 %v688, %v686
      %v814 = vpack.c.bf16 %v693, %v691
      %v815 = vpack.c.bf16 %v698, %v696
      %v816 = vpack.c.bf16 %v703, %v701
      %v817 = vpack.c.bf16 %v708, %v706
      %v818 = vpack.c.bf16 %v713, %v711
      %v819 = vpack.c.bf16 %v718, %v716
      %v820 = vpack.c.bf16 %v723, %v721
      %v821 = vpack.c.bf16 %v728, %v726
      %v822 = vpack.c.bf16 %v733, %v731
      %v823 = vpack.c.bf16 %v738, %v736
      %v824 = vpack.c.bf16 %v743, %v741
      %v825 = vpack.c.bf16 %v748, %v746
      %v826 = vpack.c.bf16 %v753, %v751
      %v827 = vpack.c.bf16 %v758, %v756
      %v828 = vpack.c.bf16 %v763, %v761
      %v829 = vpack.c.bf16 %v768, %v766
      %v830 = vpack.c.bf16 %v773, %v771
      %v831 = vpack.c.bf16 %v778, %v776
      %v832 = vpack.c.bf16 %v783, %v781
      %v833 = vpack.c.bf16 %v788, %v786
      %v834 = vpack.c.bf16 %v793, %v791
      %v835 = vpack.c.bf16 %v798, %v796
      %v836 = vpack.c.bf16 %v803, %v801
      %v837 = vld [vmem:[%s2] sm:$0xf]
      %v838 = vld [vmem:[%s2 + $0x4] sm:$0xf]
      %v839 = vld [vmem:[%s2 + $0x8] sm:$0xf]
      %v840 = vld [vmem:[%s2 + $0xc] sm:$0xf]
      %v841 = vld [vmem:[%s2 + $0x10] sm:$0xf]
      %v842 = vld [vmem:[%s2 + $0x14] sm:$0xf]
      %v843 = vld [vmem:[%s2 + $0x18] sm:$0xf]
      %v844 = vld [vmem:[%s2 + $0x1c] sm:$0xf]
      %v845 = vld [vmem:[%s2 + $0x20] sm:$0xf]
      %v846 = vld [vmem:[%s2 + $0x24] sm:$0xf]
      %v847 = vld [vmem:[%s2 + $0x28] sm:$0xf]
      %v848 = vld [vmem:[%s2 + $0x2c] sm:$0xf]
      %v849 = vld [vmem:[%s2 + $0x30] sm:$0xf]
      %v850 = vld [vmem:[%s2 + $0x34] sm:$0xf]
      %v851 = vld [vmem:[%s2 + $0x38] sm:$0xf]
      %v852 = vld [vmem:[%s2 + $0x3c] sm:$0xf]
      %v869 = vunpack.c.l.b16 %v837
      %v870 = vunpack.c.l.b16 %v838
      %v871 = vunpack.c.l.b16 %v839
      %v872 = vunpack.c.l.b16 %v840
      %v873 = vunpack.c.l.b16 %v841
      %v874 = vunpack.c.l.b16 %v842
      %v875 = vunpack.c.l.b16 %v843
      %v876 = vunpack.c.l.b16 %v844
      %v877 = vunpack.c.l.b16 %v845
      %v878 = vunpack.c.l.b16 %v846
      %v879 = vunpack.c.l.b16 %v847
      %v880 = vunpack.c.l.b16 %v848
      %v881 = vunpack.c.l.b16 %v849
      %v882 = vunpack.c.l.b16 %v850
      %v883 = vunpack.c.l.b16 %v851
      %v884 = vunpack.c.l.b16 %v852
      %v885 = vpack.c.b16 %v870, %v869
      %v886 = vpack.c.b16 %v872, %v871
      %v887 = vpack.c.b16 %v874, %v873
      %v888 = vpack.c.b16 %v876, %v875
      %v889 = vpack.c.b16 %v878, %v877
      %v890 = vpack.c.b16 %v880, %v879
      %v891 = vpack.c.b16 %v882, %v881
      %v892 = vpack.c.b16 %v884, %v883
      %901 = vmatpush.bf16.msra.mxu0 %v892
      %902 = vmatpush.bf16.msra.mxu0 %v891
      %903 = vmatpush.bf16.msra.mxu0 %v890
      %904 = vmatpush.bf16.msra.mxu0 %v889
      %905 = vmatpush.bf16.msra.mxu0 %v888
      %906 = vmatpush.bf16.msra.mxu0 %v887
      %907 = vmatpush.bf16.msra.mxu0 %v886
      %908 = vmatpush.bf16.msra.mxu0 %v885
      %909 = vmatmul.bf16.gmra.mxu0 %v805
      %v910 = vpop.f32.mrf.mxu0
      %v911 = vadd.f32 0.0, %v910
      %v912 = vpop.f32.mrf.mxu0
      %v913 = vadd.f32 0.0, %v912
      %914 = vmatmul.bf16.gmra.mxu0 %v806
      %v915 = vpop.f32.mrf.mxu0
      %v916 = vadd.f32 0.0, %v915
      %v917 = vpop.f32.mrf.mxu0
      %v918 = vadd.f32 0.0, %v917
      %919 = vmatmul.bf16.gmra.mxu0 %v807
      %v920 = vpop.f32.mrf.mxu0
      %v921 = vadd.f32 0.0, %v920
      %v922 = vpop.f32.mrf.mxu0
      %v923 = vadd.f32 0.0, %v922
      %924 = vmatmul.bf16.gmra.mxu0 %v808
      %v925 = vpop.f32.mrf.mxu0
      %v926 = vadd.f32 0.0, %v925
      %v927 = vpop.f32.mrf.mxu0
      %v928 = vadd.f32 0.0, %v927
      %929 = vmatmul.bf16.gmra.mxu0 %v809
      %v930 = vpop.f32.mrf.mxu0
      %v931 = vadd.f32 0.0, %v930
      %v932 = vpop.f32.mrf.mxu0
      %v933 = vadd.f32 0.0, %v932
      %934 = vmatmul.bf16.gmra.mxu0 %v810
      %v935 = vpop.f32.mrf.mxu0
      %v936 = vadd.f32 0.0, %v935
      %v937 = vpop.f32.mrf.mxu0
      %v938 = vadd.f32 0.0, %v937
      %939 = vmatmul.bf16.gmra.mxu0 %v811
      %v940 = vpop.f32.mrf.mxu0
      %v941 = vadd.f32 0.0, %v940
      %v942 = vpop.f32.mrf.mxu0
      %v943 = vadd.f32 0.0, %v942
      %944 = vmatmul.bf16.gmra.mxu0 %v812
      %v945 = vpop.f32.mrf.mxu0
      %v946 = vadd.f32 0.0, %v945
      %v947 = vpop.f32.mrf.mxu0
      %v948 = vadd.f32 0.0, %v947
      %949 = vmatmul.bf16.gmra.mxu0 %v813
      %v950 = vpop.f32.mrf.mxu0
      %v951 = vadd.f32 0.0, %v950
      %v952 = vpop.f32.mrf.mxu0
      %v953 = vadd.f32 0.0, %v952
      %954 = vmatmul.bf16.gmra.mxu0 %v814
      %v955 = vpop.f32.mrf.mxu0
      %v956 = vadd.f32 0.0, %v955
      %v957 = vpop.f32.mrf.mxu0
      %v958 = vadd.f32 0.0, %v957
      %959 = vmatmul.bf16.gmra.mxu0 %v815
      %v960 = vpop.f32.mrf.mxu0
      %v961 = vadd.f32 0.0, %v960
      %v962 = vpop.f32.mrf.mxu0
      %v963 = vadd.f32 0.0, %v962
      %964 = vmatmul.bf16.gmra.mxu0 %v816
      %v965 = vpop.f32.mrf.mxu0
      %v966 = vadd.f32 0.0, %v965
      %v967 = vpop.f32.mrf.mxu0
      %v968 = vadd.f32 0.0, %v967
      %969 = vmatmul.bf16.gmra.mxu0 %v817
      %v970 = vpop.f32.mrf.mxu0
      %v971 = vadd.f32 0.0, %v970
      %v972 = vpop.f32.mrf.mxu0
      %v973 = vadd.f32 0.0, %v972
      %974 = vmatmul.bf16.gmra.mxu0 %v818
      %v975 = vpop.f32.mrf.mxu0
      %v976 = vadd.f32 0.0, %v975
      %v977 = vpop.f32.mrf.mxu0
      %v978 = vadd.f32 0.0, %v977
      %979 = vmatmul.bf16.gmra.mxu0 %v819
      %v980 = vpop.f32.mrf.mxu0
      %v981 = vadd.f32 0.0, %v980
      %v982 = vpop.f32.mrf.mxu0
      %v983 = vadd.f32 0.0, %v982
      %984 = vmatmul.bf16.gmra.mxu0 %v820
      %v985 = vpop.f32.mrf.mxu0
      %v986 = vadd.f32 0.0, %v985
      %v987 = vpop.f32.mrf.mxu0
      %v988 = vadd.f32 0.0, %v987
      %989 = vmatmul.bf16.gmra.mxu0 %v821
      %v990 = vpop.f32.mrf.mxu0
      %v991 = vadd.f32 0.0, %v990
      %v992 = vpop.f32.mrf.mxu0
      %v993 = vadd.f32 0.0, %v992
      %994 = vmatmul.bf16.gmra.mxu0 %v822
      %v995 = vpop.f32.mrf.mxu0
      %v996 = vadd.f32 0.0, %v995
      %v997 = vpop.f32.mrf.mxu0
      %v998 = vadd.f32 0.0, %v997
      %999 = vmatmul.bf16.gmra.mxu0 %v823
      %v1000 = vpop.f32.mrf.mxu0
      %v1001 = vadd.f32 0.0, %v1000
      %v1002 = vpop.f32.mrf.mxu0
      %v1003 = vadd.f32 0.0, %v1002
      %1004 = vmatmul.bf16.gmra.mxu0 %v824
      %v1005 = vpop.f32.mrf.mxu0
      %v1006 = vadd.f32 0.0, %v1005
      %v1007 = vpop.f32.mrf.mxu0
      %v1008 = vadd.f32 0.0, %v1007
      %1009 = vmatmul.bf16.gmra.mxu0 %v825
      %v1010 = vpop.f32.mrf.mxu0
      %v1011 = vadd.f32 0.0, %v1010
      %v1012 = vpop.f32.mrf.mxu0
      %v1013 = vadd.f32 0.0, %v1012
      %1014 = vmatmul.bf16.gmra.mxu0 %v826
      %v1015 = vpop.f32.mrf.mxu0
      %v1016 = vadd.f32 0.0, %v1015
      %v1017 = vpop.f32.mrf.mxu0
      %v1018 = vadd.f32 0.0, %v1017
      %1019 = vmatmul.bf16.gmra.mxu0 %v827
      %v1020 = vpop.f32.mrf.mxu0
      %v1021 = vadd.f32 0.0, %v1020
      %v1022 = vpop.f32.mrf.mxu0
      %v1023 = vadd.f32 0.0, %v1022
      %1024 = vmatmul.bf16.gmra.mxu0 %v828
      %v1025 = vpop.f32.mrf.mxu0
      %v1026 = vadd.f32 0.0, %v1025
      %v1027 = vpop.f32.mrf.mxu0
      %v1028 = vadd.f32 0.0, %v1027
      %1029 = vmatmul.bf16.gmra.mxu0 %v829
      %v1030 = vpop.f32.mrf.mxu0
      %v1031 = vadd.f32 0.0, %v1030
      %v1032 = vpop.f32.mrf.mxu0
      %v1033 = vadd.f32 0.0, %v1032
      %1034 = vmatmul.bf16.gmra.mxu0 %v830
      %v1035 = vpop.f32.mrf.mxu0
      %v1036 = vadd.f32 0.0, %v1035
      %v1037 = vpop.f32.mrf.mxu0
      %v1038 = vadd.f32 0.0, %v1037
      %1039 = vmatmul.bf16.gmra.mxu0 %v831
      %v1040 = vpop.f32.mrf.mxu0
      %v1041 = vadd.f32 0.0, %v1040
      %v1042 = vpop.f32.mrf.mxu0
      %v1043 = vadd.f32 0.0, %v1042
      %1044 = vmatmul.bf16.gmra.mxu0 %v832
      %v1045 = vpop.f32.mrf.mxu0
      %v1046 = vadd.f32 0.0, %v1045
      %v1047 = vpop.f32.mrf.mxu0
      %v1048 = vadd.f32 0.0, %v1047
      %1049 = vmatmul.bf16.gmra.mxu0 %v833
      %v1050 = vpop.f32.mrf.mxu0
      %v1051 = vadd.f32 0.0, %v1050
      %v1052 = vpop.f32.mrf.mxu0
      %v1053 = vadd.f32 0.0, %v1052
      %1054 = vmatmul.bf16.gmra.mxu0 %v834
      %v1055 = vpop.f32.mrf.mxu0
      %v1056 = vadd.f32 0.0, %v1055
      %v1057 = vpop.f32.mrf.mxu0
      %v1058 = vadd.f32 0.0, %v1057
      %1059 = vmatmul.bf16.gmra.mxu0 %v835
      %v1060 = vpop.f32.mrf.mxu0
      %v1061 = vadd.f32 0.0, %v1060
      %v1062 = vpop.f32.mrf.mxu0
      %v1063 = vadd.f32 0.0, %v1062
      %1064 = vmatmul.bf16.gmra.mxu0 %v836
      %v1065 = vpop.f32.mrf.mxu0
      %v1066 = vadd.f32 0.0, %v1065
      %v1067 = vpop.f32.mrf.mxu0
      %v1068 = vadd.f32 0.0, %v1067
      %1069 = vdwg.mxu0
      %v1070 = vsub.f32 %v646, %v911
      %v1071 = vsub.f32 %v648, %v913
      %v1072 = vsub.f32 %v651, %v916
      %v1073 = vsub.f32 %v653, %v918
      %v1074 = vsub.f32 %v656, %v921
      %v1075 = vsub.f32 %v658, %v923
      %v1076 = vsub.f32 %v661, %v926
      %v1077 = vsub.f32 %v663, %v928
      %v1078 = vsub.f32 %v666, %v931
      %v1079 = vsub.f32 %v668, %v933
      %v1080 = vsub.f32 %v671, %v936
      %v1081 = vsub.f32 %v673, %v938
      %v1082 = vsub.f32 %v676, %v941
      %v1083 = vsub.f32 %v678, %v943
      %v1084 = vsub.f32 %v681, %v946
      %v1085 = vsub.f32 %v683, %v948
      %v1086 = vsub.f32 %v686, %v951
      %v1087 = vsub.f32 %v688, %v953
      %v1088 = vsub.f32 %v691, %v956
      %v1089 = vsub.f32 %v693, %v958
      %v1090 = vsub.f32 %v696, %v961
      %v1091 = vsub.f32 %v698, %v963
      %v1092 = vsub.f32 %v701, %v966
      %v1093 = vsub.f32 %v703, %v968
      %v1094 = vsub.f32 %v706, %v971
      %v1095 = vsub.f32 %v708, %v973
      %v1096 = vsub.f32 %v711, %v976
      %v1097 = vsub.f32 %v713, %v978
      %v1098 = vsub.f32 %v716, %v981
      %v1099 = vsub.f32 %v718, %v983
      %v1100 = vsub.f32 %v721, %v986
      %v1101 = vsub.f32 %v723, %v988
      %v1102 = vsub.f32 %v726, %v991
      %v1103 = vsub.f32 %v728, %v993
      %v1104 = vsub.f32 %v731, %v996
      %v1105 = vsub.f32 %v733, %v998
      %v1106 = vsub.f32 %v736, %v1001
      %v1107 = vsub.f32 %v738, %v1003
      %v1108 = vsub.f32 %v741, %v1006
      %v1109 = vsub.f32 %v743, %v1008
      %v1110 = vsub.f32 %v746, %v1011
      %v1111 = vsub.f32 %v748, %v1013
      %v1112 = vsub.f32 %v751, %v1016
      %v1113 = vsub.f32 %v753, %v1018
      %v1114 = vsub.f32 %v756, %v1021
      %v1115 = vsub.f32 %v758, %v1023
      %v1116 = vsub.f32 %v761, %v1026
      %v1117 = vsub.f32 %v763, %v1028
      %v1118 = vsub.f32 %v766, %v1031
      %v1119 = vsub.f32 %v768, %v1033
      %v1120 = vsub.f32 %v771, %v1036
      %v1121 = vsub.f32 %v773, %v1038
      %v1122 = vsub.f32 %v776, %v1041
      %v1123 = vsub.f32 %v778, %v1043
      %v1124 = vsub.f32 %v781, %v1046
      %v1125 = vsub.f32 %v783, %v1048
      %v1126 = vsub.f32 %v786, %v1051
      %v1127 = vsub.f32 %v788, %v1053
      %v1128 = vsub.f32 %v791, %v1056
      %v1129 = vsub.f32 %v793, %v1058
      %v1130 = vsub.f32 %v796, %v1061
      %v1131 = vsub.f32 %v798, %v1063
      %v1132 = vsub.f32 %v801, %v1066
      %v1133 = vsub.f32 %v803, %v1068
      %v1134 = vmul.f32 %v1070, %v1070
      %v1135 = vmul.f32 %v1071, %v1071
      %v1136 = vmul.f32 %v1072, %v1072
      %v1137 = vmul.f32 %v1073, %v1073
      %v1138 = vmul.f32 %v1074, %v1074
      %v1139 = vmul.f32 %v1075, %v1075
      %v1140 = vmul.f32 %v1076, %v1076
      %v1141 = vmul.f32 %v1077, %v1077
      %v1142 = vmul.f32 %v1078, %v1078
      %v1143 = vmul.f32 %v1079, %v1079
      %v1144 = vmul.f32 %v1080, %v1080
      %v1145 = vmul.f32 %v1081, %v1081
      %v1146 = vmul.f32 %v1082, %v1082
      %v1147 = vmul.f32 %v1083, %v1083
      %v1148 = vmul.f32 %v1084, %v1084
      %v1149 = vmul.f32 %v1085, %v1085
      %v1150 = vmul.f32 %v1086, %v1086
      %v1151 = vmul.f32 %v1087, %v1087
      %v1152 = vmul.f32 %v1088, %v1088
      %v1153 = vmul.f32 %v1089, %v1089
      %v1154 = vmul.f32 %v1090, %v1090
      %v1155 = vmul.f32 %v1091, %v1091
      %v1156 = vmul.f32 %v1092, %v1092
      %v1157 = vmul.f32 %v1093, %v1093
      %v1158 = vmul.f32 %v1094, %v1094
      %v1159 = vmul.f32 %v1095, %v1095
      %v1160 = vmul.f32 %v1096, %v1096
      %v1161 = vmul.f32 %v1097, %v1097
      %v1162 = vmul.f32 %v1098, %v1098
      %v1163 = vmul.f32 %v1099, %v1099
      %v1164 = vmul.f32 %v1100, %v1100
      %v1165 = vmul.f32 %v1101, %v1101
      %v1166 = vmul.f32 %v1102, %v1102
      %v1167 = vmul.f32 %v1103, %v1103
      %v1168 = vmul.f32 %v1104, %v1104
      %v1169 = vmul.f32 %v1105, %v1105
      %v1170 = vmul.f32 %v1106, %v1106
      %v1171 = vmul.f32 %v1107, %v1107
      %v1172 = vmul.f32 %v1108, %v1108
      %v1173 = vmul.f32 %v1109, %v1109
      %v1174 = vmul.f32 %v1110, %v1110
      %v1175 = vmul.f32 %v1111, %v1111
      %v1176 = vmul.f32 %v1112, %v1112
      %v1177 = vmul.f32 %v1113, %v1113
      %v1178 = vmul.f32 %v1114, %v1114
      %v1179 = vmul.f32 %v1115, %v1115
      %v1180 = vmul.f32 %v1116, %v1116
      %v1181 = vmul.f32 %v1117, %v1117
      %v1182 = vmul.f32 %v1118, %v1118
      %v1183 = vmul.f32 %v1119, %v1119
      %v1184 = vmul.f32 %v1120, %v1120
      %v1185 = vmul.f32 %v1121, %v1121
      %v1186 = vmul.f32 %v1122, %v1122
      %v1187 = vmul.f32 %v1123, %v1123
      %v1188 = vmul.f32 %v1124, %v1124
      %v1189 = vmul.f32 %v1125, %v1125
      %v1190 = vmul.f32 %v1126, %v1126
      %v1191 = vmul.f32 %v1127, %v1127
      %v1192 = vmul.f32 %v1128, %v1128
      %v1193 = vmul.f32 %v1129, %v1129
      %v1194 = vmul.f32 %v1130, %v1130
      %v1195 = vmul.f32 %v1131, %v1131
      %v1196 = vmul.f32 %v1132, %v1132
      %v1197 = vmul.f32 %v1133, %v1133
      %v1198 = vpack.c.bf16 %v1135, %v1134
      %v1199 = vpack.c.bf16 %v1137, %v1136
      %v1200 = vpack.c.bf16 %v1139, %v1138
      %v1201 = vpack.c.bf16 %v1141, %v1140
      %v1202 = vpack.c.bf16 %v1143, %v1142
      %v1203 = vpack.c.bf16 %v1145, %v1144
      %v1204 = vpack.c.bf16 %v1147, %v1146
      %v1205 = vpack.c.bf16 %v1149, %v1148
      %v1206 = vpack.c.bf16 %v1151, %v1150
      %v1207 = vpack.c.bf16 %v1153, %v1152
      %v1208 = vpack.c.bf16 %v1155, %v1154
      %v1209 = vpack.c.bf16 %v1157, %v1156
      %v1210 = vpack.c.bf16 %v1159, %v1158
      %v1211 = vpack.c.bf16 %v1161, %v1160
      %v1212 = vpack.c.bf16 %v1163, %v1162
      %v1213 = vpack.c.bf16 %v1165, %v1164
      %v1214 = vpack.c.bf16 %v1167, %v1166
      %v1215 = vpack.c.bf16 %v1169, %v1168
      %v1216 = vpack.c.bf16 %v1171, %v1170
      %v1217 = vpack.c.bf16 %v1173, %v1172
      %v1218 = vpack.c.bf16 %v1175, %v1174
      %v1219 = vpack.c.bf16 %v1177, %v1176
      %v1220 = vpack.c.bf16 %v1179, %v1178
      %v1221 = vpack.c.bf16 %v1181, %v1180
      %v1222 = vpack.c.bf16 %v1183, %v1182
      %v1223 = vpack.c.bf16 %v1185, %v1184
      %v1224 = vpack.c.bf16 %v1187, %v1186
      %v1225 = vpack.c.bf16 %v1189, %v1188
      %v1226 = vpack.c.bf16 %v1191, %v1190
      %v1227 = vpack.c.bf16 %v1193, %v1192
      %v1228 = vpack.c.bf16 %v1195, %v1194
      %v1229 = vpack.c.bf16 %v1197, %v1196
      %1230 = vmatpush.bf16.msra.mxu0 %v892
      %1231 = vmatpush.bf16.msra.mxu0 %v891
      %1232 = vmatpush.bf16.msra.mxu0 %v890
      %1233 = vmatpush.bf16.msra.mxu0 %v889
      %1234 = vmatpush.bf16.msra.mxu0 %v888
      %1235 = vmatpush.bf16.msra.mxu0 %v887
      %1236 = vmatpush.bf16.msra.mxu0 %v886
      %1237 = vmatpush.bf16.msra.mxu0 %v885
      %1238 = vmatmul.bf16.gmra.mxu0 %v1198
      %v1239 = vpop.f32.mrf.mxu0
      %v1240 = vadd.f32 1e-05, %v1239
      %v1241 = vpop.f32.mrf.mxu0
      %v1242 = vadd.f32 1e-05, %v1241
      %1243 = vmatmul.bf16.gmra.mxu0 %v1199
      %v1244 = vpop.f32.mrf.mxu0
      %v1245 = vadd.f32 1e-05, %v1244
      %v1246 = vpop.f32.mrf.mxu0
      %v1247 = vadd.f32 1e-05, %v1246
      %1248 = vmatmul.bf16.gmra.mxu0 %v1200
      %v1249 = vpop.f32.mrf.mxu0
      %v1250 = vadd.f32 1e-05, %v1249
      %v1251 = vpop.f32.mrf.mxu0
      %v1252 = vadd.f32 1e-05, %v1251
      %1253 = vmatmul.bf16.gmra.mxu0 %v1201
      %v1254 = vpop.f32.mrf.mxu0
      %v1255 = vadd.f32 1e-05, %v1254
      %v1256 = vpop.f32.mrf.mxu0
      %v1257 = vadd.f32 1e-05, %v1256
      %1258 = vmatmul.bf16.gmra.mxu0 %v1202
      %v1259 = vpop.f32.mrf.mxu0
      %v1260 = vadd.f32 1e-05, %v1259
      %v1261 = vpop.f32.mrf.mxu0
      %v1262 = vadd.f32 1e-05, %v1261
      %1263 = vmatmul.bf16.gmra.mxu0 %v1203
      %v1264 = vpop.f32.mrf.mxu0
      %v1265 = vadd.f32 1e-05, %v1264
      %v1266 = vpop.f32.mrf.mxu0
      %v1267 = vadd.f32 1e-05, %v1266
      %1268 = vmatmul.bf16.gmra.mxu0 %v1204
      %v1269 = vpop.f32.mrf.mxu0
      %v1270 = vadd.f32 1e-05, %v1269
      %v1271 = vpop.f32.mrf.mxu0
      %v1272 = vadd.f32 1e-05, %v1271
      %1273 = vmatmul.bf16.gmra.mxu0 %v1205
      %v1274 = vpop.f32.mrf.mxu0
      %v1275 = vadd.f32 1e-05, %v1274
      %v1276 = vpop.f32.mrf.mxu0
      %v1277 = vadd.f32 1e-05, %v1276
      %1278 = vmatmul.bf16.gmra.mxu0 %v1206
      %v1279 = vpop.f32.mrf.mxu0
      %v1280 = vadd.f32 1e-05, %v1279
      %v1281 = vpop.f32.mrf.mxu0
      %v1282 = vadd.f32 1e-05, %v1281
      %1283 = vmatmul.bf16.gmra.mxu0 %v1207
      %v1284 = vpop.f32.mrf.mxu0
      %v1285 = vadd.f32 1e-05, %v1284
      %v1286 = vpop.f32.mrf.mxu0
      %v1287 = vadd.f32 1e-05, %v1286
      %1288 = vmatmul.bf16.gmra.mxu0 %v1208
      %v1289 = vpop.f32.mrf.mxu0
      %v1290 = vadd.f32 1e-05, %v1289
      %v1291 = vpop.f32.mrf.mxu0
      %v1292 = vadd.f32 1e-05, %v1291
      %1293 = vmatmul.bf16.gmra.mxu0 %v1209
      %v1294 = vpop.f32.mrf.mxu0
      %v1295 = vadd.f32 1e-05, %v1294
      %v1296 = vpop.f32.mrf.mxu0
      %v1297 = vadd.f32 1e-05, %v1296
      %1298 = vmatmul.bf16.gmra.mxu0 %v1210
      %v1299 = vpop.f32.mrf.mxu0
      %v1300 = vadd.f32 1e-05, %v1299
      %v1301 = vpop.f32.mrf.mxu0
      %v1302 = vadd.f32 1e-05, %v1301
      %1303 = vmatmul.bf16.gmra.mxu0 %v1211
      %v1304 = vpop.f32.mrf.mxu0
      %v1305 = vadd.f32 1e-05, %v1304
      %v1306 = vpop.f32.mrf.mxu0
      %v1307 = vadd.f32 1e-05, %v1306
      %1308 = vmatmul.bf16.gmra.mxu0 %v1212
      %v1309 = vpop.f32.mrf.mxu0
      %v1310 = vadd.f32 1e-05, %v1309
      %v1311 = vpop.f32.mrf.mxu0
      %v1312 = vadd.f32 1e-05, %v1311
      %1313 = vmatmul.bf16.gmra.mxu0 %v1213
      %v1314 = vpop.f32.mrf.mxu0
      %v1315 = vadd.f32 1e-05, %v1314
      %v1316 = vpop.f32.mrf.mxu0
      %v1317 = vadd.f32 1e-05, %v1316
      %1318 = vmatmul.bf16.gmra.mxu0 %v1214
      %v1319 = vpop.f32.mrf.mxu0
      %v1320 = vadd.f32 1e-05, %v1319
      %v1321 = vpop.f32.mrf.mxu0
      %v1322 = vadd.f32 1e-05, %v1321
      %1323 = vmatmul.bf16.gmra.mxu0 %v1215
      %v1324 = vpop.f32.mrf.mxu0
      %v1325 = vadd.f32 1e-05, %v1324
      %v1326 = vpop.f32.mrf.mxu0
      %v1327 = vadd.f32 1e-05, %v1326
      %1328 = vmatmul.bf16.gmra.mxu0 %v1216
      %v1329 = vpop.f32.mrf.mxu0
      %v1330 = vadd.f32 1e-05, %v1329
      %v1331 = vpop.f32.mrf.mxu0
      %v1332 = vadd.f32 1e-05, %v1331
      %1333 = vmatmul.bf16.gmra.mxu0 %v1217
      %v1334 = vpop.f32.mrf.mxu0
      %v1335 = vadd.f32 1e-05, %v1334
      %v1336 = vpop.f32.mrf.mxu0
      %v1337 = vadd.f32 1e-05, %v1336
      %1338 = vmatmul.bf16.gmra.mxu0 %v1218
      %v1339 = vpop.f32.mrf.mxu0
      %v1340 = vadd.f32 1e-05, %v1339
      %v1341 = vpop.f32.mrf.mxu0
      %v1342 = vadd.f32 1e-05, %v1341
      %1343 = vmatmul.bf16.gmra.mxu0 %v1219
      %v1344 = vpop.f32.mrf.mxu0
      %v1345 = vadd.f32 1e-05, %v1344
      %v1346 = vpop.f32.mrf.mxu0
      %v1347 = vadd.f32 1e-05, %v1346
      %1348 = vmatmul.bf16.gmra.mxu0 %v1220
      %v1349 = vpop.f32.mrf.mxu0
      %v1350 = vadd.f32 1e-05, %v1349
      %v1351 = vpop.f32.mrf.mxu0
      %v1352 = vadd.f32 1e-05, %v1351
      %1353 = vmatmul.bf16.gmra.mxu0 %v1221
      %v1354 = vpop.f32.mrf.mxu0
      %v1355 = vadd.f32 1e-05, %v1354
      %v1356 = vpop.f32.mrf.mxu0
      %v1357 = vadd.f32 1e-05, %v1356
      %1358 = vmatmul.bf16.gmra.mxu0 %v1222
      %v1359 = vpop.f32.mrf.mxu0
      %v1360 = vadd.f32 1e-05, %v1359
      %v1361 = vpop.f32.mrf.mxu0
      %v1362 = vadd.f32 1e-05, %v1361
      %1363 = vmatmul.bf16.gmra.mxu0 %v1223
      %v1364 = vpop.f32.mrf.mxu0
      %v1365 = vadd.f32 1e-05, %v1364
      %v1366 = vpop.f32.mrf.mxu0
      %v1367 = vadd.f32 1e-05, %v1366
      %1368 = vmatmul.bf16.gmra.mxu0 %v1224
      %v1369 = vpop.f32.mrf.mxu0
      %v1370 = vadd.f32 1e-05, %v1369
      %v1371 = vpop.f32.mrf.mxu0
      %v1372 = vadd.f32 1e-05, %v1371
      %1373 = vmatmul.bf16.gmra.mxu0 %v1225
      %v1374 = vpop.f32.mrf.mxu0
      %v1375 = vadd.f32 1e-05, %v1374
      %v1376 = vpop.f32.mrf.mxu0
      %v1377 = vadd.f32 1e-05, %v1376
      %1378 = vmatmul.bf16.gmra.mxu0 %v1226
      %v1379 = vpop.f32.mrf.mxu0
      %v1380 = vadd.f32 1e-05, %v1379
      %v1381 = vpop.f32.mrf.mxu0
      %v1382 = vadd.f32 1e-05, %v1381
      %1383 = vmatmul.bf16.gmra.mxu0 %v1227
      %v1384 = vpop.f32.mrf.mxu0
      %v1385 = vadd.f32 1e-05, %v1384
      %v1386 = vpop.f32.mrf.mxu0
      %v1387 = vadd.f32 1e-05, %v1386
      %1388 = vmatmul.bf16.gmra.mxu0 %v1228
      %v1389 = vpop.f32.mrf.mxu0
      %v1390 = vadd.f32 1e-05, %v1389
      %v1391 = vpop.f32.mrf.mxu0
      %v1392 = vadd.f32 1e-05, %v1391
      %1393 = vmatmul.bf16.gmra.mxu0 %v1229
      %v1394 = vpop.f32.mrf.mxu0
      %v1395 = vadd.f32 1e-05, %v1394
      %v1396 = vpop.f32.mrf.mxu0
      %v1397 = vadd.f32 1e-05, %v1396
      %1398 = vdwg.mxu0
      %v1399 = vrsqrt.pop %v1240
      %v1400 = vmul.f32 %v1399, %v1240
      %v1401 = vmul.f32 %v1400, %v1399
      %v1402 = vmul.f32 0.5, %v1401
      %v1403 = vsub.f32 1.5, %v1402
      %v1404 = vmul.f32 %v1399, %v1403
      %vm1405 = vweird.f32 %v1240
      %vm1406 = vweird.f32 %v1399
      %vm1407 = vmor %vm1405, %vm1406
      %v1408 = vsel %vm1407, %v1399, %v1404
      %v1409 = vrsqrt.pop %v1242
      %v1410 = vmul.f32 %v1409, %v1242
      %v1411 = vmul.f32 %v1410, %v1409
      %v1412 = vmul.f32 0.5, %v1411
      %v1413 = vsub.f32 1.5, %v1412
      %v1414 = vmul.f32 %v1409, %v1413
      %vm1415 = vweird.f32 %v1242
      %vm1416 = vweird.f32 %v1409
      %vm1417 = vmor %vm1415, %vm1416
      %v1418 = vsel %vm1417, %v1409, %v1414
      %v1419 = vrsqrt.pop %v1245
      %v1420 = vmul.f32 %v1419, %v1245
      %v1421 = vmul.f32 %v1420, %v1419
      %v1422 = vmul.f32 0.5, %v1421
      %v1423 = vsub.f32 1.5, %v1422
      %v1424 = vmul.f32 %v1419, %v1423
      %vm1425 = vweird.f32 %v1245
      %vm1426 = vweird.f32 %v1419
      %vm1427 = vmor %vm1425, %vm1426
      %v1428 = vsel %vm1427, %v1419, %v1424
      %v1429 = vrsqrt.pop %v1247
      %v1430 = vmul.f32 %v1429, %v1247
      %v1431 = vmul.f32 %v1430, %v1429
      %v1432 = vmul.f32 0.5, %v1431
      %v1433 = vsub.f32 1.5, %v1432
      %v1434 = vmul.f32 %v1429, %v1433
      %vm1435 = vweird.f32 %v1247
      %vm1436 = vweird.f32 %v1429
      %vm1437 = vmor %vm1435, %vm1436
      %v1438 = vsel %vm1437, %v1429, %v1434
      %v1439 = vrsqrt.pop %v1250
      %v1440 = vmul.f32 %v1439, %v1250
      %v1441 = vmul.f32 %v1440, %v1439
      %v1442 = vmul.f32 0.5, %v1441
      %v1443 = vsub.f32 1.5, %v1442
      %v1444 = vmul.f32 %v1439, %v1443
      %vm1445 = vweird.f32 %v1250
      %vm1446 = vweird.f32 %v1439
      %vm1447 = vmor %vm1445, %vm1446
      %v1448 = vsel %vm1447, %v1439, %v1444
      %v1449 = vrsqrt.pop %v1252
      %v1450 = vmul.f32 %v1449, %v1252
      %v1451 = vmul.f32 %v1450, %v1449
      %v1452 = vmul.f32 0.5, %v1451
      %v1453 = vsub.f32 1.5, %v1452
      %v1454 = vmul.f32 %v1449, %v1453
      %vm1455 = vweird.f32 %v1252
      %vm1456 = vweird.f32 %v1449
      %vm1457 = vmor %vm1455, %vm1456
      %v1458 = vsel %vm1457, %v1449, %v1454
      %v1459 = vrsqrt.pop %v1255
      %v1460 = vmul.f32 %v1459, %v1255
      %v1461 = vmul.f32 %v1460, %v1459
      %v1462 = vmul.f32 0.5, %v1461
      %v1463 = vsub.f32 1.5, %v1462
      %v1464 = vmul.f32 %v1459, %v1463
      %vm1465 = vweird.f32 %v1255
      %vm1466 = vweird.f32 %v1459
      %vm1467 = vmor %vm1465, %vm1466
      %v1468 = vsel %vm1467, %v1459, %v1464
      %v1469 = vrsqrt.pop %v1257
      %v1470 = vmul.f32 %v1469, %v1257
      %v1471 = vmul.f32 %v1470, %v1469
      %v1472 = vmul.f32 0.5, %v1471
      %v1473 = vsub.f32 1.5, %v1472
      %v1474 = vmul.f32 %v1469, %v1473
      %vm1475 = vweird.f32 %v1257
      %vm1476 = vweird.f32 %v1469
      %vm1477 = vmor %vm1475, %vm1476
      %v1478 = vsel %vm1477, %v1469, %v1474
      %v1479 = vrsqrt.pop %v1260
      %v1480 = vmul.f32 %v1479, %v1260
      %v1481 = vmul.f32 %v1480, %v1479
      %v1482 = vmul.f32 0.5, %v1481
      %v1483 = vsub.f32 1.5, %v1482
      %v1484 = vmul.f32 %v1479, %v1483
      %vm1485 = vweird.f32 %v1260
      %vm1486 = vweird.f32 %v1479
      %vm1487 = vmor %vm1485, %vm1486
      %v1488 = vsel %vm1487, %v1479, %v1484
      %v1489 = vrsqrt.pop %v1262
      %v1490 = vmul.f32 %v1489, %v1262
      %v1491 = vmul.f32 %v1490, %v1489
      %v1492 = vmul.f32 0.5, %v1491
      %v1493 = vsub.f32 1.5, %v1492
      %v1494 = vmul.f32 %v1489, %v1493
      %vm1495 = vweird.f32 %v1262
      %vm1496 = vweird.f32 %v1489
      %vm1497 = vmor %vm1495, %vm1496
      %v1498 = vsel %vm1497, %v1489, %v1494
      %v1499 = vrsqrt.pop %v1265
      %v1500 = vmul.f32 %v1499, %v1265
      %v1501 = vmul.f32 %v1500, %v1499
      %v1502 = vmul.f32 0.5, %v1501
      %v1503 = vsub.f32 1.5, %v1502
      %v1504 = vmul.f32 %v1499, %v1503
      %vm1505 = vweird.f32 %v1265
      %vm1506 = vweird.f32 %v1499
      %vm1507 = vmor %vm1505, %vm1506
      %v1508 = vsel %vm1507, %v1499, %v1504
      %v1509 = vrsqrt.pop %v1267
      %v1510 = vmul.f32 %v1509, %v1267
      %v1511 = vmul.f32 %v1510, %v1509
      %v1512 = vmul.f32 0.5, %v1511
      %v1513 = vsub.f32 1.5, %v1512
      %v1514 = vmul.f32 %v1509, %v1513
      %vm1515 = vweird.f32 %v1267
      %vm1516 = vweird.f32 %v1509
      %vm1517 = vmor %vm1515, %vm1516
      %v1518 = vsel %vm1517, %v1509, %v1514
      %v1519 = vrsqrt.pop %v1270
      %v1520 = vmul.f32 %v1519, %v1270
      %v1521 = vmul.f32 %v1520, %v1519
      %v1522 = vmul.f32 0.5, %v1521
      %v1523 = vsub.f32 1.5, %v1522
      %v1524 = vmul.f32 %v1519, %v1523
      %vm1525 = vweird.f32 %v1270
      %vm1526 = vweird.f32 %v1519
      %vm1527 = vmor %vm1525, %vm1526
      %v1528 = vsel %vm1527, %v1519, %v1524
      %v1529 = vrsqrt.pop %v1272
      %v1530 = vmul.f32 %v1529, %v1272
      %v1531 = vmul.f32 %v1530, %v1529
      %v1532 = vmul.f32 0.5, %v1531
      %v1533 = vsub.f32 1.5, %v1532
      %v1534 = vmul.f32 %v1529, %v1533
      %vm1535 = vweird.f32 %v1272
      %vm1536 = vweird.f32 %v1529
      %vm1537 = vmor %vm1535, %vm1536
      %v1538 = vsel %vm1537, %v1529, %v1534
      %v1539 = vrsqrt.pop %v1275
      %v1540 = vmul.f32 %v1539, %v1275
      %v1541 = vmul.f32 %v1540, %v1539
      %v1542 = vmul.f32 0.5, %v1541
      %v1543 = vsub.f32 1.5, %v1542
      %v1544 = vmul.f32 %v1539, %v1543
      %vm1545 = vweird.f32 %v1275
      %vm1546 = vweird.f32 %v1539
      %vm1547 = vmor %vm1545, %vm1546
      %v1548 = vsel %vm1547, %v1539, %v1544
      %v1549 = vrsqrt.pop %v1277
      %v1550 = vmul.f32 %v1549, %v1277
      %v1551 = vmul.f32 %v1550, %v1549
      %v1552 = vmul.f32 0.5, %v1551
      %v1553 = vsub.f32 1.5, %v1552
      %v1554 = vmul.f32 %v1549, %v1553
      %vm1555 = vweird.f32 %v1277
      %vm1556 = vweird.f32 %v1549
      %vm1557 = vmor %vm1555, %vm1556
      %v1558 = vsel %vm1557, %v1549, %v1554
      %v1559 = vrsqrt.pop %v1280
      %v1560 = vmul.f32 %v1559, %v1280
      %v1561 = vmul.f32 %v1560, %v1559
      %v1562 = vmul.f32 0.5, %v1561
      %v1563 = vsub.f32 1.5, %v1562
      %v1564 = vmul.f32 %v1559, %v1563
      %vm1565 = vweird.f32 %v1280
      %vm1566 = vweird.f32 %v1559
      %vm1567 = vmor %vm1565, %vm1566
      %v1568 = vsel %vm1567, %v1559, %v1564
      %v1569 = vrsqrt.pop %v1282
      %v1570 = vmul.f32 %v1569, %v1282
      %v1571 = vmul.f32 %v1570, %v1569
      %v1572 = vmul.f32 0.5, %v1571
      %v1573 = vsub.f32 1.5, %v1572
      %v1574 = vmul.f32 %v1569, %v1573
      %vm1575 = vweird.f32 %v1282
      %vm1576 = vweird.f32 %v1569
      %vm1577 = vmor %vm1575, %vm1576
      %v1578 = vsel %vm1577, %v1569, %v1574
      %v1579 = vrsqrt.pop %v1285
      %v1580 = vmul.f32 %v1579, %v1285
      %v1581 = vmul.f32 %v1580, %v1579
      %v1582 = vmul.f32 0.5, %v1581
      %v1583 = vsub.f32 1.5, %v1582
      %v1584 = vmul.f32 %v1579, %v1583
      %vm1585 = vweird.f32 %v1285
      %vm1586 = vweird.f32 %v1579
      %vm1587 = vmor %vm1585, %vm1586
      %v1588 = vsel %vm1587, %v1579, %v1584
      %v1589 = vrsqrt.pop %v1287
      %v1590 = vmul.f32 %v1589, %v1287
      %v1591 = vmul.f32 %v1590, %v1589
      %v1592 = vmul.f32 0.5, %v1591
      %v1593 = vsub.f32 1.5, %v1592
      %v1594 = vmul.f32 %v1589, %v1593
      %vm1595 = vweird.f32 %v1287
      %vm1596 = vweird.f32 %v1589
      %vm1597 = vmor %vm1595, %vm1596
      %v1598 = vsel %vm1597, %v1589, %v1594
      %v1599 = vrsqrt.pop %v1290
      %v1600 = vmul.f32 %v1599, %v1290
      %v1601 = vmul.f32 %v1600, %v1599
      %v1602 = vmul.f32 0.5, %v1601
      %v1603 = vsub.f32 1.5, %v1602
      %v1604 = vmul.f32 %v1599, %v1603
      %vm1605 = vweird.f32 %v1290
      %vm1606 = vweird.f32 %v1599
      %vm1607 = vmor %vm1605, %vm1606
      %v1608 = vsel %vm1607, %v1599, %v1604
      %v1609 = vrsqrt.pop %v1292
      %v1610 = vmul.f32 %v1609, %v1292
      %v1611 = vmul.f32 %v1610, %v1609
      %v1612 = vmul.f32 0.5, %v1611
      %v1613 = vsub.f32 1.5, %v1612
      %v1614 = vmul.f32 %v1609, %v1613
      %vm1615 = vweird.f32 %v1292
      %vm1616 = vweird.f32 %v1609
      %vm1617 = vmor %vm1615, %vm1616
      %v1618 = vsel %vm1617, %v1609, %v1614
      %v1619 = vrsqrt.pop %v1295
      %v1620 = vmul.f32 %v1619, %v1295
      %v1621 = vmul.f32 %v1620, %v1619
      %v1622 = vmul.f32 0.5, %v1621
      %v1623 = vsub.f32 1.5, %v1622
      %v1624 = vmul.f32 %v1619, %v1623
      %vm1625 = vweird.f32 %v1295
      %vm1626 = vweird.f32 %v1619
      %vm1627 = vmor %vm1625, %vm1626
      %v1628 = vsel %vm1627, %v1619, %v1624
      %v1629 = vrsqrt.pop %v1297
      %v1630 = vmul.f32 %v1629, %v1297
      %v1631 = vmul.f32 %v1630, %v1629
      %v1632 = vmul.f32 0.5, %v1631
      %v1633 = vsub.f32 1.5, %v1632
      %v1634 = vmul.f32 %v1629, %v1633
      %vm1635 = vweird.f32 %v1297
      %vm1636 = vweird.f32 %v1629
      %vm1637 = vmor %vm1635, %vm1636
      %v1638 = vsel %vm1637, %v1629, %v1634
      %v1639 = vrsqrt.pop %v1300
      %v1640 = vmul.f32 %v1639, %v1300
      %v1641 = vmul.f32 %v1640, %v1639
      %v1642 = vmul.f32 0.5, %v1641
      %v1643 = vsub.f32 1.5, %v1642
      %v1644 = vmul.f32 %v1639, %v1643
      %vm1645 = vweird.f32 %v1300
      %vm1646 = vweird.f32 %v1639
      %vm1647 = vmor %vm1645, %vm1646
      %v1648 = vsel %vm1647, %v1639, %v1644
      %v1649 = vrsqrt.pop %v1302
      %v1650 = vmul.f32 %v1649, %v1302
      %v1651 = vmul.f32 %v1650, %v1649
      %v1652 = vmul.f32 0.5, %v1651
      %v1653 = vsub.f32 1.5, %v1652
      %v1654 = vmul.f32 %v1649, %v1653
      %vm1655 = vweird.f32 %v1302
      %vm1656 = vweird.f32 %v1649
      %vm1657 = vmor %vm1655, %vm1656
      %v1658 = vsel %vm1657, %v1649, %v1654
      %v1659 = vrsqrt.pop %v1305
      %v1660 = vmul.f32 %v1659, %v1305
      %v1661 = vmul.f32 %v1660, %v1659
      %v1662 = vmul.f32 0.5, %v1661
      %v1663 = vsub.f32 1.5, %v1662
      %v1664 = vmul.f32 %v1659, %v1663
      %vm1665 = vweird.f32 %v1305
      %vm1666 = vweird.f32 %v1659
      %vm1667 = vmor %vm1665, %vm1666
      %v1668 = vsel %vm1667, %v1659, %v1664
      %v1669 = vrsqrt.pop %v1307
      %v1670 = vmul.f32 %v1669, %v1307
      %v1671 = vmul.f32 %v1670, %v1669
      %v1672 = vmul.f32 0.5, %v1671
      %v1673 = vsub.f32 1.5, %v1672
      %v1674 = vmul.f32 %v1669, %v1673
      %vm1675 = vweird.f32 %v1307
      %vm1676 = vweird.f32 %v1669
      %vm1677 = vmor %vm1675, %vm1676
      %v1678 = vsel %vm1677, %v1669, %v1674
      %v1679 = vrsqrt.pop %v1310
      %v1680 = vmul.f32 %v1679, %v1310
      %v1681 = vmul.f32 %v1680, %v1679
      %v1682 = vmul.f32 0.5, %v1681
      %v1683 = vsub.f32 1.5, %v1682
      %v1684 = vmul.f32 %v1679, %v1683
      %vm1685 = vweird.f32 %v1310
      %vm1686 = vweird.f32 %v1679
      %vm1687 = vmor %vm1685, %vm1686
      %v1688 = vsel %vm1687, %v1679, %v1684
      %v1689 = vrsqrt.pop %v1312
      %v1690 = vmul.f32 %v1689, %v1312
      %v1691 = vmul.f32 %v1690, %v1689
      %v1692 = vmul.f32 0.5, %v1691
      %v1693 = vsub.f32 1.5, %v1692
      %v1694 = vmul.f32 %v1689, %v1693
      %vm1695 = vweird.f32 %v1312
      %vm1696 = vweird.f32 %v1689
      %vm1697 = vmor %vm1695, %vm1696
      %v1698 = vsel %vm1697, %v1689, %v1694
      %v1699 = vrsqrt.pop %v1315
      %v1700 = vmul.f32 %v1699, %v1315
      %v1701 = vmul.f32 %v1700, %v1699
      %v1702 = vmul.f32 0.5, %v1701
      %v1703 = vsub.f32 1.5, %v1702
      %v1704 = vmul.f32 %v1699, %v1703
      %vm1705 = vweird.f32 %v1315
      %vm1706 = vweird.f32 %v1699
      %vm1707 = vmor %vm1705, %vm1706
      %v1708 = vsel %vm1707, %v1699, %v1704
      %v1709 = vrsqrt.pop %v1317
      %v1710 = vmul.f32 %v1709, %v1317
      %v1711 = vmul.f32 %v1710, %v1709
      %v1712 = vmul.f32 0.5, %v1711
      %v1713 = vsub.f32 1.5, %v1712
      %v1714 = vmul.f32 %v1709, %v1713
      %vm1715 = vweird.f32 %v1317
      %vm1716 = vweird.f32 %v1709
      %vm1717 = vmor %vm1715, %vm1716
      %v1718 = vsel %vm1717, %v1709, %v1714
      %v1719 = vrsqrt.pop %v1320
      %v1720 = vmul.f32 %v1719, %v1320
      %v1721 = vmul.f32 %v1720, %v1719
      %v1722 = vmul.f32 0.5, %v1721
      %v1723 = vsub.f32 1.5, %v1722
      %v1724 = vmul.f32 %v1719, %v1723
      %vm1725 = vweird.f32 %v1320
      %vm1726 = vweird.f32 %v1719
      %vm1727 = vmor %vm1725, %vm1726
      %v1728 = vsel %vm1727, %v1719, %v1724
      %v1729 = vrsqrt.pop %v1322
      %v1730 = vmul.f32 %v1729, %v1322
      %v1731 = vmul.f32 %v1730, %v1729
      %v1732 = vmul.f32 0.5, %v1731
      %v1733 = vsub.f32 1.5, %v1732
      %v1734 = vmul.f32 %v1729, %v1733
      %vm1735 = vweird.f32 %v1322
      %vm1736 = vweird.f32 %v1729
      %vm1737 = vmor %vm1735, %vm1736
      %v1738 = vsel %vm1737, %v1729, %v1734
      %v1739 = vrsqrt.pop %v1325
      %v1740 = vmul.f32 %v1739, %v1325
      %v1741 = vmul.f32 %v1740, %v1739
      %v1742 = vmul.f32 0.5, %v1741
      %v1743 = vsub.f32 1.5, %v1742
      %v1744 = vmul.f32 %v1739, %v1743
      %vm1745 = vweird.f32 %v1325
      %vm1746 = vweird.f32 %v1739
      %vm1747 = vmor %vm1745, %vm1746
      %v1748 = vsel %vm1747, %v1739, %v1744
      %v1749 = vrsqrt.pop %v1327
      %v1750 = vmul.f32 %v1749, %v1327
      %v1751 = vmul.f32 %v1750, %v1749
      %v1752 = vmul.f32 0.5, %v1751
      %v1753 = vsub.f32 1.5, %v1752
      %v1754 = vmul.f32 %v1749, %v1753
      %vm1755 = vweird.f32 %v1327
      %vm1756 = vweird.f32 %v1749
      %vm1757 = vmor %vm1755, %vm1756
      %v1758 = vsel %vm1757, %v1749, %v1754
      %v1759 = vrsqrt.pop %v1330
      %v1760 = vmul.f32 %v1759, %v1330
      %v1761 = vmul.f32 %v1760, %v1759
      %v1762 = vmul.f32 0.5, %v1761
      %v1763 = vsub.f32 1.5, %v1762
      %v1764 = vmul.f32 %v1759, %v1763
      %vm1765 = vweird.f32 %v1330
      %vm1766 = vweird.f32 %v1759
      %vm1767 = vmor %vm1765, %vm1766
      %v1768 = vsel %vm1767, %v1759, %v1764
      %v1769 = vrsqrt.pop %v1332
      %v1770 = vmul.f32 %v1769, %v1332
      %v1771 = vmul.f32 %v1770, %v1769
      %v1772 = vmul.f32 0.5, %v1771
      %v1773 = vsub.f32 1.5, %v1772
      %v1774 = vmul.f32 %v1769, %v1773
      %vm1775 = vweird.f32 %v1332
      %vm1776 = vweird.f32 %v1769
      %vm1777 = vmor %vm1775, %vm1776
      %v1778 = vsel %vm1777, %v1769, %v1774
      %v1779 = vrsqrt.pop %v1335
      %v1780 = vmul.f32 %v1779, %v1335
      %v1781 = vmul.f32 %v1780, %v1779
      %v1782 = vmul.f32 0.5, %v1781
      %v1783 = vsub.f32 1.5, %v1782
      %v1784 = vmul.f32 %v1779, %v1783
      %vm1785 = vweird.f32 %v1335
      %vm1786 = vweird.f32 %v1779
      %vm1787 = vmor %vm1785, %vm1786
      %v1788 = vsel %vm1787, %v1779, %v1784
      %v1789 = vrsqrt.pop %v1337
      %v1790 = vmul.f32 %v1789, %v1337
      %v1791 = vmul.f32 %v1790, %v1789
      %v1792 = vmul.f32 0.5, %v1791
      %v1793 = vsub.f32 1.5, %v1792
      %v1794 = vmul.f32 %v1789, %v1793
      %vm1795 = vweird.f32 %v1337
      %vm1796 = vweird.f32 %v1789
      %vm1797 = vmor %vm1795, %vm1796
      %v1798 = vsel %vm1797, %v1789, %v1794
      %v1799 = vrsqrt.pop %v1340
      %v1800 = vmul.f32 %v1799, %v1340
      %v1801 = vmul.f32 %v1800, %v1799
      %v1802 = vmul.f32 0.5, %v1801
      %v1803 = vsub.f32 1.5, %v1802
      %v1804 = vmul.f32 %v1799, %v1803
      %vm1805 = vweird.f32 %v1340
      %vm1806 = vweird.f32 %v1799
      %vm1807 = vmor %vm1805, %vm1806
      %v1808 = vsel %vm1807, %v1799, %v1804
      %v1809 = vrsqrt.pop %v1342
      %v1810 = vmul.f32 %v1809, %v1342
      %v1811 = vmul.f32 %v1810, %v1809
      %v1812 = vmul.f32 0.5, %v1811
      %v1813 = vsub.f32 1.5, %v1812
      %v1814 = vmul.f32 %v1809, %v1813
      %vm1815 = vweird.f32 %v1342
      %vm1816 = vweird.f32 %v1809
      %vm1817 = vmor %vm1815, %vm1816
      %v1818 = vsel %vm1817, %v1809, %v1814
      %v1819 = vrsqrt.pop %v1345
      %v1820 = vmul.f32 %v1819, %v1345
      %v1821 = vmul.f32 %v1820, %v1819
      %v1822 = vmul.f32 0.5, %v1821
      %v1823 = vsub.f32 1.5, %v1822
      %v1824 = vmul.f32 %v1819, %v1823
      %vm1825 = vweird.f32 %v1345
      %vm1826 = vweird.f32 %v1819
      %vm1827 = vmor %vm1825, %vm1826
      %v1828 = vsel %vm1827, %v1819, %v1824
      %v1829 = vrsqrt.pop %v1347
      %v1830 = vmul.f32 %v1829, %v1347
      %v1831 = vmul.f32 %v1830, %v1829
      %v1832 = vmul.f32 0.5, %v1831
      %v1833 = vsub.f32 1.5, %v1832
      %v1834 = vmul.f32 %v1829, %v1833
      %vm1835 = vweird.f32 %v1347
      %vm1836 = vweird.f32 %v1829
      %vm1837 = vmor %vm1835, %vm1836
      %v1838 = vsel %vm1837, %v1829, %v1834
      %v1839 = vrsqrt.pop %v1350
      %v1840 = vmul.f32 %v1839, %v1350
      %v1841 = vmul.f32 %v1840, %v1839
      %v1842 = vmul.f32 0.5, %v1841
      %v1843 = vsub.f32 1.5, %v1842
      %v1844 = vmul.f32 %v1839, %v1843
      %vm1845 = vweird.f32 %v1350
      %vm1846 = vweird.f32 %v1839
      %vm1847 = vmor %vm1845, %vm1846
      %v1848 = vsel %vm1847, %v1839, %v1844
      %v1849 = vrsqrt.pop %v1352
      %v1850 = vmul.f32 %v1849, %v1352
      %v1851 = vmul.f32 %v1850, %v1849
      %v1852 = vmul.f32 0.5, %v1851
      %v1853 = vsub.f32 1.5, %v1852
      %v1854 = vmul.f32 %v1849, %v1853
      %vm1855 = vweird.f32 %v1352
      %vm1856 = vweird.f32 %v1849
      %vm1857 = vmor %vm1855, %vm1856
      %v1858 = vsel %vm1857, %v1849, %v1854
      %v1859 = vrsqrt.pop %v1355
      %v1860 = vmul.f32 %v1859, %v1355
      %v1861 = vmul.f32 %v1860, %v1859
      %v1862 = vmul.f32 0.5, %v1861
      %v1863 = vsub.f32 1.5, %v1862
      %v1864 = vmul.f32 %v1859, %v1863
      %vm1865 = vweird.f32 %v1355
      %vm1866 = vweird.f32 %v1859
      %vm1867 = vmor %vm1865, %vm1866
      %v1868 = vsel %vm1867, %v1859, %v1864
      %v1869 = vrsqrt.pop %v1357
      %v1870 = vmul.f32 %v1869, %v1357
      %v1871 = vmul.f32 %v1870, %v1869
      %v1872 = vmul.f32 0.5, %v1871
      %v1873 = vsub.f32 1.5, %v1872
      %v1874 = vmul.f32 %v1869, %v1873
      %vm1875 = vweird.f32 %v1357
      %vm1876 = vweird.f32 %v1869
      %vm1877 = vmor %vm1875, %vm1876
      %v1878 = vsel %vm1877, %v1869, %v1874
      %v1879 = vrsqrt.pop %v1360
      %v1880 = vmul.f32 %v1879, %v1360
      %v1881 = vmul.f32 %v1880, %v1879
      %v1882 = vmul.f32 0.5, %v1881
      %v1883 = vsub.f32 1.5, %v1882
      %v1884 = vmul.f32 %v1879, %v1883
      %vm1885 = vweird.f32 %v1360
      %vm1886 = vweird.f32 %v1879
      %vm1887 = vmor %vm1885, %vm1886
      %v1888 = vsel %vm1887, %v1879, %v1884
      %v1889 = vrsqrt.pop %v1362
      %v1890 = vmul.f32 %v1889, %v1362
      %v1891 = vmul.f32 %v1890, %v1889
      %v1892 = vmul.f32 0.5, %v1891
      %v1893 = vsub.f32 1.5, %v1892
      %v1894 = vmul.f32 %v1889, %v1893
      %vm1895 = vweird.f32 %v1362
      %vm1896 = vweird.f32 %v1889
      %vm1897 = vmor %vm1895, %vm1896
      %v1898 = vsel %vm1897, %v1889, %v1894
      %v1899 = vrsqrt.pop %v1365
      %v1900 = vmul.f32 %v1899, %v1365
      %v1901 = vmul.f32 %v1900, %v1899
      %v1902 = vmul.f32 0.5, %v1901
      %v1903 = vsub.f32 1.5, %v1902
      %v1904 = vmul.f32 %v1899, %v1903
      %vm1905 = vweird.f32 %v1365
      %vm1906 = vweird.f32 %v1899
      %vm1907 = vmor %vm1905, %vm1906
      %v1908 = vsel %vm1907, %v1899, %v1904
      %v1909 = vrsqrt.pop %v1367
      %v1910 = vmul.f32 %v1909, %v1367
      %v1911 = vmul.f32 %v1910, %v1909
      %v1912 = vmul.f32 0.5, %v1911
      %v1913 = vsub.f32 1.5, %v1912
      %v1914 = vmul.f32 %v1909, %v1913
      %vm1915 = vweird.f32 %v1367
      %vm1916 = vweird.f32 %v1909
      %vm1917 = vmor %vm1915, %vm1916
      %v1918 = vsel %vm1917, %v1909, %v1914
      %v1919 = vrsqrt.pop %v1370
      %v1920 = vmul.f32 %v1919, %v1370
      %v1921 = vmul.f32 %v1920, %v1919
      %v1922 = vmul.f32 0.5, %v1921
      %v1923 = vsub.f32 1.5, %v1922
      %v1924 = vmul.f32 %v1919, %v1923
      %vm1925 = vweird.f32 %v1370
      %vm1926 = vweird.f32 %v1919
      %vm1927 = vmor %vm1925, %vm1926
      %v1928 = vsel %vm1927, %v1919, %v1924
      %v1929 = vrsqrt.pop %v1372
      %v1930 = vmul.f32 %v1929, %v1372
      %v1931 = vmul.f32 %v1930, %v1929
      %v1932 = vmul.f32 0.5, %v1931
      %v1933 = vsub.f32 1.5, %v1932
      %v1934 = vmul.f32 %v1929, %v1933
      %vm1935 = vweird.f32 %v1372
      %vm1936 = vweird.f32 %v1929
      %vm1937 = vmor %vm1935, %vm1936
      %v1938 = vsel %vm1937, %v1929, %v1934
      %v1939 = vrsqrt.pop %v1375
      %v1940 = vmul.f32 %v1939, %v1375
      %v1941 = vmul.f32 %v1940, %v1939
      %v1942 = vmul.f32 0.5, %v1941
      %v1943 = vsub.f32 1.5, %v1942
      %v1944 = vmul.f32 %v1939, %v1943
      %vm1945 = vweird.f32 %v1375
      %vm1946 = vweird.f32 %v1939
      %vm1947 = vmor %vm1945, %vm1946
      %v1948 = vsel %vm1947, %v1939, %v1944
      %v1949 = vrsqrt.pop %v1377
      %v1950 = vmul.f32 %v1949, %v1377
      %v1951 = vmul.f32 %v1950, %v1949
      %v1952 = vmul.f32 0.5, %v1951
      %v1953 = vsub.f32 1.5, %v1952
      %v1954 = vmul.f32 %v1949, %v1953
      %vm1955 = vweird.f32 %v1377
      %vm1956 = vweird.f32 %v1949
      %vm1957 = vmor %vm1955, %vm1956
      %v1958 = vsel %vm1957, %v1949, %v1954
      %v1959 = vrsqrt.pop %v1380
      %v1960 = vmul.f32 %v1959, %v1380
      %v1961 = vmul.f32 %v1960, %v1959
      %v1962 = vmul.f32 0.5, %v1961
      %v1963 = vsub.f32 1.5, %v1962
      %v1964 = vmul.f32 %v1959, %v1963
      %vm1965 = vweird.f32 %v1380
      %vm1966 = vweird.f32 %v1959
      %vm1967 = vmor %vm1965, %vm1966
      %v1968 = vsel %vm1967, %v1959, %v1964
      %v1969 = vrsqrt.pop %v1382
      %v1970 = vmul.f32 %v1969, %v1382
      %v1971 = vmul.f32 %v1970, %v1969
      %v1972 = vmul.f32 0.5, %v1971
      %v1973 = vsub.f32 1.5, %v1972
      %v1974 = vmul.f32 %v1969, %v1973
      %vm1975 = vweird.f32 %v1382
      %vm1976 = vweird.f32 %v1969
      %vm1977 = vmor %vm1975, %vm1976
      %v1978 = vsel %vm1977, %v1969, %v1974
      %v1979 = vrsqrt.pop %v1385
      %v1980 = vmul.f32 %v1979, %v1385
      %v1981 = vmul.f32 %v1980, %v1979
      %v1982 = vmul.f32 0.5, %v1981
      %v1983 = vsub.f32 1.5, %v1982
      %v1984 = vmul.f32 %v1979, %v1983
      %vm1985 = vweird.f32 %v1385
      %vm1986 = vweird.f32 %v1979
      %vm1987 = vmor %vm1985, %vm1986
      %v1988 = vsel %vm1987, %v1979, %v1984
      %v1989 = vrsqrt.pop %v1387
      %v1990 = vmul.f32 %v1989, %v1387
      %v1991 = vmul.f32 %v1990, %v1989
      %v1992 = vmul.f32 0.5, %v1991
      %v1993 = vsub.f32 1.5, %v1992
      %v1994 = vmul.f32 %v1989, %v1993
      %vm1995 = vweird.f32 %v1387
      %vm1996 = vweird.f32 %v1989
      %vm1997 = vmor %vm1995, %vm1996
      %v1998 = vsel %vm1997, %v1989, %v1994
      %v1999 = vrsqrt.pop %v1390
      %v2000 = vmul.f32 %v1999, %v1390
      %v2001 = vmul.f32 %v2000, %v1999
      %v2002 = vmul.f32 0.5, %v2001
      %v2003 = vsub.f32 1.5, %v2002
      %v2004 = vmul.f32 %v1999, %v2003
      %vm2005 = vweird.f32 %v1390
      %vm2006 = vweird.f32 %v1999
      %vm2007 = vmor %vm2005, %vm2006
      %v2008 = vsel %vm2007, %v1999, %v2004
      %v2009 = vrsqrt.pop %v1392
      %v2010 = vmul.f32 %v2009, %v1392
      %v2011 = vmul.f32 %v2010, %v2009
      %v2012 = vmul.f32 0.5, %v2011
      %v2013 = vsub.f32 1.5, %v2012
      %v2014 = vmul.f32 %v2009, %v2013
      %vm2015 = vweird.f32 %v1392
      %vm2016 = vweird.f32 %v2009
      %vm2017 = vmor %vm2015, %vm2016
      %v2018 = vsel %vm2017, %v2009, %v2014
      %v2019 = vrsqrt.pop %v1395
      %v2020 = vmul.f32 %v2019, %v1395
      %v2021 = vmul.f32 %v2020, %v2019
      %v2022 = vmul.f32 0.5, %v2021
      %v2023 = vsub.f32 1.5, %v2022
      %v2024 = vmul.f32 %v2019, %v2023
      %vm2025 = vweird.f32 %v1395
      %vm2026 = vweird.f32 %v2019
      %vm2027 = vmor %vm2025, %vm2026
      %v2028 = vsel %vm2027, %v2019, %v2024
      %v2029 = vrsqrt.pop %v1397
      %v2030 = vmul.f32 %v2029, %v1397
      %v2031 = vmul.f32 %v2030, %v2029
      %v2032 = vmul.f32 0.5, %v2031
      %v2033 = vsub.f32 1.5, %v2032
      %v2034 = vmul.f32 %v2029, %v2033
      %vm2035 = vweird.f32 %v1397
      %vm2036 = vweird.f32 %v2029
      %vm2037 = vmor %vm2035, %vm2036
      %v2038 = vsel %vm2037, %v2029, %v2034
      %v2039 = vld [vmem:[%s3] sm:$0x1]
      %v2041 = vperm.slane %v2039, 0
      %v2043 = vmul.f32 %v1408, %v2041
      %v2044 = vmul.f32 %v1418, %v2041
      %v2045 = vmul.f32 %v1428, %v2041
      %v2046 = vmul.f32 %v1438, %v2041
      %v2047 = vmul.f32 %v1448, %v2041
      %v2048 = vmul.f32 %v1458, %v2041
      %v2049 = vmul.f32 %v1468, %v2041
      %v2050 = vmul.f32 %v1478, %v2041
      %v2051 = vmul.f32 %v1488, %v2041
      %v2052 = vmul.f32 %v1498, %v2041
      %v2053 = vmul.f32 %v1508, %v2041
      %v2054 = vmul.f32 %v1518, %v2041
      %v2055 = vmul.f32 %v1528, %v2041
      %v2056 = vmul.f32 %v1538, %v2041
      %v2057 = vmul.f32 %v1548, %v2041
      %v2058 = vmul.f32 %v1558, %v2041
      %v2059 = vmul.f32 %v1568, %v2041
      %v2060 = vmul.f32 %v1578, %v2041
      %v2061 = vmul.f32 %v1588, %v2041
      %v2062 = vmul.f32 %v1598, %v2041
      %v2063 = vmul.f32 %v1608, %v2041
      %v2064 = vmul.f32 %v1618, %v2041
      %v2065 = vmul.f32 %v1628, %v2041
      %v2066 = vmul.f32 %v1638, %v2041
      %v2067 = vmul.f32 %v1648, %v2041
      %v2068 = vmul.f32 %v1658, %v2041
      %v2069 = vmul.f32 %v1668, %v2041
      %v2070 = vmul.f32 %v1678, %v2041
      %v2071 = vmul.f32 %v1688, %v2041
      %v2072 = vmul.f32 %v1698, %v2041
      %v2073 = vmul.f32 %v1708, %v2041
      %v2074 = vmul.f32 %v1718, %v2041
      %v2075 = vmul.f32 %v1728, %v2041
      %v2076 = vmul.f32 %v1738, %v2041
      %v2077 = vmul.f32 %v1748, %v2041
      %v2078 = vmul.f32 %v1758, %v2041
      %v2079 = vmul.f32 %v1768, %v2041
      %v2080 = vmul.f32 %v1778, %v2041
      %v2081 = vmul.f32 %v1788, %v2041
      %v2082 = vmul.f32 %v1798, %v2041
      %v2083 = vmul.f32 %v1808, %v2041
      %v2084 = vmul.f32 %v1818, %v2041
      %v2085 = vmul.f32 %v1828, %v2041
      %v2086 = vmul.f32 %v1838, %v2041
      %v2087 = vmul.f32 %v1848, %v2041
      %v2088 = vmul.f32 %v1858, %v2041
      %v2089 = vmul.f32 %v1868, %v2041
      %v2090 = vmul.f32 %v1878, %v2041
      %v2091 = vmul.f32 %v1888, %v2041
      %v2092 = vmul.f32 %v1898, %v2041
      %v2093 = vmul.f32 %v1908, %v2041
      %v2094 = vmul.f32 %v1918, %v2041
      %v2095 = vmul.f32 %v1928, %v2041
      %v2096 = vmul.f32 %v1938, %v2041
      %v2097 = vmul.f32 %v1948, %v2041
      %v2098 = vmul.f32 %v1958, %v2041
      %v2099 = vmul.f32 %v1968, %v2041
      %v2100 = vmul.f32 %v1978, %v2041
      %v2101 = vmul.f32 %v1988, %v2041
      %v2102 = vmul.f32 %v1998, %v2041
      %v2103 = vmul.f32 %v2008, %v2041
      %v2104 = vmul.f32 %v2018, %v2041
      %v2105 = vmul.f32 %v2028, %v2041
      %v2106 = vmul.f32 %v2038, %v2041
      %v2107 = vmul.f32 %v1070, %v2043
      %v2108 = vmul.f32 %v1071, %v2044
      %v2109 = vmul.f32 %v1072, %v2045
      %v2110 = vmul.f32 %v1073, %v2046
      %v2111 = vmul.f32 %v1074, %v2047
      %v2112 = vmul.f32 %v1075, %v2048
      %v2113 = vmul.f32 %v1076, %v2049
      %v2114 = vmul.f32 %v1077, %v2050
      %v2115 = vmul.f32 %v1078, %v2051
      %v2116 = vmul.f32 %v1079, %v2052
      %v2117 = vmul.f32 %v1080, %v2053
      %v2118 = vmul.f32 %v1081, %v2054
      %v2119 = vmul.f32 %v1082, %v2055
      %v2120 = vmul.f32 %v1083, %v2056
      %v2121 = vmul.f32 %v1084, %v2057
      %v2122 = vmul.f32 %v1085, %v2058
      %v2123 = vmul.f32 %v1086, %v2059
      %v2124 = vmul.f32 %v1087, %v2060
      %v2125 = vmul.f32 %v1088, %v2061
      %v2126 = vmul.f32 %v1089, %v2062
      %v2127 = vmul.f32 %v1090, %v2063
      %v2128 = vmul.f32 %v1091, %v2064
      %v2129 = vmul.f32 %v1092, %v2065
      %v2130 = vmul.f32 %v1093, %v2066
      %v2131 = vmul.f32 %v1094, %v2067
      %v2132 = vmul.f32 %v1095, %v2068
      %v2133 = vmul.f32 %v1096, %v2069
      %v2134 = vmul.f32 %v1097, %v2070
      %v2135 = vmul.f32 %v1098, %v2071
      %v2136 = vmul.f32 %v1099, %v2072
      %v2137 = vmul.f32 %v1100, %v2073
      %v2138 = vmul.f32 %v1101, %v2074
      %v2139 = vmul.f32 %v1102, %v2075
      %v2140 = vmul.f32 %v1103, %v2076
      %v2141 = vmul.f32 %v1104, %v2077
      %v2142 = vmul.f32 %v1105, %v2078
      %v2143 = vmul.f32 %v1106, %v2079
      %v2144 = vmul.f32 %v1107, %v2080
      %v2145 = vmul.f32 %v1108, %v2081
      %v2146 = vmul.f32 %v1109, %v2082
      %v2147 = vmul.f32 %v1110, %v2083
      %v2148 = vmul.f32 %v1111, %v2084
      %v2149 = vmul.f32 %v1112, %v2085
      %v2150 = vmul.f32 %v1113, %v2086
      %v2151 = vmul.f32 %v1114, %v2087
      %v2152 = vmul.f32 %v1115, %v2088
      %v2153 = vmul.f32 %v1116, %v2089
      %v2154 = vmul.f32 %v1117, %v2090
      %v2155 = vmul.f32 %v1118, %v2091
      %v2156 = vmul.f32 %v1119, %v2092
      %v2157 = vmul.f32 %v1120, %v2093
      %v2158 = vmul.f32 %v1121, %v2094
      %v2159 = vmul.f32 %v1122, %v2095
      %v2160 = vmul.f32 %v1123, %v2096
      %v2161 = vmul.f32 %v1124, %v2097
      %v2162 = vmul.f32 %v1125, %v2098
      %v2163 = vmul.f32 %v1126, %v2099
      %v2164 = vmul.f32 %v1127, %v2100
      %v2165 = vmul.f32 %v1128, %v2101
      %v2166 = vmul.f32 %v1129, %v2102
      %v2167 = vmul.f32 %v1130, %v2103
      %v2168 = vmul.f32 %v1131, %v2104
      %v2169 = vmul.f32 %v1132, %v2105
      %v2170 = vmul.f32 %v1133, %v2106
      %v2171 = vld [vmem:[%s4] sm:$0x1]
      %v2173 = vperm.slane %v2171, 0
      %v2175 = vadd.f32 %v2107, %v2173
      %v2176 = vadd.f32 %v2108, %v2173
      %v2177 = vadd.f32 %v2109, %v2173
      %v2178 = vadd.f32 %v2110, %v2173
      %v2179 = vadd.f32 %v2111, %v2173
      %v2180 = vadd.f32 %v2112, %v2173
      %v2181 = vadd.f32 %v2113, %v2173
      %v2182 = vadd.f32 %v2114, %v2173
      %v2183 = vadd.f32 %v2115, %v2173
      %v2184 = vadd.f32 %v2116, %v2173
      %v2185 = vadd.f32 %v2117, %v2173
      %v2186 = vadd.f32 %v2118, %v2173
      %v2187 = vadd.f32 %v2119, %v2173
      %v2188 = vadd.f32 %v2120, %v2173
      %v2189 = vadd.f32 %v2121, %v2173
      %v2190 = vadd.f32 %v2122, %v2173
      %v2191 = vadd.f32 %v2123, %v2173
      %v2192 = vadd.f32 %v2124, %v2173
      %v2193 = vadd.f32 %v2125, %v2173
      %v2194 = vadd.f32 %v2126, %v2173
      %v2195 = vadd.f32 %v2127, %v2173
      %v2196 = vadd.f32 %v2128, %v2173
      %v2197 = vadd.f32 %v2129, %v2173
      %v2198 = vadd.f32 %v2130, %v2173
      %v2199 = vadd.f32 %v2131, %v2173
      %v2200 = vadd.f32 %v2132, %v2173
      %v2201 = vadd.f32 %v2133, %v2173
      %v2202 = vadd.f32 %v2134, %v2173
      %v2203 = vadd.f32 %v2135, %v2173
      %v2204 = vadd.f32 %v2136, %v2173
      %v2205 = vadd.f32 %v2137, %v2173
      %v2206 = vadd.f32 %v2138, %v2173
      %v2207 = vadd.f32 %v2139, %v2173
      %v2208 = vadd.f32 %v2140, %v2173
      %v2209 = vadd.f32 %v2141, %v2173
      %v2210 = vadd.f32 %v2142, %v2173
      %v2211 = vadd.f32 %v2143, %v2173
      %v2212 = vadd.f32 %v2144, %v2173
      %v2213 = vadd.f32 %v2145, %v2173
      %v2214 = vadd.f32 %v2146, %v2173
      %v2215 = vadd.f32 %v2147, %v2173
      %v2216 = vadd.f32 %v2148, %v2173
      %v2217 = vadd.f32 %v2149, %v2173
      %v2218 = vadd.f32 %v2150, %v2173
      %v2219 = vadd.f32 %v2151, %v2173
      %v2220 = vadd.f32 %v2152, %v2173
      %v2221 = vadd.f32 %v2153, %v2173
      %v2222 = vadd.f32 %v2154, %v2173
      %v2223 = vadd.f32 %v2155, %v2173
      %v2224 = vadd.f32 %v2156, %v2173
      %v2225 = vadd.f32 %v2157, %v2173
      %v2226 = vadd.f32 %v2158, %v2173
      %v2227 = vadd.f32 %v2159, %v2173
      %v2228 = vadd.f32 %v2160, %v2173
      %v2229 = vadd.f32 %v2161, %v2173
      %v2230 = vadd.f32 %v2162, %v2173
      %v2231 = vadd.f32 %v2163, %v2173
      %v2232 = vadd.f32 %v2164, %v2173
      %v2233 = vadd.f32 %v2165, %v2173
      %v2234 = vadd.f32 %v2166, %v2173
      %v2235 = vadd.f32 %v2167, %v2173
      %v2236 = vadd.f32 %v2168, %v2173
      %v2237 = vadd.f32 %v2169, %v2173
      %v2238 = vadd.f32 %v2170, %v2173
      %v2239 = vlaneseq
      %v2240 = vand.u32 %v2239, 127
      %vm2241 = vcmp.lt.s32.totalorder %v2240, 64
      %2242 = vrot.lane.b32.xlu0 %v2175, 64
      %v2243 = vpop.permute.xlu0 %2242
      %2244 = vrot.lane.b32.xlu0 %v2176, 64
      %v2245 = vpop.permute.xlu0 %2244
      %2246 = vrot.lane.b32.xlu0 %v2177, 64
      %v2247 = vpop.permute.xlu0 %2246
      %2248 = vrot.lane.b32.xlu0 %v2178, 64
      %v2249 = vpop.permute.xlu0 %2248
      %2250 = vrot.lane.b32.xlu0 %v2179, 64
      %v2251 = vpop.permute.xlu0 %2250
      %2252 = vrot.lane.b32.xlu0 %v2180, 64
      %v2253 = vpop.permute.xlu0 %2252
      %2254 = vrot.lane.b32.xlu0 %v2181, 64
      %v2255 = vpop.permute.xlu0 %2254
      %2256 = vrot.lane.b32.xlu0 %v2182, 64
      %v2257 = vpop.permute.xlu0 %2256
      %2258 = vrot.lane.b32.xlu0 %v2183, 64
      %v2259 = vpop.permute.xlu0 %2258
      %2260 = vrot.lane.b32.xlu0 %v2184, 64
      %v2261 = vpop.permute.xlu0 %2260
      %2262 = vrot.lane.b32.xlu0 %v2185, 64
      %v2263 = vpop.permute.xlu0 %2262
      %2264 = vrot.lane.b32.xlu0 %v2186, 64
      %v2265 = vpop.permute.xlu0 %2264
      %2266 = vrot.lane.b32.xlu0 %v2187, 64
      %v2267 = vpop.permute.xlu0 %2266
      %2268 = vrot.lane.b32.xlu0 %v2188, 64
      %v2269 = vpop.permute.xlu0 %2268
      %2270 = vrot.lane.b32.xlu0 %v2189, 64
      %v2271 = vpop.permute.xlu0 %2270
      %2272 = vrot.lane.b32.xlu0 %v2190, 64
      %v2273 = vpop.permute.xlu0 %2272
      %2274 = vrot.lane.b32.xlu0 %v2191, 64
      %v2275 = vpop.permute.xlu0 %2274
      %2276 = vrot.lane.b32.xlu0 %v2192, 64
      %v2277 = vpop.permute.xlu0 %2276
      %2278 = vrot.lane.b32.xlu0 %v2193, 64
      %v2279 = vpop.permute.xlu0 %2278
      %2280 = vrot.lane.b32.xlu0 %v2194, 64
      %v2281 = vpop.permute.xlu0 %2280
      %2282 = vrot.lane.b32.xlu0 %v2195, 64
      %v2283 = vpop.permute.xlu0 %2282
      %2284 = vrot.lane.b32.xlu0 %v2196, 64
      %v2285 = vpop.permute.xlu0 %2284
      %2286 = vrot.lane.b32.xlu0 %v2197, 64
      %v2287 = vpop.permute.xlu0 %2286
      %2288 = vrot.lane.b32.xlu0 %v2198, 64
      %v2289 = vpop.permute.xlu0 %2288
      %2290 = vrot.lane.b32.xlu0 %v2199, 64
      %v2291 = vpop.permute.xlu0 %2290
      %2292 = vrot.lane.b32.xlu0 %v2200, 64
      %v2293 = vpop.permute.xlu0 %2292
      %2294 = vrot.lane.b32.xlu0 %v2201, 64
      %v2295 = vpop.permute.xlu0 %2294
      %2296 = vrot.lane.b32.xlu0 %v2202, 64
      %v2297 = vpop.permute.xlu0 %2296
      %2298 = vrot.lane.b32.xlu0 %v2203, 64
      %v2299 = vpop.permute.xlu0 %2298
      %2300 = vrot.lane.b32.xlu0 %v2204, 64
      %v2301 = vpop.permute.xlu0 %2300
      %2302 = vrot.lane.b32.xlu0 %v2205, 64
      %v2303 = vpop.permute.xlu0 %2302
      %2304 = vrot.lane.b32.xlu0 %v2206, 64
      %v2305 = vpop.permute.xlu0 %2304
      %2306 = vrot.lane.b32.xlu0 %v2207, 64
      %v2307 = vpop.permute.xlu0 %2306
      %2308 = vrot.lane.b32.xlu0 %v2208, 64
      %v2309 = vpop.permute.xlu0 %2308
      %2310 = vrot.lane.b32.xlu0 %v2209, 64
      %v2311 = vpop.permute.xlu0 %2310
      %2312 = vrot.lane.b32.xlu0 %v2210, 64
      %v2313 = vpop.permute.xlu0 %2312
      %2314 = vrot.lane.b32.xlu0 %v2211, 64
      %v2315 = vpop.permute.xlu0 %2314
      %2316 = vrot.lane.b32.xlu0 %v2212, 64
      %v2317 = vpop.permute.xlu0 %2316
      %2318 = vrot.lane.b32.xlu0 %v2213, 64
      %v2319 = vpop.permute.xlu0 %2318
      %2320 = vrot.lane.b32.xlu0 %v2214, 64
      %v2321 = vpop.permute.xlu0 %2320
      %2322 = vrot.lane.b32.xlu0 %v2215, 64
      %v2323 = vpop.permute.xlu0 %2322
      %2324 = vrot.lane.b32.xlu0 %v2216, 64
      %v2325 = vpop.permute.xlu0 %2324
      %2326 = vrot.lane.b32.xlu0 %v2217, 64
      %v2327 = vpop.permute.xlu0 %2326
      %2328 = vrot.lane.b32.xlu0 %v2218, 64
      %v2329 = vpop.permute.xlu0 %2328
      %2330 = vrot.lane.b32.xlu0 %v2219, 64
      %v2331 = vpop.permute.xlu0 %2330
      %2332 = vrot.lane.b32.xlu0 %v2220, 64
      %v2333 = vpop.permute.xlu0 %2332
      %2334 = vrot.lane.b32.xlu0 %v2221, 64
      %v2335 = vpop.permute.xlu0 %2334
      %2336 = vrot.lane.b32.xlu0 %v2222, 64
      %v2337 = vpop.permute.xlu0 %2336
      %2338 = vrot.lane.b32.xlu0 %v2223, 64
      %v2339 = vpop.permute.xlu0 %2338
      %2340 = vrot.lane.b32.xlu0 %v2224, 64
      %v2341 = vpop.permute.xlu0 %2340
      %2342 = vrot.lane.b32.xlu0 %v2225, 64
      %v2343 = vpop.permute.xlu0 %2342
      %2344 = vrot.lane.b32.xlu0 %v2226, 64
      %v2345 = vpop.permute.xlu0 %2344
      %2346 = vrot.lane.b32.xlu0 %v2227, 64
      %v2347 = vpop.permute.xlu0 %2346
      %2348 = vrot.lane.b32.xlu0 %v2228, 64
      %v2349 = vpop.permute.xlu0 %2348
      %2350 = vrot.lane.b32.xlu0 %v2229, 64
      %v2351 = vpop.permute.xlu0 %2350
      %2352 = vrot.lane.b32.xlu0 %v2230, 64
      %v2353 = vpop.permute.xlu0 %2352
      %2354 = vrot.lane.b32.xlu0 %v2231, 64
      %v2355 = vpop.permute.xlu0 %2354
      %2356 = vrot.lane.b32.xlu0 %v2232, 64
      %v2357 = vpop.permute.xlu0 %2356
      %2358 = vrot.lane.b32.xlu0 %v2233, 64
      %v2359 = vpop.permute.xlu0 %2358
      %2360 = vrot.lane.b32.xlu0 %v2234, 64
      %v2361 = vpop.permute.xlu0 %2360
      %2362 = vrot.lane.b32.xlu0 %v2235, 64
      %v2363 = vpop.permute.xlu0 %2362
      %2364 = vrot.lane.b32.xlu0 %v2236, 64
      %v2365 = vpop.permute.xlu0 %2364
      %2366 = vrot.lane.b32.xlu0 %v2237, 64
      %v2367 = vpop.permute.xlu0 %2366
      %2368 = vrot.lane.b32.xlu0 %v2238, 64
      %v2369 = vpop.permute.xlu0 %2368
      %v2370 = vadd.f32 %v2175, %v2243
      %v2371 = vadd.f32 %v2176, %v2245
      %v2372 = vadd.f32 %v2177, %v2247
      %v2373 = vadd.f32 %v2178, %v2249
      %v2374 = vadd.f32 %v2179, %v2251
      %v2375 = vadd.f32 %v2180, %v2253
      %v2376 = vadd.f32 %v2181, %v2255
      %v2377 = vadd.f32 %v2182, %v2257
      %v2378 = vadd.f32 %v2183, %v2259
      %v2379 = vadd.f32 %v2184, %v2261
      %v2380 = vadd.f32 %v2185, %v2263
      %v2381 = vadd.f32 %v2186, %v2265
      %v2382 = vadd.f32 %v2187, %v2267
      %v2383 = vadd.f32 %v2188, %v2269
      %v2384 = vadd.f32 %v2189, %v2271
      %v2385 = vadd.f32 %v2190, %v2273
      %v2386 = vadd.f32 %v2191, %v2275
      %v2387 = vadd.f32 %v2192, %v2277
      %v2388 = vadd.f32 %v2193, %v2279
      %v2389 = vadd.f32 %v2194, %v2281
      %v2390 = vadd.f32 %v2195, %v2283
      %v2391 = vadd.f32 %v2196, %v2285
      %v2392 = vadd.f32 %v2197, %v2287
      %v2393 = vadd.f32 %v2198, %v2289
      %v2394 = vadd.f32 %v2199, %v2291
      %v2395 = vadd.f32 %v2200, %v2293
      %v2396 = vadd.f32 %v2201, %v2295
      %v2397 = vadd.f32 %v2202, %v2297
      %v2398 = vadd.f32 %v2203, %v2299
      %v2399 = vadd.f32 %v2204, %v2301
      %v2400 = vadd.f32 %v2205, %v2303
      %v2401 = vadd.f32 %v2206, %v2305
      %v2402 = vadd.f32 %v2207, %v2307
      %v2403 = vadd.f32 %v2208, %v2309
      %v2404 = vadd.f32 %v2209, %v2311
      %v2405 = vadd.f32 %v2210, %v2313
      %v2406 = vadd.f32 %v2211, %v2315
      %v2407 = vadd.f32 %v2212, %v2317
      %v2408 = vadd.f32 %v2213, %v2319
      %v2409 = vadd.f32 %v2214, %v2321
      %v2410 = vadd.f32 %v2215, %v2323
      %v2411 = vadd.f32 %v2216, %v2325
      %v2412 = vadd.f32 %v2217, %v2327
      %v2413 = vadd.f32 %v2218, %v2329
      %v2414 = vadd.f32 %v2219, %v2331
      %v2415 = vadd.f32 %v2220, %v2333
      %v2416 = vadd.f32 %v2221, %v2335
      %v2417 = vadd.f32 %v2222, %v2337
      %v2418 = vadd.f32 %v2223, %v2339
      %v2419 = vadd.f32 %v2224, %v2341
      %v2420 = vadd.f32 %v2225, %v2343
      %v2421 = vadd.f32 %v2226, %v2345
      %v2422 = vadd.f32 %v2227, %v2347
      %v2423 = vadd.f32 %v2228, %v2349
      %v2424 = vadd.f32 %v2229, %v2351
      %v2425 = vadd.f32 %v2230, %v2353
      %v2426 = vadd.f32 %v2231, %v2355
      %v2427 = vadd.f32 %v2232, %v2357
      %v2428 = vadd.f32 %v2233, %v2359
      %v2429 = vadd.f32 %v2234, %v2361
      %v2430 = vadd.f32 %v2235, %v2363
      %v2431 = vadd.f32 %v2236, %v2365
      %v2432 = vadd.f32 %v2237, %v2367
      %v2433 = vadd.f32 %v2238, %v2369
      %v2434 = vsel %vm2241, %v2370, %v2175
      %v2435 = vsel %vm2241, %v2371, %v2176
      %v2436 = vsel %vm2241, %v2372, %v2177
      %v2437 = vsel %vm2241, %v2373, %v2178
      %v2438 = vsel %vm2241, %v2374, %v2179
      %v2439 = vsel %vm2241, %v2375, %v2180
      %v2440 = vsel %vm2241, %v2376, %v2181
      %v2441 = vsel %vm2241, %v2377, %v2182
      %v2442 = vsel %vm2241, %v2378, %v2183
      %v2443 = vsel %vm2241, %v2379, %v2184
      %v2444 = vsel %vm2241, %v2380, %v2185
      %v2445 = vsel %vm2241, %v2381, %v2186
      %v2446 = vsel %vm2241, %v2382, %v2187
      %v2447 = vsel %vm2241, %v2383, %v2188
      %v2448 = vsel %vm2241, %v2384, %v2189
      %v2449 = vsel %vm2241, %v2385, %v2190
      %v2450 = vsel %vm2241, %v2386, %v2191
      %v2451 = vsel %vm2241, %v2387, %v2192
      %v2452 = vsel %vm2241, %v2388, %v2193
      %v2453 = vsel %vm2241, %v2389, %v2194
      %v2454 = vsel %vm2241, %v2390, %v2195
      %v2455 = vsel %vm2241, %v2391, %v2196
      %v2456 = vsel %vm2241, %v2392, %v2197
      %v2457 = vsel %vm2241, %v2393, %v2198
      %v2458 = vsel %vm2241, %v2394, %v2199
      %v2459 = vsel %vm2241, %v2395, %v2200
      %v2460 = vsel %vm2241, %v2396, %v2201
      %v2461 = vsel %vm2241, %v2397, %v2202
      %v2462 = vsel %vm2241, %v2398, %v2203
      %v2463 = vsel %vm2241, %v2399, %v2204
      %v2464 = vsel %vm2241, %v2400, %v2205
      %v2465 = vsel %vm2241, %v2401, %v2206
      %v2466 = vsel %vm2241, %v2402, %v2207
      %v2467 = vsel %vm2241, %v2403, %v2208
      %v2468 = vsel %vm2241, %v2404, %v2209
      %v2469 = vsel %vm2241, %v2405, %v2210
      %v2470 = vsel %vm2241, %v2406, %v2211
      %v2471 = vsel %vm2241, %v2407, %v2212
      %v2472 = vsel %vm2241, %v2408, %v2213
      %v2473 = vsel %vm2241, %v2409, %v2214
      %v2474 = vsel %vm2241, %v2410, %v2215
      %v2475 = vsel %vm2241, %v2411, %v2216
      %v2476 = vsel %vm2241, %v2412, %v2217
      %v2477 = vsel %vm2241, %v2413, %v2218
      %v2478 = vsel %vm2241, %v2414, %v2219
      %v2479 = vsel %vm2241, %v2415, %v2220
      %v2480 = vsel %vm2241, %v2416, %v2221
      %v2481 = vsel %vm2241, %v2417, %v2222
      %v2482 = vsel %vm2241, %v2418, %v2223
      %v2483 = vsel %vm2241, %v2419, %v2224
      %v2484 = vsel %vm2241, %v2420, %v2225
      %v2485 = vsel %vm2241, %v2421, %v2226
      %v2486 = vsel %vm2241, %v2422, %v2227
      %v2487 = vsel %vm2241, %v2423, %v2228
      %v2488 = vsel %vm2241, %v2424, %v2229
      %v2489 = vsel %vm2241, %v2425, %v2230
      %v2490 = vsel %vm2241, %v2426, %v2231
      %v2491 = vsel %vm2241, %v2427, %v2232
      %v2492 = vsel %vm2241, %v2428, %v2233
      %v2493 = vsel %vm2241, %v2429, %v2234
      %v2494 = vsel %vm2241, %v2430, %v2235
      %v2495 = vsel %vm2241, %v2431, %v2236
      %v2496 = vsel %vm2241, %v2432, %v2237
      %v2497 = vsel %vm2241, %v2433, %v2238
      %v2498 = vpack.c.bf16 %v2435, %v2434
      %v2499 = vpack.c.bf16 %v2437, %v2436
      %v2500 = vpack.c.bf16 %v2439, %v2438
      %v2501 = vpack.c.bf16 %v2441, %v2440
      %v2502 = vpack.c.bf16 %v2443, %v2442
      %v2503 = vpack.c.bf16 %v2445, %v2444
      %v2504 = vpack.c.bf16 %v2447, %v2446
      %v2505 = vpack.c.bf16 %v2449, %v2448
      %v2506 = vpack.c.bf16 %v2451, %v2450
      %v2507 = vpack.c.bf16 %v2453, %v2452
      %v2508 = vpack.c.bf16 %v2455, %v2454
      %v2509 = vpack.c.bf16 %v2457, %v2456
      %v2510 = vpack.c.bf16 %v2459, %v2458
      %v2511 = vpack.c.bf16 %v2461, %v2460
      %v2512 = vpack.c.bf16 %v2463, %v2462
      %v2513 = vpack.c.bf16 %v2465, %v2464
      %v2514 = vpack.c.bf16 %v2467, %v2466
      %v2515 = vpack.c.bf16 %v2469, %v2468
      %v2516 = vpack.c.bf16 %v2471, %v2470
      %v2517 = vpack.c.bf16 %v2473, %v2472
      %v2518 = vpack.c.bf16 %v2475, %v2474
      %v2519 = vpack.c.bf16 %v2477, %v2476
      %v2520 = vpack.c.bf16 %v2479, %v2478
      %v2521 = vpack.c.bf16 %v2481, %v2480
      %v2522 = vpack.c.bf16 %v2483, %v2482
      %v2523 = vpack.c.bf16 %v2485, %v2484
      %v2524 = vpack.c.bf16 %v2487, %v2486
      %v2525 = vpack.c.bf16 %v2489, %v2488
      %v2526 = vpack.c.bf16 %v2491, %v2490
      %v2527 = vpack.c.bf16 %v2493, %v2492
      %v2528 = vpack.c.bf16 %v2495, %v2494
      %v2529 = vpack.c.bf16 %v2497, %v2496
      %v2530 = vld [vmem:[%s5] sm:$0xf]
      %v2531 = vld [vmem:[%s5 + $0x4] sm:$0xf]
      %v2532 = vld [vmem:[%s5 + $0x8] sm:$0xf]
      %v2533 = vld [vmem:[%s5 + $0xc] sm:$0xf]
      %v2534 = vld [vmem:[%s5 + $0x10] sm:$0xf]
      %v2535 = vld [vmem:[%s5 + $0x14] sm:$0xf]
      %v2536 = vld [vmem:[%s5 + $0x18] sm:$0xf]
      %v2537 = vld [vmem:[%s5 + $0x1c] sm:$0xf]
      %v2538 = vld [vmem:[%s5 + $0x20] sm:$0xf]
      %v2539 = vld [vmem:[%s5 + $0x24] sm:$0xf]
      %v2540 = vld [vmem:[%s5 + $0x28] sm:$0xf]
      %v2541 = vld [vmem:[%s5 + $0x2c] sm:$0xf]
      %v2542 = vld [vmem:[%s5 + $0x30] sm:$0xf]
      %v2543 = vld [vmem:[%s5 + $0x34] sm:$0xf]
      %v2544 = vld [vmem:[%s5 + $0x38] sm:$0xf]
      %v2545 = vld [vmem:[%s5 + $0x3c] sm:$0xf]
      %v2562 = vunpack.c.l.b16 %v2530
      %v2563 = vunpack.c.l.b16 %v2531
      %v2564 = vunpack.c.l.b16 %v2532
      %v2565 = vunpack.c.l.b16 %v2533
      %v2566 = vunpack.c.l.b16 %v2534
      %v2567 = vunpack.c.l.b16 %v2535
      %v2568 = vunpack.c.l.b16 %v2536
      %v2569 = vunpack.c.l.b16 %v2537
      %v2570 = vunpack.c.l.b16 %v2538
      %v2571 = vunpack.c.l.b16 %v2539
      %v2572 = vunpack.c.l.b16 %v2540
      %v2573 = vunpack.c.l.b16 %v2541
      %v2574 = vunpack.c.l.b16 %v2542
      %v2575 = vunpack.c.l.b16 %v2543
      %v2576 = vunpack.c.l.b16 %v2544
      %v2577 = vunpack.c.l.b16 %v2545
      %v2578 = vpack.c.b16 %v2563, %v2562
      %v2579 = vpack.c.b16 %v2565, %v2564
      %v2580 = vpack.c.b16 %v2567, %v2566
      %v2581 = vpack.c.b16 %v2569, %v2568
      %v2582 = vpack.c.b16 %v2571, %v2570
      %v2583 = vpack.c.b16 %v2573, %v2572
      %v2584 = vpack.c.b16 %v2575, %v2574
      %v2585 = vpack.c.b16 %v2577, %v2576
      %2594 = vmatpush.bf16.msra.mxu0 %v2585
      %2595 = vmatpush.bf16.msra.mxu0 %v2584
      %2596 = vmatpush.bf16.msra.mxu0 %v2583
      %2597 = vmatpush.bf16.msra.mxu0 %v2582
      %2598 = vmatpush.bf16.msra.mxu0 %v2581
      %2599 = vmatpush.bf16.msra.mxu0 %v2580
      %2600 = vmatpush.bf16.msra.mxu0 %v2579
      %2601 = vmatpush.bf16.msra.mxu0 %v2578
      %2602 = vmatmul.bf16.gmra.mxu0 %v2498
      %v2603 = vpop.f32.mrf.mxu0
      %v2604 = vadd.f32 0.0, %v2603
      %v2605 = vpop.f32.mrf.mxu0
      %v2606 = vadd.f32 0.0, %v2605
      %2607 = vmatmul.bf16.gmra.mxu0 %v2499
      %v2608 = vpop.f32.mrf.mxu0
      %v2609 = vadd.f32 0.0, %v2608
      %v2610 = vpop.f32.mrf.mxu0
      %v2611 = vadd.f32 0.0, %v2610
      %2612 = vmatmul.bf16.gmra.mxu0 %v2500
      %v2613 = vpop.f32.mrf.mxu0
      %v2614 = vadd.f32 0.0, %v2613
      %v2615 = vpop.f32.mrf.mxu0
      %v2616 = vadd.f32 0.0, %v2615
      %2617 = vmatmul.bf16.gmra.mxu0 %v2501
      %v2618 = vpop.f32.mrf.mxu0
      %v2619 = vadd.f32 0.0, %v2618
      %v2620 = vpop.f32.mrf.mxu0
      %v2621 = vadd.f32 0.0, %v2620
      %2622 = vmatmul.bf16.gmra.mxu0 %v2502
      %v2623 = vpop.f32.mrf.mxu0
      %v2624 = vadd.f32 0.0, %v2623
      %v2625 = vpop.f32.mrf.mxu0
      %v2626 = vadd.f32 0.0, %v2625
      %2627 = vmatmul.bf16.gmra.mxu0 %v2503
      %v2628 = vpop.f32.mrf.mxu0
      %v2629 = vadd.f32 0.0, %v2628
      %v2630 = vpop.f32.mrf.mxu0
      %v2631 = vadd.f32 0.0, %v2630
      %2632 = vmatmul.bf16.gmra.mxu0 %v2504
      %v2633 = vpop.f32.mrf.mxu0
      %v2634 = vadd.f32 0.0, %v2633
      %v2635 = vpop.f32.mrf.mxu0
      %v2636 = vadd.f32 0.0, %v2635
      %2637 = vmatmul.bf16.gmra.mxu0 %v2505
      %v2638 = vpop.f32.mrf.mxu0
      %v2639 = vadd.f32 0.0, %v2638
      %v2640 = vpop.f32.mrf.mxu0
      %v2641 = vadd.f32 0.0, %v2640
      %2642 = vmatmul.bf16.gmra.mxu0 %v2506
      %v2643 = vpop.f32.mrf.mxu0
      %v2644 = vadd.f32 0.0, %v2643
      %v2645 = vpop.f32.mrf.mxu0
      %v2646 = vadd.f32 0.0, %v2645
      %2647 = vmatmul.bf16.gmra.mxu0 %v2507
      %v2648 = vpop.f32.mrf.mxu0
      %v2649 = vadd.f32 0.0, %v2648
      %v2650 = vpop.f32.mrf.mxu0
      %v2651 = vadd.f32 0.0, %v2650
      %2652 = vmatmul.bf16.gmra.mxu0 %v2508
      %v2653 = vpop.f32.mrf.mxu0
      %v2654 = vadd.f32 0.0, %v2653
      %v2655 = vpop.f32.mrf.mxu0
      %v2656 = vadd.f32 0.0, %v2655
      %2657 = vmatmul.bf16.gmra.mxu0 %v2509
      %v2658 = vpop.f32.mrf.mxu0
      %v2659 = vadd.f32 0.0, %v2658
      %v2660 = vpop.f32.mrf.mxu0
      %v2661 = vadd.f32 0.0, %v2660
      %2662 = vmatmul.bf16.gmra.mxu0 %v2510
      %v2663 = vpop.f32.mrf.mxu0
      %v2664 = vadd.f32 0.0, %v2663
      %v2665 = vpop.f32.mrf.mxu0
      %v2666 = vadd.f32 0.0, %v2665
      %2667 = vmatmul.bf16.gmra.mxu0 %v2511
      %v2668 = vpop.f32.mrf.mxu0
      %v2669 = vadd.f32 0.0, %v2668
      %v2670 = vpop.f32.mrf.mxu0
      %v2671 = vadd.f32 0.0, %v2670
      %2672 = vmatmul.bf16.gmra.mxu0 %v2512
      %v2673 = vpop.f32.mrf.mxu0
      %v2674 = vadd.f32 0.0, %v2673
      %v2675 = vpop.f32.mrf.mxu0
      %v2676 = vadd.f32 0.0, %v2675
      %2677 = vmatmul.bf16.gmra.mxu0 %v2513
      %v2678 = vpop.f32.mrf.mxu0
      %v2679 = vadd.f32 0.0, %v2678
      %v2680 = vpop.f32.mrf.mxu0
      %v2681 = vadd.f32 0.0, %v2680
      %2682 = vmatmul.bf16.gmra.mxu0 %v2514
      %v2683 = vpop.f32.mrf.mxu0
      %v2684 = vadd.f32 0.0, %v2683
      %v2685 = vpop.f32.mrf.mxu0
      %v2686 = vadd.f32 0.0, %v2685
      %2687 = vmatmul.bf16.gmra.mxu0 %v2515
      %v2688 = vpop.f32.mrf.mxu0
      %v2689 = vadd.f32 0.0, %v2688
      %v2690 = vpop.f32.mrf.mxu0
      %v2691 = vadd.f32 0.0, %v2690
      %2692 = vmatmul.bf16.gmra.mxu0 %v2516
      %v2693 = vpop.f32.mrf.mxu0
      %v2694 = vadd.f32 0.0, %v2693
      %v2695 = vpop.f32.mrf.mxu0
      %v2696 = vadd.f32 0.0, %v2695
      %2697 = vmatmul.bf16.gmra.mxu0 %v2517
      %v2698 = vpop.f32.mrf.mxu0
      %v2699 = vadd.f32 0.0, %v2698
      %v2700 = vpop.f32.mrf.mxu0
      %v2701 = vadd.f32 0.0, %v2700
      %2702 = vmatmul.bf16.gmra.mxu0 %v2518
      %v2703 = vpop.f32.mrf.mxu0
      %v2704 = vadd.f32 0.0, %v2703
      %v2705 = vpop.f32.mrf.mxu0
      %v2706 = vadd.f32 0.0, %v2705
      %2707 = vmatmul.bf16.gmra.mxu0 %v2519
      %v2708 = vpop.f32.mrf.mxu0
      %v2709 = vadd.f32 0.0, %v2708
      %v2710 = vpop.f32.mrf.mxu0
      %v2711 = vadd.f32 0.0, %v2710
      %2712 = vmatmul.bf16.gmra.mxu0 %v2520
      %v2713 = vpop.f32.mrf.mxu0
      %v2714 = vadd.f32 0.0, %v2713
      %v2715 = vpop.f32.mrf.mxu0
      %v2716 = vadd.f32 0.0, %v2715
      %2717 = vmatmul.bf16.gmra.mxu0 %v2521
      %v2718 = vpop.f32.mrf.mxu0
      %v2719 = vadd.f32 0.0, %v2718
      %v2720 = vpop.f32.mrf.mxu0
      %v2721 = vadd.f32 0.0, %v2720
      %2722 = vmatmul.bf16.gmra.mxu0 %v2522
      %v2723 = vpop.f32.mrf.mxu0
      %v2724 = vadd.f32 0.0, %v2723
      %v2725 = vpop.f32.mrf.mxu0
      %v2726 = vadd.f32 0.0, %v2725
      %2727 = vmatmul.bf16.gmra.mxu0 %v2523
      %v2728 = vpop.f32.mrf.mxu0
      %v2729 = vadd.f32 0.0, %v2728
      %v2730 = vpop.f32.mrf.mxu0
      %v2731 = vadd.f32 0.0, %v2730
      %2732 = vmatmul.bf16.gmra.mxu0 %v2524
      %v2733 = vpop.f32.mrf.mxu0
      %v2734 = vadd.f32 0.0, %v2733
      %v2735 = vpop.f32.mrf.mxu0
      %v2736 = vadd.f32 0.0, %v2735
      %2737 = vmatmul.bf16.gmra.mxu0 %v2525
      %v2738 = vpop.f32.mrf.mxu0
      %v2739 = vadd.f32 0.0, %v2738
      %v2740 = vpop.f32.mrf.mxu0
      %v2741 = vadd.f32 0.0, %v2740
      %2742 = vmatmul.bf16.gmra.mxu0 %v2526
      %v2743 = vpop.f32.mrf.mxu0
      %v2744 = vadd.f32 0.0, %v2743
      %v2745 = vpop.f32.mrf.mxu0
      %v2746 = vadd.f32 0.0, %v2745
      %2747 = vmatmul.bf16.gmra.mxu0 %v2527
      %v2748 = vpop.f32.mrf.mxu0
      %v2749 = vadd.f32 0.0, %v2748
      %v2750 = vpop.f32.mrf.mxu0
      %v2751 = vadd.f32 0.0, %v2750
      %2752 = vmatmul.bf16.gmra.mxu0 %v2528
      %v2753 = vpop.f32.mrf.mxu0
      %v2754 = vadd.f32 0.0, %v2753
      %v2755 = vpop.f32.mrf.mxu0
      %v2756 = vadd.f32 0.0, %v2755
      %2757 = vmatmul.bf16.gmra.mxu0 %v2529
      %v2758 = vpop.f32.mrf.mxu0
      %v2759 = vadd.f32 0.0, %v2758
      %v2760 = vpop.f32.mrf.mxu0
      %v2761 = vadd.f32 0.0, %v2760
      %2762 = vdwg.mxu0
      %v2763 = vmax.f32 %v2604, 0.0
      %v2764 = vmax.f32 %v2606, 0.0
      %v2765 = vmax.f32 %v2609, 0.0
      %v2766 = vmax.f32 %v2611, 0.0
      %v2767 = vmax.f32 %v2614, 0.0
      %v2768 = vmax.f32 %v2616, 0.0
      %v2769 = vmax.f32 %v2619, 0.0
      %v2770 = vmax.f32 %v2621, 0.0
      %v2771 = vmax.f32 %v2624, 0.0
      %v2772 = vmax.f32 %v2626, 0.0
      %v2773 = vmax.f32 %v2629, 0.0
      %v2774 = vmax.f32 %v2631, 0.0
      %v2775 = vmax.f32 %v2634, 0.0
      %v2776 = vmax.f32 %v2636, 0.0
      %v2777 = vmax.f32 %v2639, 0.0
      %v2778 = vmax.f32 %v2641, 0.0
      %v2779 = vmax.f32 %v2644, 0.0
      %v2780 = vmax.f32 %v2646, 0.0
      %v2781 = vmax.f32 %v2649, 0.0
      %v2782 = vmax.f32 %v2651, 0.0
      %v2783 = vmax.f32 %v2654, 0.0
      %v2784 = vmax.f32 %v2656, 0.0
      %v2785 = vmax.f32 %v2659, 0.0
      %v2786 = vmax.f32 %v2661, 0.0
      %v2787 = vmax.f32 %v2664, 0.0
      %v2788 = vmax.f32 %v2666, 0.0
      %v2789 = vmax.f32 %v2669, 0.0
      %v2790 = vmax.f32 %v2671, 0.0
      %v2791 = vmax.f32 %v2674, 0.0
      %v2792 = vmax.f32 %v2676, 0.0
      %v2793 = vmax.f32 %v2679, 0.0
      %v2794 = vmax.f32 %v2681, 0.0
      %v2795 = vmax.f32 %v2684, 0.0
      %v2796 = vmax.f32 %v2686, 0.0
      %v2797 = vmax.f32 %v2689, 0.0
      %v2798 = vmax.f32 %v2691, 0.0
      %v2799 = vmax.f32 %v2694, 0.0
      %v2800 = vmax.f32 %v2696, 0.0
      %v2801 = vmax.f32 %v2699, 0.0
      %v2802 = vmax.f32 %v2701, 0.0
      %v2803 = vmax.f32 %v2704, 0.0
      %v2804 = vmax.f32 %v2706, 0.0
      %v2805 = vmax.f32 %v2709, 0.0
      %v2806 = vmax.f32 %v2711, 0.0
      %v2807 = vmax.f32 %v2714, 0.0
      %v2808 = vmax.f32 %v2716, 0.0
      %v2809 = vmax.f32 %v2719, 0.0
      %v2810 = vmax.f32 %v2721, 0.0
      %v2811 = vmax.f32 %v2724, 0.0
      %v2812 = vmax.f32 %v2726, 0.0
      %v2813 = vmax.f32 %v2729, 0.0
      %v2814 = vmax.f32 %v2731, 0.0
      %v2815 = vmax.f32 %v2734, 0.0
      %v2816 = vmax.f32 %v2736, 0.0
      %v2817 = vmax.f32 %v2739, 0.0
      %v2818 = vmax.f32 %v2741, 0.0
      %v2819 = vmax.f32 %v2744, 0.0
      %v2820 = vmax.f32 %v2746, 0.0
      %v2821 = vmax.f32 %v2749, 0.0
      %v2822 = vmax.f32 %v2751, 0.0
      %v2823 = vmax.f32 %v2754, 0.0
      %v2824 = vmax.f32 %v2756, 0.0
      %v2825 = vmax.f32 %v2759, 0.0
      %v2826 = vmax.f32 %v2761, 0.0
      %v2827 = vsel %vm2241, %v2763, %v2604
      %v2828 = vsel %vm2241, %v2764, %v2606
      %v2829 = vsel %vm2241, %v2765, %v2609
      %v2830 = vsel %vm2241, %v2766, %v2611
      %v2831 = vsel %vm2241, %v2767, %v2614
      %v2832 = vsel %vm2241, %v2768, %v2616
      %v2833 = vsel %vm2241, %v2769, %v2619
      %v2834 = vsel %vm2241, %v2770, %v2621
      %v2835 = vsel %vm2241, %v2771, %v2624
      %v2836 = vsel %vm2241, %v2772, %v2626
      %v2837 = vsel %vm2241, %v2773, %v2629
      %v2838 = vsel %vm2241, %v2774, %v2631
      %v2839 = vsel %vm2241, %v2775, %v2634
      %v2840 = vsel %vm2241, %v2776, %v2636
      %v2841 = vsel %vm2241, %v2777, %v2639
      %v2842 = vsel %vm2241, %v2778, %v2641
      %v2843 = vsel %vm2241, %v2779, %v2644
      %v2844 = vsel %vm2241, %v2780, %v2646
      %v2845 = vsel %vm2241, %v2781, %v2649
      %v2846 = vsel %vm2241, %v2782, %v2651
      %v2847 = vsel %vm2241, %v2783, %v2654
      %v2848 = vsel %vm2241, %v2784, %v2656
      %v2849 = vsel %vm2241, %v2785, %v2659
      %v2850 = vsel %vm2241, %v2786, %v2661
      %v2851 = vsel %vm2241, %v2787, %v2664
      %v2852 = vsel %vm2241, %v2788, %v2666
      %v2853 = vsel %vm2241, %v2789, %v2669
      %v2854 = vsel %vm2241, %v2790, %v2671
      %v2855 = vsel %vm2241, %v2791, %v2674
      %v2856 = vsel %vm2241, %v2792, %v2676
      %v2857 = vsel %vm2241, %v2793, %v2679
      %v2858 = vsel %vm2241, %v2794, %v2681
      %v2859 = vsel %vm2241, %v2795, %v2684
      %v2860 = vsel %vm2241, %v2796, %v2686
      %v2861 = vsel %vm2241, %v2797, %v2689
      %v2862 = vsel %vm2241, %v2798, %v2691
      %v2863 = vsel %vm2241, %v2799, %v2694
      %v2864 = vsel %vm2241, %v2800, %v2696
      %v2865 = vsel %vm2241, %v2801, %v2699
      %v2866 = vsel %vm2241, %v2802, %v2701
      %v2867 = vsel %vm2241, %v2803, %v2704
      %v2868 = vsel %vm2241, %v2804, %v2706
      %v2869 = vsel %vm2241, %v2805, %v2709
      %v2870 = vsel %vm2241, %v2806, %v2711
      %v2871 = vsel %vm2241, %v2807, %v2714
      %v2872 = vsel %vm2241, %v2808, %v2716
      %v2873 = vsel %vm2241, %v2809, %v2719
      %v2874 = vsel %vm2241, %v2810, %v2721
      %v2875 = vsel %vm2241, %v2811, %v2724
      %v2876 = vsel %vm2241, %v2812, %v2726
      %v2877 = vsel %vm2241, %v2813, %v2729
      %v2878 = vsel %vm2241, %v2814, %v2731
      %v2879 = vsel %vm2241, %v2815, %v2734
      %v2880 = vsel %vm2241, %v2816, %v2736
      %v2881 = vsel %vm2241, %v2817, %v2739
      %v2882 = vsel %vm2241, %v2818, %v2741
      %v2883 = vsel %vm2241, %v2819, %v2744
      %v2884 = vsel %vm2241, %v2820, %v2746
      %v2885 = vsel %vm2241, %v2821, %v2749
      %v2886 = vsel %vm2241, %v2822, %v2751
      %v2887 = vsel %vm2241, %v2823, %v2754
      %v2888 = vsel %vm2241, %v2824, %v2756
      %v2889 = vsel %vm2241, %v2825, %v2759
      %v2890 = vsel %vm2241, %v2826, %v2761
      %2891 = vrot.lane.b32.xlu0 %v2827, 64
      %v2892 = vpop.permute.xlu0 %2891
      %2893 = vrot.lane.b32.xlu0 %v2828, 64
      %v2894 = vpop.permute.xlu0 %2893
      %2895 = vrot.lane.b32.xlu0 %v2829, 64
      %v2896 = vpop.permute.xlu0 %2895
      %2897 = vrot.lane.b32.xlu0 %v2830, 64
      %v2898 = vpop.permute.xlu0 %2897
      %2899 = vrot.lane.b32.xlu0 %v2831, 64
      %v2900 = vpop.permute.xlu0 %2899
      %2901 = vrot.lane.b32.xlu0 %v2832, 64
      %v2902 = vpop.permute.xlu0 %2901
      %2903 = vrot.lane.b32.xlu0 %v2833, 64
      %v2904 = vpop.permute.xlu0 %2903
      %2905 = vrot.lane.b32.xlu0 %v2834, 64
      %v2906 = vpop.permute.xlu0 %2905
      %2907 = vrot.lane.b32.xlu0 %v2835, 64
      %v2908 = vpop.permute.xlu0 %2907
      %2909 = vrot.lane.b32.xlu0 %v2836, 64
      %v2910 = vpop.permute.xlu0 %2909
      %2911 = vrot.lane.b32.xlu0 %v2837, 64
      %v2912 = vpop.permute.xlu0 %2911
      %2913 = vrot.lane.b32.xlu0 %v2838, 64
      %v2914 = vpop.permute.xlu0 %2913
      %2915 = vrot.lane.b32.xlu0 %v2839, 64
      %v2916 = vpop.permute.xlu0 %2915
      %2917 = vrot.lane.b32.xlu0 %v2840, 64
      %v2918 = vpop.permute.xlu0 %2917
      %2919 = vrot.lane.b32.xlu0 %v2841, 64
      %v2920 = vpop.permute.xlu0 %2919
      %2921 = vrot.lane.b32.xlu0 %v2842, 64
      %v2922 = vpop.permute.xlu0 %2921
      %2923 = vrot.lane.b32.xlu0 %v2843, 64
      %v2924 = vpop.permute.xlu0 %2923
      %2925 = vrot.lane.b32.xlu0 %v2844, 64
      %v2926 = vpop.permute.xlu0 %2925
      %2927 = vrot.lane.b32.xlu0 %v2845, 64
      %v2928 = vpop.permute.xlu0 %2927
      %2929 = vrot.lane.b32.xlu0 %v2846, 64
      %v2930 = vpop.permute.xlu0 %2929
      %2931 = vrot.lane.b32.xlu0 %v2847, 64
      %v2932 = vpop.permute.xlu0 %2931
      %2933 = vrot.lane.b32.xlu0 %v2848, 64
      %v2934 = vpop.permute.xlu0 %2933
      %2935 = vrot.lane.b32.xlu0 %v2849, 64
      %v2936 = vpop.permute.xlu0 %2935
      %2937 = vrot.lane.b32.xlu0 %v2850, 64
      %v2938 = vpop.permute.xlu0 %2937
      %2939 = vrot.lane.b32.xlu0 %v2851, 64
      %v2940 = vpop.permute.xlu0 %2939
      %2941 = vrot.lane.b32.xlu0 %v2852, 64
      %v2942 = vpop.permute.xlu0 %2941
      %2943 = vrot.lane.b32.xlu0 %v2853, 64
      %v2944 = vpop.permute.xlu0 %2943
      %2945 = vrot.lane.b32.xlu0 %v2854, 64
      %v2946 = vpop.permute.xlu0 %2945
      %2947 = vrot.lane.b32.xlu0 %v2855, 64
      %v2948 = vpop.permute.xlu0 %2947
      %2949 = vrot.lane.b32.xlu0 %v2856, 64
      %v2950 = vpop.permute.xlu0 %2949
      %2951 = vrot.lane.b32.xlu0 %v2857, 64
      %v2952 = vpop.permute.xlu0 %2951
      %2953 = vrot.lane.b32.xlu0 %v2858, 64
      %v2954 = vpop.permute.xlu0 %2953
      %2955 = vrot.lane.b32.xlu0 %v2859, 64
      %v2956 = vpop.permute.xlu0 %2955
      %2957 = vrot.lane.b32.xlu0 %v2860, 64
      %v2958 = vpop.permute.xlu0 %2957
      %2959 = vrot.lane.b32.xlu0 %v2861, 64
      %v2960 = vpop.permute.xlu0 %2959
      %2961 = vrot.lane.b32.xlu0 %v2862, 64
      %v2962 = vpop.permute.xlu0 %2961
      %2963 = vrot.lane.b32.xlu0 %v2863, 64
      %v2964 = vpop.permute.xlu0 %2963
      %2965 = vrot.lane.b32.xlu0 %v2864, 64
      %v2966 = vpop.permute.xlu0 %2965
      %2967 = vrot.lane.b32.xlu0 %v2865, 64
      %v2968 = vpop.permute.xlu0 %2967
      %2969 = vrot.lane.b32.xlu0 %v2866, 64
      %v2970 = vpop.permute.xlu0 %2969
      %2971 = vrot.lane.b32.xlu0 %v2867, 64
      %v2972 = vpop.permute.xlu0 %2971
      %2973 = vrot.lane.b32.xlu0 %v2868, 64
      %v2974 = vpop.permute.xlu0 %2973
      %2975 = vrot.lane.b32.xlu0 %v2869, 64
      %v2976 = vpop.permute.xlu0 %2975
      %2977 = vrot.lane.b32.xlu0 %v2870, 64
      %v2978 = vpop.permute.xlu0 %2977
      %2979 = vrot.lane.b32.xlu0 %v2871, 64
      %v2980 = vpop.permute.xlu0 %2979
      %2981 = vrot.lane.b32.xlu0 %v2872, 64
      %v2982 = vpop.permute.xlu0 %2981
      %2983 = vrot.lane.b32.xlu0 %v2873, 64
      %v2984 = vpop.permute.xlu0 %2983
      %2985 = vrot.lane.b32.xlu0 %v2874, 64
      %v2986 = vpop.permute.xlu0 %2985
      %2987 = vrot.lane.b32.xlu0 %v2875, 64
      %v2988 = vpop.permute.xlu0 %2987
      %2989 = vrot.lane.b32.xlu0 %v2876, 64
      %v2990 = vpop.permute.xlu0 %2989
      %2991 = vrot.lane.b32.xlu0 %v2877, 64
      %v2992 = vpop.permute.xlu0 %2991
      %2993 = vrot.lane.b32.xlu0 %v2878, 64
      %v2994 = vpop.permute.xlu0 %2993
      %2995 = vrot.lane.b32.xlu0 %v2879, 64
      %v2996 = vpop.permute.xlu0 %2995
      %2997 = vrot.lane.b32.xlu0 %v2880, 64
      %v2998 = vpop.permute.xlu0 %2997
      %2999 = vrot.lane.b32.xlu0 %v2881, 64
      %v3000 = vpop.permute.xlu0 %2999
      %3001 = vrot.lane.b32.xlu0 %v2882, 64
      %v3002 = vpop.permute.xlu0 %3001
      %3003 = vrot.lane.b32.xlu0 %v2883, 64
      %v3004 = vpop.permute.xlu0 %3003
      %3005 = vrot.lane.b32.xlu0 %v2884, 64
      %v3006 = vpop.permute.xlu0 %3005
      %3007 = vrot.lane.b32.xlu0 %v2885, 64
      %v3008 = vpop.permute.xlu0 %3007
      %3009 = vrot.lane.b32.xlu0 %v2886, 64
      %v3010 = vpop.permute.xlu0 %3009
      %3011 = vrot.lane.b32.xlu0 %v2887, 64
      %v3012 = vpop.permute.xlu0 %3011
      %3013 = vrot.lane.b32.xlu0 %v2888, 64
      %v3014 = vpop.permute.xlu0 %3013
      %3015 = vrot.lane.b32.xlu0 %v2889, 64
      %v3016 = vpop.permute.xlu0 %3015
      %3017 = vrot.lane.b32.xlu0 %v2890, 64
      %v3018 = vpop.permute.xlu0 %3017
      %v3019 = vmul.f32 %v2827, %v2892
      %v3020 = vmul.f32 %v2828, %v2894
      %v3021 = vmul.f32 %v2829, %v2896
      %v3022 = vmul.f32 %v2830, %v2898
      %v3023 = vmul.f32 %v2831, %v2900
      %v3024 = vmul.f32 %v2832, %v2902
      %v3025 = vmul.f32 %v2833, %v2904
      %v3026 = vmul.f32 %v2834, %v2906
      %v3027 = vmul.f32 %v2835, %v2908
      %v3028 = vmul.f32 %v2836, %v2910
      %v3029 = vmul.f32 %v2837, %v2912
      %v3030 = vmul.f32 %v2838, %v2914
      %v3031 = vmul.f32 %v2839, %v2916
      %v3032 = vmul.f32 %v2840, %v2918
      %v3033 = vmul.f32 %v2841, %v2920
      %v3034 = vmul.f32 %v2842, %v2922
      %v3035 = vmul.f32 %v2843, %v2924
      %v3036 = vmul.f32 %v2844, %v2926
      %v3037 = vmul.f32 %v2845, %v2928
      %v3038 = vmul.f32 %v2846, %v2930
      %v3039 = vmul.f32 %v2847, %v2932
      %v3040 = vmul.f32 %v2848, %v2934
      %v3041 = vmul.f32 %v2849, %v2936
      %v3042 = vmul.f32 %v2850, %v2938
      %v3043 = vmul.f32 %v2851, %v2940
      %v3044 = vmul.f32 %v2852, %v2942
      %v3045 = vmul.f32 %v2853, %v2944
      %v3046 = vmul.f32 %v2854, %v2946
      %v3047 = vmul.f32 %v2855, %v2948
      %v3048 = vmul.f32 %v2856, %v2950
      %v3049 = vmul.f32 %v2857, %v2952
      %v3050 = vmul.f32 %v2858, %v2954
      %v3051 = vmul.f32 %v2859, %v2956
      %v3052 = vmul.f32 %v2860, %v2958
      %v3053 = vmul.f32 %v2861, %v2960
      %v3054 = vmul.f32 %v2862, %v2962
      %v3055 = vmul.f32 %v2863, %v2964
      %v3056 = vmul.f32 %v2864, %v2966
      %v3057 = vmul.f32 %v2865, %v2968
      %v3058 = vmul.f32 %v2866, %v2970
      %v3059 = vmul.f32 %v2867, %v2972
      %v3060 = vmul.f32 %v2868, %v2974
      %v3061 = vmul.f32 %v2869, %v2976
      %v3062 = vmul.f32 %v2870, %v2978
      %v3063 = vmul.f32 %v2871, %v2980
      %v3064 = vmul.f32 %v2872, %v2982
      %v3065 = vmul.f32 %v2873, %v2984
      %v3066 = vmul.f32 %v2874, %v2986
      %v3067 = vmul.f32 %v2875, %v2988
      %v3068 = vmul.f32 %v2876, %v2990
      %v3069 = vmul.f32 %v2877, %v2992
      %v3070 = vmul.f32 %v2878, %v2994
      %v3071 = vmul.f32 %v2879, %v2996
      %v3072 = vmul.f32 %v2880, %v2998
      %v3073 = vmul.f32 %v2881, %v3000
      %v3074 = vmul.f32 %v2882, %v3002
      %v3075 = vmul.f32 %v2883, %v3004
      %v3076 = vmul.f32 %v2884, %v3006
      %v3077 = vmul.f32 %v2885, %v3008
      %v3078 = vmul.f32 %v2886, %v3010
      %v3079 = vmul.f32 %v2887, %v3012
      %v3080 = vmul.f32 %v2888, %v3014
      %v3081 = vmul.f32 %v2889, %v3016
      %v3082 = vmul.f32 %v2890, %v3018
      %v3083 = vpack.c.bf16 %v3020, %v3019
      %v3084 = vpack.c.bf16 %v3022, %v3021
      %v3085 = vpack.c.bf16 %v3024, %v3023
      %v3086 = vpack.c.bf16 %v3026, %v3025
      %v3087 = vpack.c.bf16 %v3028, %v3027
      %v3088 = vpack.c.bf16 %v3030, %v3029
      %v3089 = vpack.c.bf16 %v3032, %v3031
      %v3090 = vpack.c.bf16 %v3034, %v3033
      %v3091 = vpack.c.bf16 %v3036, %v3035
      %v3092 = vpack.c.bf16 %v3038, %v3037
      %v3093 = vpack.c.bf16 %v3040, %v3039
      %v3094 = vpack.c.bf16 %v3042, %v3041
      %v3095 = vpack.c.bf16 %v3044, %v3043
      %v3096 = vpack.c.bf16 %v3046, %v3045
      %v3097 = vpack.c.bf16 %v3048, %v3047
      %v3098 = vpack.c.bf16 %v3050, %v3049
      %v3099 = vpack.c.bf16 %v3052, %v3051
      %v3100 = vpack.c.bf16 %v3054, %v3053
      %v3101 = vpack.c.bf16 %v3056, %v3055
      %v3102 = vpack.c.bf16 %v3058, %v3057
      %v3103 = vpack.c.bf16 %v3060, %v3059
      %v3104 = vpack.c.bf16 %v3062, %v3061
      %v3105 = vpack.c.bf16 %v3064, %v3063
      %v3106 = vpack.c.bf16 %v3066, %v3065
      %v3107 = vpack.c.bf16 %v3068, %v3067
      %v3108 = vpack.c.bf16 %v3070, %v3069
      %v3109 = vpack.c.bf16 %v3072, %v3071
      %v3110 = vpack.c.bf16 %v3074, %v3073
      %v3111 = vpack.c.bf16 %v3076, %v3075
      %v3112 = vpack.c.bf16 %v3078, %v3077
      %v3113 = vpack.c.bf16 %v3080, %v3079
      %v3114 = vpack.c.bf16 %v3082, %v3081
      %v3115 = vld [vmem:[%s6] sm:$0xf]
      %v3116 = vld [vmem:[%s6 + $0x4] sm:$0xf]
      %v3117 = vld [vmem:[%s6 + $0x8] sm:$0xf]
      %v3118 = vld [vmem:[%s6 + $0xc] sm:$0xf]
      %v3119 = vld [vmem:[%s6 + $0x10] sm:$0xf]
      %v3120 = vld [vmem:[%s6 + $0x14] sm:$0xf]
      %v3121 = vld [vmem:[%s6 + $0x18] sm:$0xf]
      %v3122 = vld [vmem:[%s6 + $0x1c] sm:$0xf]
      %v3123 = vld [vmem:[%s6 + $0x20] sm:$0xf]
      %v3124 = vld [vmem:[%s6 + $0x24] sm:$0xf]
      %v3125 = vld [vmem:[%s6 + $0x28] sm:$0xf]
      %v3126 = vld [vmem:[%s6 + $0x2c] sm:$0xf]
      %v3127 = vld [vmem:[%s6 + $0x30] sm:$0xf]
      %v3128 = vld [vmem:[%s6 + $0x34] sm:$0xf]
      %v3129 = vld [vmem:[%s6 + $0x38] sm:$0xf]
      %v3130 = vld [vmem:[%s6 + $0x3c] sm:$0xf]
      %v3147 = vunpack.c.l.b16 %v3115
      %v3148 = vunpack.c.l.b16 %v3116
      %v3149 = vunpack.c.l.b16 %v3117
      %v3150 = vunpack.c.l.b16 %v3118
      %v3151 = vunpack.c.l.b16 %v3119
      %v3152 = vunpack.c.l.b16 %v3120
      %v3153 = vunpack.c.l.b16 %v3121
      %v3154 = vunpack.c.l.b16 %v3122
      %v3155 = vunpack.c.l.b16 %v3123
      %v3156 = vunpack.c.l.b16 %v3124
      %v3157 = vunpack.c.l.b16 %v3125
      %v3158 = vunpack.c.l.b16 %v3126
      %v3159 = vunpack.c.l.b16 %v3127
      %v3160 = vunpack.c.l.b16 %v3128
      %v3161 = vunpack.c.l.b16 %v3129
      %v3162 = vunpack.c.l.b16 %v3130
      %v3163 = vpack.c.b16 %v3148, %v3147
      %v3164 = vpack.c.b16 %v3150, %v3149
      %v3165 = vpack.c.b16 %v3152, %v3151
      %v3166 = vpack.c.b16 %v3154, %v3153
      %v3167 = vpack.c.b16 %v3156, %v3155
      %v3168 = vpack.c.b16 %v3158, %v3157
      %v3169 = vpack.c.b16 %v3160, %v3159
      %v3170 = vpack.c.b16 %v3162, %v3161
      %3179 = vmatpush.bf16.msra.mxu0 %v3170
      %3180 = vmatpush.bf16.msra.mxu0 %v3169
      %3181 = vmatpush.bf16.msra.mxu0 %v3168
      %3182 = vmatpush.bf16.msra.mxu0 %v3167
      %3183 = vmatpush.bf16.msra.mxu0 %v3166
      %3184 = vmatpush.bf16.msra.mxu0 %v3165
      %3185 = vmatpush.bf16.msra.mxu0 %v3164
      %3186 = vmatpush.bf16.msra.mxu0 %v3163
      %3187 = vmatmul.bf16.gmra.mxu0 %v3083
      %v3188 = vpop.f32.mrf.mxu0
      %v3189 = vadd.f32 0.0, %v3188
      %v3190 = vpop.f32.mrf.mxu0
      %v3191 = vadd.f32 0.0, %v3190
      %3192 = vmatmul.bf16.gmra.mxu0 %v3084
      %v3193 = vpop.f32.mrf.mxu0
      %v3194 = vadd.f32 0.0, %v3193
      %v3195 = vpop.f32.mrf.mxu0
      %v3196 = vadd.f32 0.0, %v3195
      %3197 = vmatmul.bf16.gmra.mxu0 %v3085
      %v3198 = vpop.f32.mrf.mxu0
      %v3199 = vadd.f32 0.0, %v3198
      %v3200 = vpop.f32.mrf.mxu0
      %v3201 = vadd.f32 0.0, %v3200
      %3202 = vmatmul.bf16.gmra.mxu0 %v3086
      %v3203 = vpop.f32.mrf.mxu0
      %v3204 = vadd.f32 0.0, %v3203
      %v3205 = vpop.f32.mrf.mxu0
      %v3206 = vadd.f32 0.0, %v3205
      %3207 = vmatmul.bf16.gmra.mxu0 %v3087
      %v3208 = vpop.f32.mrf.mxu0
      %v3209 = vadd.f32 0.0, %v3208
      %v3210 = vpop.f32.mrf.mxu0
      %v3211 = vadd.f32 0.0, %v3210
      %3212 = vmatmul.bf16.gmra.mxu0 %v3088
      %v3213 = vpop.f32.mrf.mxu0
      %v3214 = vadd.f32 0.0, %v3213
      %v3215 = vpop.f32.mrf.mxu0
      %v3216 = vadd.f32 0.0, %v3215
      %3217 = vmatmul.bf16.gmra.mxu0 %v3089
      %v3218 = vpop.f32.mrf.mxu0
      %v3219 = vadd.f32 0.0, %v3218
      %v3220 = vpop.f32.mrf.mxu0
      %v3221 = vadd.f32 0.0, %v3220
      %3222 = vmatmul.bf16.gmra.mxu0 %v3090
      %v3223 = vpop.f32.mrf.mxu0
      %v3224 = vadd.f32 0.0, %v3223
      %v3225 = vpop.f32.mrf.mxu0
      %v3226 = vadd.f32 0.0, %v3225
      %3227 = vmatmul.bf16.gmra.mxu0 %v3091
      %v3228 = vpop.f32.mrf.mxu0
      %v3229 = vadd.f32 0.0, %v3228
      %v3230 = vpop.f32.mrf.mxu0
      %v3231 = vadd.f32 0.0, %v3230
      %3232 = vmatmul.bf16.gmra.mxu0 %v3092
      %v3233 = vpop.f32.mrf.mxu0
      %v3234 = vadd.f32 0.0, %v3233
      %v3235 = vpop.f32.mrf.mxu0
      %v3236 = vadd.f32 0.0, %v3235
      %3237 = vmatmul.bf16.gmra.mxu0 %v3093
      %v3238 = vpop.f32.mrf.mxu0
      %v3239 = vadd.f32 0.0, %v3238
      %v3240 = vpop.f32.mrf.mxu0
      %v3241 = vadd.f32 0.0, %v3240
      %3242 = vmatmul.bf16.gmra.mxu0 %v3094
      %v3243 = vpop.f32.mrf.mxu0
      %v3244 = vadd.f32 0.0, %v3243
      %v3245 = vpop.f32.mrf.mxu0
      %v3246 = vadd.f32 0.0, %v3245
      %3247 = vmatmul.bf16.gmra.mxu0 %v3095
      %v3248 = vpop.f32.mrf.mxu0
      %v3249 = vadd.f32 0.0, %v3248
      %v3250 = vpop.f32.mrf.mxu0
      %v3251 = vadd.f32 0.0, %v3250
      %3252 = vmatmul.bf16.gmra.mxu0 %v3096
      %v3253 = vpop.f32.mrf.mxu0
      %v3254 = vadd.f32 0.0, %v3253
      %v3255 = vpop.f32.mrf.mxu0
      %v3256 = vadd.f32 0.0, %v3255
      %3257 = vmatmul.bf16.gmra.mxu0 %v3097
      %v3258 = vpop.f32.mrf.mxu0
      %v3259 = vadd.f32 0.0, %v3258
      %v3260 = vpop.f32.mrf.mxu0
      %v3261 = vadd.f32 0.0, %v3260
      %3262 = vmatmul.bf16.gmra.mxu0 %v3098
      %v3263 = vpop.f32.mrf.mxu0
      %v3264 = vadd.f32 0.0, %v3263
      %v3265 = vpop.f32.mrf.mxu0
      %v3266 = vadd.f32 0.0, %v3265
      %3267 = vmatmul.bf16.gmra.mxu0 %v3099
      %v3268 = vpop.f32.mrf.mxu0
      %v3269 = vadd.f32 0.0, %v3268
      %v3270 = vpop.f32.mrf.mxu0
      %v3271 = vadd.f32 0.0, %v3270
      %3272 = vmatmul.bf16.gmra.mxu0 %v3100
      %v3273 = vpop.f32.mrf.mxu0
      %v3274 = vadd.f32 0.0, %v3273
      %v3275 = vpop.f32.mrf.mxu0
      %v3276 = vadd.f32 0.0, %v3275
      %3277 = vmatmul.bf16.gmra.mxu0 %v3101
      %v3278 = vpop.f32.mrf.mxu0
      %v3279 = vadd.f32 0.0, %v3278
      %v3280 = vpop.f32.mrf.mxu0
      %v3281 = vadd.f32 0.0, %v3280
      %3282 = vmatmul.bf16.gmra.mxu0 %v3102
      %v3283 = vpop.f32.mrf.mxu0
      %v3284 = vadd.f32 0.0, %v3283
      %v3285 = vpop.f32.mrf.mxu0
      %v3286 = vadd.f32 0.0, %v3285
      %3287 = vmatmul.bf16.gmra.mxu0 %v3103
      %v3288 = vpop.f32.mrf.mxu0
      %v3289 = vadd.f32 0.0, %v3288
      %v3290 = vpop.f32.mrf.mxu0
      %v3291 = vadd.f32 0.0, %v3290
      %3292 = vmatmul.bf16.gmra.mxu0 %v3104
      %v3293 = vpop.f32.mrf.mxu0
      %v3294 = vadd.f32 0.0, %v3293
      %v3295 = vpop.f32.mrf.mxu0
      %v3296 = vadd.f32 0.0, %v3295
      %3297 = vmatmul.bf16.gmra.mxu0 %v3105
      %v3298 = vpop.f32.mrf.mxu0
      %v3299 = vadd.f32 0.0, %v3298
      %v3300 = vpop.f32.mrf.mxu0
      %v3301 = vadd.f32 0.0, %v3300
      %3302 = vmatmul.bf16.gmra.mxu0 %v3106
      %v3303 = vpop.f32.mrf.mxu0
      %v3304 = vadd.f32 0.0, %v3303
      %v3305 = vpop.f32.mrf.mxu0
      %v3306 = vadd.f32 0.0, %v3305
      %3307 = vmatmul.bf16.gmra.mxu0 %v3107
      %v3308 = vpop.f32.mrf.mxu0
      %v3309 = vadd.f32 0.0, %v3308
      %v3310 = vpop.f32.mrf.mxu0
      %v3311 = vadd.f32 0.0, %v3310
      %3312 = vmatmul.bf16.gmra.mxu0 %v3108
      %v3313 = vpop.f32.mrf.mxu0
      %v3314 = vadd.f32 0.0, %v3313
      %v3315 = vpop.f32.mrf.mxu0
      %v3316 = vadd.f32 0.0, %v3315
      %3317 = vmatmul.bf16.gmra.mxu0 %v3109
      %v3318 = vpop.f32.mrf.mxu0
      %v3319 = vadd.f32 0.0, %v3318
      %v3320 = vpop.f32.mrf.mxu0
      %v3321 = vadd.f32 0.0, %v3320
      %3322 = vmatmul.bf16.gmra.mxu0 %v3110
      %v3323 = vpop.f32.mrf.mxu0
      %v3324 = vadd.f32 0.0, %v3323
      %v3325 = vpop.f32.mrf.mxu0
      %v3326 = vadd.f32 0.0, %v3325
      %3327 = vmatmul.bf16.gmra.mxu0 %v3111
      %v3328 = vpop.f32.mrf.mxu0
      %v3329 = vadd.f32 0.0, %v3328
      %v3330 = vpop.f32.mrf.mxu0
      %v3331 = vadd.f32 0.0, %v3330
      %3332 = vmatmul.bf16.gmra.mxu0 %v3112
      %v3333 = vpop.f32.mrf.mxu0
      %v3334 = vadd.f32 0.0, %v3333
      %v3335 = vpop.f32.mrf.mxu0
      %v3336 = vadd.f32 0.0, %v3335
      %3337 = vmatmul.bf16.gmra.mxu0 %v3113
      %v3338 = vpop.f32.mrf.mxu0
      %v3339 = vadd.f32 0.0, %v3338
      %v3340 = vpop.f32.mrf.mxu0
      %v3341 = vadd.f32 0.0, %v3340
      %3342 = vmatmul.bf16.gmra.mxu0 %v3114
      %v3343 = vpop.f32.mrf.mxu0
      %v3344 = vadd.f32 0.0, %v3343
      %v3345 = vpop.f32.mrf.mxu0
      %v3346 = vadd.f32 0.0, %v3345
      %3347 = vdwg.mxu0
      %3348 = vst [vmem:[%s280] sm:$0xff] %v3189
      %3349 = vst [vmem:[%s280 + $0x8] sm:$0xff] %v3191
      %3350 = vst [vmem:[%s280 + $0x10] sm:$0xff] %v3194
      %3351 = vst [vmem:[%s280 + $0x18] sm:$0xff] %v3196
      %3352 = vst [vmem:[%s280 + $0x20] sm:$0xff] %v3199
      %3353 = vst [vmem:[%s280 + $0x28] sm:$0xff] %v3201
      %3354 = vst [vmem:[%s280 + $0x30] sm:$0xff] %v3204
      %3355 = vst [vmem:[%s280 + $0x38] sm:$0xff] %v3206
      %3356 = vst [vmem:[%s280 + $0x40] sm:$0xff] %v3209
      %3357 = vst [vmem:[%s280 + $0x48] sm:$0xff] %v3211
      %3358 = vst [vmem:[%s280 + $0x50] sm:$0xff] %v3214
      %3359 = vst [vmem:[%s280 + $0x58] sm:$0xff] %v3216
      %3360 = vst [vmem:[%s280 + $0x60] sm:$0xff] %v3219
      %3361 = vst [vmem:[%s280 + $0x68] sm:$0xff] %v3221
      %3362 = vst [vmem:[%s280 + $0x70] sm:$0xff] %v3224
      %3363 = vst [vmem:[%s280 + $0x78] sm:$0xff] %v3226
      %3364 = vst [vmem:[%s280 + $0x80] sm:$0xff] %v3229
      %3365 = vst [vmem:[%s280 + $0x88] sm:$0xff] %v3231
      %3366 = vst [vmem:[%s280 + $0x90] sm:$0xff] %v3234
      %3367 = vst [vmem:[%s280 + $0x98] sm:$0xff] %v3236
      %3368 = vst [vmem:[%s280 + $0xa0] sm:$0xff] %v3239
      %3369 = vst [vmem:[%s280 + $0xa8] sm:$0xff] %v3241
      %3370 = vst [vmem:[%s280 + $0xb0] sm:$0xff] %v3244
      %3371 = vst [vmem:[%s280 + $0xb8] sm:$0xff] %v3246
      %3372 = vst [vmem:[%s280 + $0xc0] sm:$0xff] %v3249
      %3373 = vst [vmem:[%s280 + $0xc8] sm:$0xff] %v3251
      %3374 = vst [vmem:[%s280 + $0xd0] sm:$0xff] %v3254
      %3375 = vst [vmem:[%s280 + $0xd8] sm:$0xff] %v3256
      %3376 = vst [vmem:[%s280 + $0xe0] sm:$0xff] %v3259
      %3377 = vst [vmem:[%s280 + $0xe8] sm:$0xff] %v3261
      %3378 = vst [vmem:[%s280 + $0xf0] sm:$0xff] %v3264
      %3379 = vst [vmem:[%s280 + $0xf8] sm:$0xff] %v3266
      %3380 = vst [vmem:[%s280 + $0x100] sm:$0xff] %v3269
      %3381 = vst [vmem:[%s280 + $0x108] sm:$0xff] %v3271
      %3382 = vst [vmem:[%s280 + $0x110] sm:$0xff] %v3274
      %3383 = vst [vmem:[%s280 + $0x118] sm:$0xff] %v3276
      %3384 = vst [vmem:[%s280 + $0x120] sm:$0xff] %v3279
      %3385 = vst [vmem:[%s280 + $0x128] sm:$0xff] %v3281
      %3386 = vst [vmem:[%s280 + $0x130] sm:$0xff] %v3284
      %3387 = vst [vmem:[%s280 + $0x138] sm:$0xff] %v3286
      %3388 = vst [vmem:[%s280 + $0x140] sm:$0xff] %v3289
      %3389 = vst [vmem:[%s280 + $0x148] sm:$0xff] %v3291
      %3390 = vst [vmem:[%s280 + $0x150] sm:$0xff] %v3294
      %3391 = vst [vmem:[%s280 + $0x158] sm:$0xff] %v3296
      %3392 = vst [vmem:[%s280 + $0x160] sm:$0xff] %v3299
      %3393 = vst [vmem:[%s280 + $0x168] sm:$0xff] %v3301
      %3394 = vst [vmem:[%s280 + $0x170] sm:$0xff] %v3304
      %3395 = vst [vmem:[%s280 + $0x178] sm:$0xff] %v3306
      %3396 = vst [vmem:[%s280 + $0x180] sm:$0xff] %v3309
      %3397 = vst [vmem:[%s280 + $0x188] sm:$0xff] %v3311
      %3398 = vst [vmem:[%s280 + $0x190] sm:$0xff] %v3314
      %3399 = vst [vmem:[%s280 + $0x198] sm:$0xff] %v3316
      %3400 = vst [vmem:[%s280 + $0x1a0] sm:$0xff] %v3319
      %3401 = vst [vmem:[%s280 + $0x1a8] sm:$0xff] %v3321
      %3402 = vst [vmem:[%s280 + $0x1b0] sm:$0xff] %v3324
      %3403 = vst [vmem:[%s280 + $0x1b8] sm:$0xff] %v3326
      %3404 = vst [vmem:[%s280 + $0x1c0] sm:$0xff] %v3329
      %3405 = vst [vmem:[%s280 + $0x1c8] sm:$0xff] %v3331
      %3406 = vst [vmem:[%s280 + $0x1d0] sm:$0xff] %v3334
      %3407 = vst [vmem:[%s280 + $0x1d8] sm:$0xff] %v3336
      %3408 = vst [vmem:[%s280 + $0x1e0] sm:$0xff] %v3339
      %3409 = vst [vmem:[%s280 + $0x1e8] sm:$0xff] %v3341
      %3410 = vst [vmem:[%s280 + $0x1f0] sm:$0xff] %v3344
      %3411 = vst [vmem:[%s280 + $0x1f8] sm:$0xff] %v3346
      %s3412 = smul.u32 64, %s18
      %p3413 = scmp.lt.s32.totalorder %s3412, 127
      %s3414 = scalar_select %p3413, %s3412, 127
      %s3415 = smul.addr %s3414, 8
      %s3416 = scalar_lea.vmem %s7, %s3415
      // Predicated region
      $region49: #{virt_block_forward.1} parent=47 // pred_check
        %p3417 = pneg %p188
      $region50: #{virt_block_forward.1} parent=47 // pred_check_branch
        %3419 = sbr.rel (%p3417) target = $region52
      $region51: #{virt_block_forward.1} parent=47 // pred_region
        %s3420 = smul.u32 64, %s18
      $region52: #{virt_block_forward.1} parent=47 // pred_fallthru
        _
    $region48: #{virt_block_forward.1} parent=5 // pred_fallthru
      _
    %p3421 = scmp.le.s32.totalorder 2, %s13
    // Predicated region
    $region53: #{virt_block_forward.1} parent=5 // pred_check
      %p3422 = pneg %p3421
    $region54: #{virt_block_forward.1} parent=5 // pred_check_branch
      %3424 = sbr.rel (%p3422) target = $region56
    $region55: #{virt_block_forward.1} parent=5 // pred_region
      %s3425 = ssub.s32 %s13, 2
      // Predicated region
      $region57: #{virt_block_forward.1} parent=55 // pred_check
        %p3426 = pneg %p194
      $region58: #{virt_block_forward.1} parent=55 // pred_check_branch
        %3428 = sbr.rel (%p3426) target = $region60
      $region59: #{virt_block_forward.1} parent=55 // pred_region
        %s3429 = smul.u32 64, %s19
        %p3430 = scmp.lt.s32.totalorder %s3429, 127
        %s3431 = scalar_select %p3430, %s3429, 127
        %s3432 = smul.addr %s3431, 8
        %s3433 = scalar_lea.vmem %s7, %s3432
      $region60: #{virt_block_forward.1} parent=55 // pred_fallthru
        _
    $region56: #{virt_block_forward.1} parent=5 // pred_fallthru
      _
  $region6: #{virt_block_forward.1} parent=0 // loop_footer
    %s17 = sadd.s32 1, %s13
  $region7: #{virt_block_forward.1} parent=0 // loop_footer_branch
    %12 = sbr.rel target = $region3
  $region8: #{virt_block_forward.1} parent=0 // loop_exit
    _

</llo_original>
